<compile_context>
chip_gen: v7x
topology: tpu7x:2x2x1
jax: 0.10.0
libtpu: 0.0.40
codegen_flags: <defaults>
</compile_context>

<pallas_src>
import jax
import jax.numpy as jnp
from jax.experimental import pallas as pl
from jax.experimental.pallas import tpu as pltpu

NZ_IN = 100          # linear2 input features (forward's actual input width)
H = 500              # hidden width
OUT = 28 * 28        # 784
# Lane-aligned (multiple-of-128) padded widths.
NZ_IN_P = 128
H_P = 512
OUT_P = 896
BN_EPS = 1e-5        # nn.BatchNorm2d default eps
NORM_EPS = 1e-6      # F.normalize eps
GROUP = 8            # rows per BN batch-group (must be a multiple of 8)

# Row layout of the packed small-vector array (shape (8, OUT_P), f32).
_ROW_G1, _ROW_BE1, _ROW_G2, _ROW_BE2, _ROW_B4 = 0, 1, 2, 3, 4


def _batchnorm(h, gamma, beta):
    # Training-mode batchnorm over the batch (group) axis, biased variance.
    mean = jnp.mean(h, axis=0, keepdims=True)
    var = jnp.mean(jnp.square(h - mean), axis=0, keepdims=True)
    return (h - mean) * jax.lax.rsqrt(var + BN_EPS) * gamma + beta


def _softplus(x):
    # Numerically stable canonical form: max(x,0) + log1p(exp(-|x|)).
    return jnp.maximum(x, 0.0) + jnp.log1p(jnp.exp(-jnp.abs(x)))


def _netg_kernel(x_ref, w2_ref, w3_ref, w4_ref, vec_ref, o_ref):
    # Small packed vectors (sliced from one DMA'd array).
    g1 = vec_ref[_ROW_G1:_ROW_G1 + 1, :H_P]
    be1 = vec_ref[_ROW_BE1:_ROW_BE1 + 1, :H_P]
    g2 = vec_ref[_ROW_G2:_ROW_G2 + 1, :H_P]
    be2 = vec_ref[_ROW_BE2:_ROW_BE2 + 1, :H_P]
    b4 = vec_ref[_ROW_B4:_ROW_B4 + 1, :]            # (1, OUT_P), padded cols 0

    # linear2: (BG,128) @ (128,512). Bias dropped (cancelled by BN mean-sub).
    h = jnp.dot(x_ref[...], w2_ref[...], preferred_element_type=jnp.float32)
    h = _softplus(_batchnorm(h, g1, be1))

    # linear3: (BG,512) @ (512,512). Bias dropped (cancelled by BN mean-sub).
    h = jnp.dot(h.astype(jnp.bfloat16), w3_ref[...],
                preferred_element_type=jnp.float32)
    h = _softplus(_batchnorm(h, g2, be2))

    # linear4: (BG,512) @ (512,896) + b4. Padded output cols are exactly 0.
    h = jnp.dot(h.astype(jnp.bfloat16), w4_ref[...],
                preferred_element_type=jnp.float32) + b4

    # F.normalize(x, dim=1, eps=1e-6): x / max(||x||, eps)
    #   == x * rsqrt(max(sum(x^2), eps^2))   (padded cols add 0 to the sum)
    sumsq = jnp.sum(jnp.square(h), axis=1, keepdims=True)
    h = h * jax.lax.rsqrt(jnp.maximum(sumsq, NORM_EPS * NORM_EPS))

    # Store only the 784 real output columns (one masked vst on the last vreg).
    o_ref[...] = jax.nn.sigmoid(h[:, :OUT])


def prepare_noise(z):
    """Lane-pad (B,100) f32 noise to (B,128) bf16 (done once at input creation)."""
    B = z.shape[0]
    zp = jnp.zeros((B, NZ_IN_P), jnp.float32).at[:, :NZ_IN].set(z)
    return zp.astype(jnp.bfloat16)


def netg_forward(x_padded, params, *, group_size=GROUP):
    """x_padded: (B, NZ_IN_P) bf16, B = n_groups * group_size.

    Each contiguous `group_size`-row slab is one independent BN batch
    (i.e. one original generator invocation); groups are processed by the grid.
    """
    B = x_padded.shape[0]
    assert x_padded.shape[1] == NZ_IN_P and x_padded.dtype == jnp.bfloat16
    assert group_size % 8 == 0 and B % group_size == 0
    n_groups = B // group_size

    w2, w3, w4, vecs = params["w2"], params["w3"], params["w4"], params["vecs"]

    # Advisory cost estimate (lets XLA schedule the tiny call around neighbors).
    flops = 2 * B * (NZ_IN_P * H_P + H_P * H_P + H_P * OUT_P)
    transcendentals = B * (2 * 2 * H_P + OUT_P + 3)
    bytes_accessed = (w2.size + w3.size + w4.size) * 2 + vecs.size * 4 \
        + x_padded.size * 2 + B * OUT * 4

    out = pl.pallas_call(
        _netg_kernel,
        out_shape=jax.ShapeDtypeStruct((B, OUT), jnp.float32),
        grid=(n_groups,),
        in_specs=[
            # Activations: one group per grid step.
            pl.BlockSpec((group_size, NZ_IN_P), lambda g: (g, 0)),
            # Weights / packed vectors: constant block index -> DMA'd once,
            # VMEM-resident across all grid steps.
            pl.BlockSpec((NZ_IN_P, H_P), lambda g: (0, 0)),
            pl.BlockSpec((H_P, H_P), lambda g: (0, 0)),
            pl.BlockSpec((H_P, OUT_P), lambda g: (0, 0)),
            pl.BlockSpec((8, OUT_P), lambda g: (0, 0)),
        ],
        out_specs=pl.BlockSpec((group_size, OUT), lambda g: (g, 0)),
        compiler_params=pltpu.CompilerParams(
            dimension_semantics=("parallel",),   # megacore sharding on v7x
            vmem_limit_bytes=16 << 20,
        ),
        cost_estimate=pl.CostEstimate(
            flops=int(flops),
            transcendentals=int(transcendentals),
            bytes_accessed=int(bytes_accessed),
        ),
    )(x_padded, w2, w3, w4, vecs)
    return out.reshape(B, 28, 28)


def init_params(key):
    ks = jax.random.split(key, 6)

    def pad_w(w, in_p, out_p):
        # Padded rows/cols MUST stay zero — see invariant note at top of file.
        return jnp.zeros((in_p, out_p), jnp.float32).at[:w.shape[0], :w.shape[1]].set(w)

    # Linear weights ~ N(0, 0.05) per weights_init; stored transposed (in, out)
    # so the kernel computes x @ W == x @ W_pt.T.
    w2 = 0.05 * jax.random.normal(ks[0], (NZ_IN, H), jnp.float32)
    w3 = 0.05 * jax.random.normal(ks[1], (H, H), jnp.float32)
    w4 = 0.05 * jax.random.normal(ks[2], (H, OUT), jnp.float32)

    # linear4 bias keeps PyTorch default init U(-1/sqrt(fan_in), 1/sqrt(fan_in)).
    # b2/b3 are intentionally omitted: a bias right before training-mode
    # BatchNorm is exactly cancelled by the mean subtraction.
    b4 = (jax.random.uniform(ks[3], (OUT,), jnp.float32) * 2.0 - 1.0) / jnp.sqrt(H)

    # BatchNorm weight ~ N(1, 0.05), bias = 0 per weights_init.
    g1 = 1.0 + 0.05 * jax.random.normal(ks[4], (H,), jnp.float32)
    g2 = 1.0 + 0.05 * jax.random.normal(ks[5], (H,), jnp.float32)
    be1 = jnp.zeros((H,), jnp.float32)   # kept so trained checkpoints drop in
    be2 = jnp.zeros((H,), jnp.float32)

    # Weights -> bf16, lane-padded (halves the dominant HBM DMA; native MXU in).
    w2_p = pad_w(w2, NZ_IN_P, H_P).astype(jnp.bfloat16)
    w3_p = pad_w(w3, H_P, H_P).astype(jnp.bfloat16)
    w4_p = pad_w(w4, H_P, OUT_P).astype(jnp.bfloat16)

    # All small vectors packed into ONE lane/sublane-aligned (8, 896) array.
    # Padded lanes are 0; that is inert because the corresponding activation
    # lanes are 0 after BN and padded weight rows are 0 (see invariant note).
    vecs = jnp.zeros((8, OUT_P), jnp.float32)
    vecs = vecs.at[_ROW_G1, :H].set(g1)
    vecs = vecs.at[_ROW_BE1, :H].set(be1)
    vecs = vecs.at[_ROW_G2, :H].set(g2)
    vecs = vecs.at[_ROW_BE2, :H].set(be2)
    vecs = vecs.at[_ROW_B4, :OUT].set(b4)

    return dict(w2=w2_p, w3=w3_p, w4=w4_p, vecs=vecs)


if __name__ == "__main__":
    key = jax.random.PRNGKey(0)
    kx, kp = jax.random.split(key)

    # Two independent generator invocations (BN batches) of 8 samples each,
    # amortized into a single pallas_call via the group grid axis.
    n_groups, group_size = 2, GROUP
    B = n_groups * group_size

    # forward() feeds its input straight into linear2(100 -> 500), so the
    # effective input is (B, 100); pad+cast is folded into input construction.
    z = jax.random.normal(kx, (B, NZ_IN), dtype=jnp.float32)
    x = prepare_noise(z)
    params = init_params(kp)

    out = netg_forward(x, params, group_size=group_size)
    jax.block_until_ready(out)

    assert out.shape == (B, 28, 28)
    assert bool(jnp.all(jnp.isfinite(out)))
    assert bool(jnp.all((out > 0.0) & (out < 1.0)))   # sigmoid range
    print("KERNEL_OK")
</pallas_src>

<mosaic_0001>
module attributes {stable_mosaic.version = 11 : i64} {
  func.func @_netg_kernel(%arg0: i32, %arg1: memref<8x128xbf16, #tpu.memory_space<vmem>>, %arg2: memref<128x512xbf16, #tpu.memory_space<vmem>>, %arg3: memref<512x512xbf16, #tpu.memory_space<vmem>>, %arg4: memref<512x896xbf16, #tpu.memory_space<vmem>>, %arg5: memref<8x896xf32, #tpu.memory_space<vmem>>, %arg6: memref<8x784xf32, #tpu.memory_space<vmem>>) attributes {dimension_semantics = [#tpu.dimension_semantics<parallel>], iteration_bounds = array<i64: 2>, scalar_prefetch = 0 : i64, scratch_operands = 0 : i64, tpu.core_type = #tpu.core_type<tc>, window_params = [{transform_indices = @transform_0, window_bounds = array<i64: 8, 128>}, {pipeline_mode = #tpu.pipeline_mode<synchronous>, transform_indices = @transform_1, window_bounds = array<i64: 128, 512>}, {pipeline_mode = #tpu.pipeline_mode<synchronous>, transform_indices = @transform_2, window_bounds = array<i64: 512, 512>}, {pipeline_mode = #tpu.pipeline_mode<synchronous>, transform_indices = @transform_3, window_bounds = array<i64: 512, 896>}, {pipeline_mode = #tpu.pipeline_mode<synchronous>, transform_indices = @transform_4, window_bounds = array<i64: 8, 896>}, {transform_indices = @transform_5, window_bounds = array<i64: 8, 784>}]} {
    %c0 = arith.constant 0 : index
    %c0_0 = arith.constant 0 : index
    %0 = vector.load %arg5[%c0, %c0_0] : memref<8x896xf32, #tpu.memory_space<vmem>>, vector<1x512xf32>
    %c1 = arith.constant 1 : index
    %c0_1 = arith.constant 0 : index
    %1 = vector.load %arg5[%c1, %c0_1] : memref<8x896xf32, #tpu.memory_space<vmem>>, vector<1x512xf32>
    %c2 = arith.constant 2 : index
    %c0_2 = arith.constant 0 : index
    %2 = vector.load %arg5[%c2, %c0_2] : memref<8x896xf32, #tpu.memory_space<vmem>>, vector<1x512xf32>
    %c3 = arith.constant 3 : index
    %c0_3 = arith.constant 0 : index
    %3 = vector.load %arg5[%c3, %c0_3] : memref<8x896xf32, #tpu.memory_space<vmem>>, vector<1x512xf32>
    %c4 = arith.constant 4 : index
    %c0_4 = arith.constant 0 : index
    %4 = vector.load %arg5[%c4, %c0_4] : memref<8x896xf32, #tpu.memory_space<vmem>>, vector<1x896xf32>
    %c0_5 = arith.constant 0 : index
    %c0_6 = arith.constant 0 : index
    %5 = vector.load %arg1[%c0_5, %c0_6] : memref<8x128xbf16, #tpu.memory_space<vmem>>, vector<8x128xbf16>
    %c0_7 = arith.constant 0 : index
    %c0_8 = arith.constant 0 : index
    %6 = vector.load %arg2[%c0_7, %c0_8] : memref<128x512xbf16, #tpu.memory_space<vmem>>, vector<128x512xbf16>
    %cst = arith.constant dense<0.000000e+00> : vector<8x512xf32>
    %7 = tpu.matmul %5, %6, %cst {dimension_numbers = #tpu.dot_dimension_numbers<[1], [0], [0], [1], [0, 0, 1, 1], [], []>} : vector<8x128xbf16>, vector<128x512xbf16>, vector<8x512xf32> -> vector<8x512xf32>
    %cst_9 = arith.constant dense<0.000000e+00> : vector<512xf32>
    %8 = vector.multi_reduction <add>, %7, %cst_9 [0] : vector<8x512xf32> to vector<512xf32>
    %9 = vector.shape_cast %8 : vector<512xf32> to vector<1x512xf32>
    %cst_10 = arith.constant 8.000000e+00 : f32
    %10 = vector.broadcast %cst_10 : f32 to vector<1x512xf32>
    %11 = arith.divf %9, %10 : vector<1x512xf32>
    %12 = vector.broadcast %11 : vector<1x512xf32> to vector<8x512xf32>
    %13 = arith.subf %7, %12 : vector<8x512xf32>
    %14 = arith.mulf %13, %13 : vector<8x512xf32>
    %cst_11 = arith.constant dense<0.000000e+00> : vector<512xf32>
    %15 = vector.multi_reduction <add>, %14, %cst_11 [0] : vector<8x512xf32> to vector<512xf32>
    %16 = vector.shape_cast %15 : vector<512xf32> to vector<1x512xf32>
    %cst_12 = arith.constant 8.000000e+00 : f32
    %17 = vector.broadcast %cst_12 : f32 to vector<1x512xf32>
    %18 = arith.divf %16, %17 : vector<1x512xf32>
    %19 = vector.broadcast %11 : vector<1x512xf32> to vector<8x512xf32>
    %20 = arith.subf %7, %19 : vector<8x512xf32>
    %cst_13 = arith.constant 9.99999974E-6 : f32
    %21 = vector.broadcast %cst_13 : f32 to vector<1x512xf32>
    %22 = arith.addf %18, %21 : vector<1x512xf32>
    %23 = math.rsqrt %22 : vector<1x512xf32>
    %24 = vector.broadcast %23 : vector<1x512xf32> to vector<8x512xf32>
    %25 = arith.mulf %20, %24 : vector<8x512xf32>
    %26 = vector.broadcast %0 : vector<1x512xf32> to vector<8x512xf32>
    %27 = arith.mulf %25, %26 : vector<8x512xf32>
    %28 = vector.broadcast %1 : vector<1x512xf32> to vector<8x512xf32>
    %29 = arith.addf %27, %28 : vector<8x512xf32>
    %cst_14 = arith.constant 0.000000e+00 : f32
    %30 = vector.broadcast %cst_14 : f32 to vector<8x512xf32>
    %31 = arith.maximumf %29, %30 : vector<8x512xf32>
    %32 = math.absf %29 : vector<8x512xf32>
    %cst_15 = arith.constant 0.000000e+00 : f32
    %33 = vector.broadcast %cst_15 : f32 to vector<8x512xf32>
    %34 = arith.subf %33, %32 : vector<8x512xf32>
    %35 = math.exp %34 : vector<8x512xf32>
    %36 = math.log1p %35 : vector<8x512xf32>
    %37 = arith.addf %31, %36 : vector<8x512xf32>
    %38 = arith.truncf %37 : vector<8x512xf32> to vector<8x512xbf16>
    %c0_16 = arith.constant 0 : index
    %c0_17 = arith.constant 0 : index
    %39 = vector.load %arg3[%c0_16, %c0_17] : memref<512x512xbf16, #tpu.memory_space<vmem>>, vector<512x512xbf16>
    %cst_18 = arith.constant dense<0.000000e+00> : vector<8x512xf32>
    %40 = tpu.matmul %38, %39, %cst_18 {dimension_numbers = #tpu.dot_dimension_numbers<[1], [0], [0], [1], [0, 0, 1, 1], [], []>} : vector<8x512xbf16>, vector<512x512xbf16>, vector<8x512xf32> -> vector<8x512xf32>
    %cst_19 = arith.constant dense<0.000000e+00> : vector<512xf32>
    %41 = vector.multi_reduction <add>, %40, %cst_19 [0] : vector<8x512xf32> to vector<512xf32>
    %42 = vector.shape_cast %41 : vector<512xf32> to vector<1x512xf32>
    %cst_20 = arith.constant 8.000000e+00 : f32
    %43 = vector.broadcast %cst_20 : f32 to vector<1x512xf32>
    %44 = arith.divf %42, %43 : vector<1x512xf32>
    %45 = vector.broadcast %44 : vector<1x512xf32> to vector<8x512xf32>
    %46 = arith.subf %40, %45 : vector<8x512xf32>
    %47 = arith.mulf %46, %46 : vector<8x512xf32>
    %cst_21 = arith.constant dense<0.000000e+00> : vector<512xf32>
    %48 = vector.multi_reduction <add>, %47, %cst_21 [0] : vector<8x512xf32> to vector<512xf32>
    %49 = vector.shape_cast %48 : vector<512xf32> to vector<1x512xf32>
    %cst_22 = arith.constant 8.000000e+00 : f32
    %50 = vector.broadcast %cst_22 : f32 to vector<1x512xf32>
    %51 = arith.divf %49, %50 : vector<1x512xf32>
    %52 = vector.broadcast %44 : vector<1x512xf32> to vector<8x512xf32>
    %53 = arith.subf %40, %52 : vector<8x512xf32>
    %cst_23 = arith.constant 9.99999974E-6 : f32
    %54 = vector.broadcast %cst_23 : f32 to vector<1x512xf32>
    %55 = arith.addf %51, %54 : vector<1x512xf32>
    %56 = math.rsqrt %55 : vector<1x512xf32>
    %57 = vector.broadcast %56 : vector<1x512xf32> to vector<8x512xf32>
    %58 = arith.mulf %53, %57 : vector<8x512xf32>
    %59 = vector.broadcast %2 : vector<1x512xf32> to vector<8x512xf32>
    %60 = arith.mulf %58, %59 : vector<8x512xf32>
    %61 = vector.broadcast %3 : vector<1x512xf32> to vector<8x512xf32>
    %62 = arith.addf %60, %61 : vector<8x512xf32>
    %cst_24 = arith.constant 0.000000e+00 : f32
    %63 = vector.broadcast %cst_24 : f32 to vector<8x512xf32>
    %64 = arith.maximumf %62, %63 : vector<8x512xf32>
    %65 = math.absf %62 : vector<8x512xf32>
    %cst_25 = arith.constant 0.000000e+00 : f32
    %66 = vector.broadcast %cst_25 : f32 to vector<8x512xf32>
    %67 = arith.subf %66, %65 : vector<8x512xf32>
    %68 = math.exp %67 : vector<8x512xf32>
    %69 = math.log1p %68 : vector<8x512xf32>
    %70 = arith.addf %64, %69 : vector<8x512xf32>
    %71 = arith.truncf %70 : vector<8x512xf32> to vector<8x512xbf16>
    %c0_26 = arith.constant 0 : index
    %c0_27 = arith.constant 0 : index
    %72 = vector.load %arg4[%c0_26, %c0_27] : memref<512x896xbf16, #tpu.memory_space<vmem>>, vector<512x896xbf16>
    %cst_28 = arith.constant dense<0.000000e+00> : vector<8x896xf32>
    %73 = tpu.matmul %71, %72, %cst_28 {dimension_numbers = #tpu.dot_dimension_numbers<[1], [0], [0], [1], [0, 0, 1, 1], [], []>} : vector<8x512xbf16>, vector<512x896xbf16>, vector<8x896xf32> -> vector<8x896xf32>
    %74 = vector.broadcast %4 : vector<1x896xf32> to vector<8x896xf32>
    %75 = arith.addf %73, %74 : vector<8x896xf32>
    %76 = arith.mulf %75, %75 : vector<8x896xf32>
    %cst_29 = arith.constant dense<0.000000e+00> : vector<8xf32>
    %77 = vector.multi_reduction <add>, %76, %cst_29 [1] : vector<8x896xf32> to vector<8xf32>
    %78 = vector.shape_cast %77 : vector<8xf32> to vector<8x1xf32>
    %cst_30 = arith.constant 9.99999996E-13 : f32
    %79 = vector.broadcast %cst_30 : f32 to vector<8x1xf32>
    %80 = arith.maximumf %78, %79 : vector<8x1xf32>
    %81 = math.rsqrt %80 : vector<8x1xf32>
    %82 = vector.broadcast %81 : vector<8x1xf32> to vector<8x896xf32>
    %83 = arith.mulf %75, %82 : vector<8x896xf32>
    %84 = vector.extract_strided_slice %83 {offsets = [0, 0], sizes = [8, 784], strides = [1, 1]} : vector<8x896xf32> to vector<8x784xf32>
    %85 = arith.negf %84 : vector<8x784xf32>
    %86 = math.exp %85 : vector<8x784xf32>
    %cst_31 = arith.constant 1.000000e+00 : f32
    %87 = vector.broadcast %cst_31 : f32 to vector<8x784xf32>
    %88 = arith.addf %87, %86 : vector<8x784xf32>
    %89 = arith.divf %87, %88 : vector<8x784xf32>
    %c0_32 = arith.constant 0 : index
    %c0_33 = arith.constant 0 : index
    %90 = vector.load %arg6[%c0_32, %c0_33] : memref<8x784xf32, #tpu.memory_space<vmem>>, vector<8x784xf32>
    tpu.vector_store %arg6[%c0_32, %c0_33], %89 {strides = array<i32>} : memref<8x784xf32, #tpu.memory_space<vmem>>, vector<8x784xf32>,
    return
  }
  func.func @transform_0(%arg0: i32) -> (i32, i32) {
    %c0_i32 = arith.constant 0 : i32
    %c0_i32_0 = arith.constant 0 : i32
    return %arg0, %c0_i32 : i32, i32
  }
  func.func @transform_1(%arg0: i32) -> (i32, i32) {
    %c0_i32 = arith.constant 0 : i32
    %c0_i32_0 = arith.constant 0 : i32
    %c0_i32_1 = arith.constant 0 : i32
    return %c0_i32, %c0_i32_0 : i32, i32
  }
  func.func @transform_2(%arg0: i32) -> (i32, i32) {
    %c0_i32 = arith.constant 0 : i32
    %c0_i32_0 = arith.constant 0 : i32
    %c0_i32_1 = arith.constant 0 : i32
    return %c0_i32, %c0_i32_0 : i32, i32
  }
  func.func @transform_3(%arg0: i32) -> (i32, i32) {
    %c0_i32 = arith.constant 0 : i32
    %c0_i32_0 = arith.constant 0 : i32
    %c0_i32_1 = arith.constant 0 : i32
    return %c0_i32, %c0_i32_0 : i32, i32
  }
  func.func @transform_4(%arg0: i32) -> (i32, i32) {
    %c0_i32 = arith.constant 0 : i32
    %c0_i32_0 = arith.constant 0 : i32
    %c0_i32_1 = arith.constant 0 : i32
    return %c0_i32, %c0_i32_0 : i32, i32
  }
  func.func @transform_5(%arg0: i32) -> (i32, i32) {
    %c0_i32 = arith.constant 0 : i32
    %c0_i32_0 = arith.constant 0 : i32
    return %arg0, %c0_i32 : i32, i32
  }
}

</mosaic_0001>

<llo_original>
// kernel: tpu_custom_call.1
$region0: #{tpu_custom_call.1}
  #allocation0 [shape = 'u32[]', space=smem, size = 0x4, offset = 0x4, fixed_abs, tag = 'smem constant byte address 0x4 - core index']
  #allocation1 [shape = 'u32[144,128]{1,0:T(1,128)}', space=vmem, size = 0x12000, scoped, tag = 'internal scratch']
  %s0 = inlined_call_operand.hbm [shape: bf16[16,128], index: 0, kind: input, shape index: {}]
  %s1 = inlined_call_operand.hbm [shape: bf16[128,512], index: 1, kind: input, shape index: {}]
  %s2 = inlined_call_operand.hbm [shape: bf16[512,512], index: 2, kind: input, shape index: {}]
  %s3 = inlined_call_operand.hbm [shape: bf16[512,896], index: 3, kind: input, shape index: {}]
  %s4 = inlined_call_operand.hbm [shape: f32[8,896], index: 4, kind: input, shape index: {}]
  %s5 = inlined_call_operand.hbm [shape: f32[16,784], index: 5, kind: output, shape index: {}]
  %s6 = sld [smem:[#allocation0]]
  $region73: #{tpu_custom_call.1} parent=0
    _
  %s8 = ssub.s32 1, %s6
  %s9 = scalar_select 0, %s8, %s6
  $region1: #{tpu_custom_call.1} parent=0
    #allocation2 [shape = 'u8[4096]{0}', space=vmem, size = 0x1000, scoped, tag = 'input window, operand 0']
    #allocation3 [shape = 's32[2]{0}', space=sflag, size = 0x8, scoped, tag = 'scoped memory for tpu_custom_call.1']
    #allocation4 [shape = 's32[2]{0}', space=sflag, size = 0x8, scoped, tag = 'scoped memory for tpu_custom_call.1']
    #allocation5 [shape = 'u8[131072]{0}', space=vmem, size = 0x20000, scoped, tag = 'input window, operand 1, single buffered']
    #allocation6 [shape = 's32[1]{0}', space=sflag, size = 0x4, scoped, tag = 'scoped memory for tpu_custom_call.1']
    #allocation7 [shape = 'u8[524288]{0}', space=vmem, size = 0x80000, scoped, tag = 'input window, operand 2, single buffered']
    #allocation8 [shape = 'u8[917504]{0}', space=vmem, size = 0xe0000, scoped, tag = 'input window, operand 3, single buffered']
    #allocation9 [shape = 's32[1]{0}', space=sflag, size = 0x4, scoped, tag = 'scoped memory for tpu_custom_call.1']
    #allocation10 [shape = 'u8[28672]{0}', space=vmem, size = 0x7000, scoped, tag = 'input window, operand 4, single buffered']
    #allocation11 [shape = 'u8[57344]{0}', space=vmem, size = 0xe000, scoped, tag = 'output window, operand 0']
    %10 = vsyncpa [#allocation3], 0
    %s11 = scalar_lea.sflag [#allocation3], 1
    %12 = vsyncpa %s11, 0
    %13 = vsyncpa [#allocation6], 0
    %14 = vsyncpa [#allocation9], 0
    %15 = vsyncpa [#allocation4], 0
    %s16 = scalar_lea.sflag [#allocation4], 1
    %17 = vsyncpa %s16, 0
    loop: start=0, step=1, limit=4
    $region2: #{tpu_custom_call.1} parent=1 // loop_pre_header
      _
    $region3: #{tpu_custom_call.1} parent=1 // loop_header
      %s19 = sphi 0, %s23
      %p20 = scmp.ge.s32.totalorder %s19, 4
      %s29 = sphi 0, %s31
      %s32 = sphi 0, %s29
      %s33 = sphi 0, %s32
      %s49 = sphi 0, %s33
      %s53 = sphi 0, %s53
      %s55 = sphi 0, %s53
      %s56 = sphi 0, %s55
      %s70 = sphi 0, %s56
      %s74 = sphi 0, %s74
      %s76 = sphi 0, %s74
      %s77 = sphi 0, %s76
      %s91 = sphi 0, %s77
      %s95 = sphi 0, %s95
      %s97 = sphi 0, %s95
      %s98 = sphi 0, %s97
      %s112 = sphi 0, %s98
      %s116 = sphi 0, %s116
      %s118 = sphi 0, %s116
      %s119 = sphi 0, %s118
      %s133 = sphi 0, %s119
      %s139 = sphi 0, %s141
      %s142 = sphi 0, %s139
      %s143 = sphi 0, %s142
      %s159 = sphi 0, %s143
    $region4: #{tpu_custom_call.1} parent=1 // loop_header_branch
      %22 = sbr.rel (%p20) target = $region8
    $region5: #{tpu_custom_call.1} parent=1 // loop_body
      %s24 = ssub.s32 %s19, 1
      %s25 = ssub.s32 %s19, 2
      %s26 = sadd.s32 %s19, 1
      %s27 = ssub.s32 %s19, %s26
      %p28 = scmp.eq.s32.totalorder %s27, 0
      %s30 = sadd.s32 %s29, 1
      %s31 = scalar_select %p28, %s29, %s30
      %p34 = pneg %p28
      %p35 = scmp.eq.s32.totalorder %s19, 1
      %p36 = por %p34, %p35
      %p37 = scmp.ne.s32.totalorder %s29, %s32
      %p38 = scmp.eq.s32.totalorder %s19, 0
      %p39 = por %p37, %p38
      %p40 = scmp.ne.s32.totalorder %s29, %s32
      %p41 = scmp.eq.s32.totalorder %s24, 1
      %p42 = por %p40, %p41
      %p43 = scmp.ne.s32.totalorder %s32, %s33
      %p44 = scmp.eq.s32.totalorder %s24, 0
      %p45 = por %p43, %p44
      %p46 = scmp.ne.s32.totalorder %s32, %s33
      %p47 = scmp.eq.s32.totalorder %s25, 1
      %p48 = por %p46, %p47
      %p50 = scmp.ne.s32.totalorder %s33, %s49
      %p51 = scmp.eq.s32.totalorder %s25, 0
      %p52 = por %p50, %p51
      %s54 = sadd.s32 %s53, 1
      %p57 = scmp.eq.s32.totalorder %s19, 1
      %p58 = scmp.ne.s32.totalorder %s53, %s55
      %p59 = scmp.eq.s32.totalorder %s19, 0
      %p60 = por %p58, %p59
      %p61 = scmp.ne.s32.totalorder %s53, %s55
      %p62 = scmp.eq.s32.totalorder %s24, 1
      %p63 = por %p61, %p62
      %p64 = scmp.ne.s32.totalorder %s55, %s56
      %p65 = scmp.eq.s32.totalorder %s24, 0
      %p66 = por %p64, %p65
      %p67 = scmp.ne.s32.totalorder %s55, %s56
      %p68 = scmp.eq.s32.totalorder %s25, 1
      %p69 = por %p67, %p68
      %p71 = scmp.ne.s32.totalorder %s56, %s70
      %p72 = scmp.eq.s32.totalorder %s25, 0
      %p73 = por %p71, %p72
      %s75 = sadd.s32 %s74, 1
      %p78 = scmp.eq.s32.totalorder %s19, 1
      %p79 = scmp.ne.s32.totalorder %s74, %s76
      %p80 = scmp.eq.s32.totalorder %s19, 0
      %p81 = por %p79, %p80
      %p82 = scmp.ne.s32.totalorder %s74, %s76
      %p83 = scmp.eq.s32.totalorder %s24, 1
      %p84 = por %p82, %p83
      %p85 = scmp.ne.s32.totalorder %s76, %s77
      %p86 = scmp.eq.s32.totalorder %s24, 0
      %p87 = por %p85, %p86
      %p88 = scmp.ne.s32.totalorder %s76, %s77
      %p89 = scmp.eq.s32.totalorder %s25, 1
      %p90 = por %p88, %p89
      %p92 = scmp.ne.s32.totalorder %s77, %s91
      %p93 = scmp.eq.s32.totalorder %s25, 0
      %p94 = por %p92, %p93
      %s96 = sadd.s32 %s95, 1
      %p99 = scmp.eq.s32.totalorder %s19, 1
      %p100 = scmp.ne.s32.totalorder %s95, %s97
      %p101 = scmp.eq.s32.totalorder %s19, 0
      %p102 = por %p100, %p101
      %p103 = scmp.ne.s32.totalorder %s95, %s97
      %p104 = scmp.eq.s32.totalorder %s24, 1
      %p105 = por %p103, %p104
      %p106 = scmp.ne.s32.totalorder %s97, %s98
      %p107 = scmp.eq.s32.totalorder %s24, 0
      %p108 = por %p106, %p107
      %p109 = scmp.ne.s32.totalorder %s97, %s98
      %p110 = scmp.eq.s32.totalorder %s25, 1
      %p111 = por %p109, %p110
      %p113 = scmp.ne.s32.totalorder %s98, %s112
      %p114 = scmp.eq.s32.totalorder %s25, 0
      %p115 = por %p113, %p114
      %s117 = sadd.s32 %s116, 1
      %p120 = scmp.eq.s32.totalorder %s19, 1
      %p121 = scmp.ne.s32.totalorder %s116, %s118
      %p122 = scmp.eq.s32.totalorder %s19, 0
      %p123 = por %p121, %p122
      %p124 = scmp.ne.s32.totalorder %s116, %s118
      %p125 = scmp.eq.s32.totalorder %s24, 1
      %p126 = por %p124, %p125
      %p127 = scmp.ne.s32.totalorder %s118, %s119
      %p128 = scmp.eq.s32.totalorder %s24, 0
      %p129 = por %p127, %p128
      %p130 = scmp.ne.s32.totalorder %s118, %s119
      %p131 = scmp.eq.s32.totalorder %s25, 1
      %p132 = por %p130, %p131
      %p134 = scmp.ne.s32.totalorder %s119, %s133
      %p135 = scmp.eq.s32.totalorder %s25, 0
      %p136 = por %p134, %p135
      %s137 = ssub.s32 %s19, %s26
      %p138 = scmp.eq.s32.totalorder %s137, 0
      %s140 = sadd.s32 %s139, 1
      %s141 = scalar_select %p138, %s139, %s140
      %p144 = pneg %p138
      %p145 = scmp.eq.s32.totalorder %s19, 1
      %p146 = por %p144, %p145
      %p147 = scmp.ne.s32.totalorder %s139, %s142
      %p148 = scmp.eq.s32.totalorder %s19, 0
      %p149 = por %p147, %p148
      %p150 = scmp.ne.s32.totalorder %s139, %s142
      %p151 = scmp.eq.s32.totalorder %s24, 1
      %p152 = por %p150, %p151
      %p153 = scmp.ne.s32.totalorder %s142, %s143
      %p154 = scmp.eq.s32.totalorder %s24, 0
      %p155 = por %p153, %p154
      %p156 = scmp.ne.s32.totalorder %s142, %s143
      %p157 = scmp.eq.s32.totalorder %s25, 1
      %p158 = por %p156, %p157
      %p160 = scmp.ne.s32.totalorder %s143, %s159
      %p161 = scmp.eq.s32.totalorder %s25, 0
      %p162 = por %p160, %p161
      %p163 = scmp.le.s32.totalorder 1, %s19
      %p164 = scmp.lt.s32.totalorder %s19, 3
      %p165 = pnand %p163, %p164
      %p166 = pneg %p165
      // Predicated region
      $region9: #{tpu_custom_call.1} parent=5 // pred_check
        _
      $region10: #{tpu_custom_call.1} parent=5 // pred_check_branch
        %168 = sbr.rel (%p165) target = $region12
      $region11: #{tpu_custom_call.1} parent=5 // pred_region
        %s169 = ssub.s32 %s19, 1
        // Predicated region
        $region13: #{tpu_custom_call.1} parent=11 // pred_check
          %p170 = pneg %p66
        $region14: #{tpu_custom_call.1} parent=11 // pred_check_branch
          %172 = sbr.rel (%p170) target = $region16
        $region15: #{tpu_custom_call.1} parent=11 // pred_region
          %s174 = ssub.s32 4096, 4096
          %175 = vsyncadd [#allocation6], %s174
          %s176 = sshll.u32 [#allocation5], 4
          %s177 = int_to_ptr.vmem [resolvable:$true] %s176
          %182 = dma.hbm_to_vmem [thread:$0]  %s1, 4096, %s177, [#allocation6], 256, 256, 16
        $region16: #{tpu_custom_call.1} parent=11 // pred_fallthru
          _
        // Predicated region
        $region17: #{tpu_custom_call.1} parent=11 // pred_check
          %p183 = pneg %p87
        $region18: #{tpu_custom_call.1} parent=11 // pred_check_branch
          %185 = sbr.rel (%p183) target = $region20
        $region19: #{tpu_custom_call.1} parent=11 // pred_region
          %s187 = ssub.s32 16384, 16384
          %188 = vsyncadd [#allocation6], %s187
          %s189 = sshll.u32 [#allocation7], 4
          %s190 = int_to_ptr.vmem [resolvable:$true] %s189
          %195 = dma.hbm_to_vmem [thread:$0]  %s2, 16384, %s190, [#allocation6], 256, 256, 16
        $region20: #{tpu_custom_call.1} parent=11 // pred_fallthru
          _
        // Predicated region
        $region21: #{tpu_custom_call.1} parent=11 // pred_check
          %p196 = pneg %p108
        $region22: #{tpu_custom_call.1} parent=11 // pred_check_branch
          %198 = sbr.rel (%p196) target = $region24
        $region23: #{tpu_custom_call.1} parent=11 // pred_region
          %s200 = ssub.s32 28672, 28672
          %201 = vsyncadd [#allocation9], %s200
          %s202 = sshll.u32 [#allocation8], 4
          %s203 = int_to_ptr.vmem [resolvable:$true] %s202
          %208 = dma.hbm_to_vmem [thread:$0]  %s3, 28672, %s203, [#allocation9], 448, 448, 28
        $region24: #{tpu_custom_call.1} parent=11 // pred_fallthru
          _
        // Predicated region
        $region25: #{tpu_custom_call.1} parent=11 // pred_check
          %p209 = pneg %p129
        $region26: #{tpu_custom_call.1} parent=11 // pred_check_branch
          %211 = sbr.rel (%p209) target = $region28
        $region27: #{tpu_custom_call.1} parent=11 // pred_region
          %s213 = ssub.s32 896, 896
          %214 = vsyncadd [#allocation9], %s213
          %s216 = sshll.u32 [#allocation10], 4
          %s217 = int_to_ptr.vmem [resolvable:$true] %s216
          %219 = dma.hbm_to_vmem [thread:$0]  %s4, 896, %s217, [#allocation9]
        $region28: #{tpu_custom_call.1} parent=11 // pred_fallthru
          _
      $region12: #{tpu_custom_call.1} parent=5 // pred_fallthru
        _
      %p220 = scmp.lt.s32.totalorder %s19, 2
      // Predicated region
      $region29: #{tpu_custom_call.1} parent=5 // pred_check
        %p221 = pneg %p220
      $region30: #{tpu_custom_call.1} parent=5 // pred_check_branch
        %223 = sbr.rel (%p221) target = $region32
      $region31: #{tpu_custom_call.1} parent=5 // pred_region
        // Predicated region
        $region33: #{tpu_custom_call.1} parent=31 // pred_check
          %p224 = pneg %p39
        $region34: #{tpu_custom_call.1} parent=31 // pred_check_branch
          %226 = sbr.rel (%p224) target = $region36
        $region35: #{tpu_custom_call.1} parent=31 // pred_region
          %s227 = sand.u32 %s29, 1
          %s228 = scalar_lea.sflag [#allocation3], %s227
          %s229 = sand.u32 %s29, 1
          %s230 = smul.addr %s229, 4
          %s231 = scalar_lea.vmem [#allocation2], %s230
          %s233 = ssub.s32 64, 64
          %234 = vsyncadd %s228, %s233
          %s235 = smul.addr %s19, 64
          %s236 = scalar_lea.hbm %s0, %s235
          %s238 = sshll.u32 %s231, 4
          %s239 = int_to_ptr.vmem [resolvable:$true] %s238
          %241 = dma.hbm_to_vmem [thread:$0]  %s236, 64, %s239, %s228
        $region36: #{tpu_custom_call.1} parent=31 // pred_fallthru
          _
      $region32: #{tpu_custom_call.1} parent=5 // pred_fallthru
        _
      %p242 = scmp.le.s32.totalorder 1, %s19
      %p243 = scmp.lt.s32.totalorder %s19, 3
      %p244 = pnand %p242, %p243
      %p245 = pneg %p244
      // Predicated region
      $region37: #{tpu_custom_call.1} parent=5 // pred_check
        _
      $region38: #{tpu_custom_call.1} parent=5 // pred_check_branch
        %247 = sbr.rel (%p244) target = $region40
      $region39: #{tpu_custom_call.1} parent=5 // pred_region
        %s248 = ssub.s32 %s19, 1
        %s249 = sand.u32 %s32, 1
        %s250 = scalar_lea.sflag [#allocation3], %s249
        %s251 = sand.u32 %s32, 1
        %s252 = smul.addr %s251, 4
        %s253 = scalar_lea.vmem [#allocation2], %s252
        // Predicated region
        $region41: #{tpu_custom_call.1} parent=39 // pred_check
          %p254 = pneg %p45
        $region42: #{tpu_custom_call.1} parent=39 // pred_check_branch
          %256 = sbr.rel (%p254) target = $region44
        $region43: #{tpu_custom_call.1} parent=39 // pred_region
          %257 = dma.done %s250, 64
        $region44: #{tpu_custom_call.1} parent=39 // pred_fallthru
          _
        // Predicated region
        $region45: #{tpu_custom_call.1} parent=39 // pred_check
          %p258 = pneg %p66
        $region46: #{tpu_custom_call.1} parent=39 // pred_check_branch
          %260 = sbr.rel (%p258) target = $region48
        $region47: #{tpu_custom_call.1} parent=39 // pred_region
          %261 = dma.done [#allocation6], 4096
        $region48: #{tpu_custom_call.1} parent=39 // pred_fallthru
          _
        // Predicated region
        $region49: #{tpu_custom_call.1} parent=39 // pred_check
          %p262 = pneg %p87
        $region50: #{tpu_custom_call.1} parent=39 // pred_check_branch
          %264 = sbr.rel (%p262) target = $region52
        $region51: #{tpu_custom_call.1} parent=39 // pred_region
          %265 = dma.done [#allocation6], 16384
        $region52: #{tpu_custom_call.1} parent=39 // pred_fallthru
          _
        // Predicated region
        $region53: #{tpu_custom_call.1} parent=39 // pred_check
          %p266 = pneg %p108
        $region54: #{tpu_custom_call.1} parent=39 // pred_check_branch
          %268 = sbr.rel (%p266) target = $region56
        $region55: #{tpu_custom_call.1} parent=39 // pred_region
          %269 = dma.done [#allocation9], 28672
        $region56: #{tpu_custom_call.1} parent=39 // pred_fallthru
          _
        // Predicated region
        $region57: #{tpu_custom_call.1} parent=39 // pred_check
          %p270 = pneg %p129
        $region58: #{tpu_custom_call.1} parent=39 // pred_check_branch
          %272 = sbr.rel (%p270) target = $region60
        $region59: #{tpu_custom_call.1} parent=39 // pred_region
          %273 = dma.done [#allocation9], 896
        $region60: #{tpu_custom_call.1} parent=39 // pred_fallthru
          _
        %s274 = sand.u32 %s32, 1
        %s275 = scalar_lea.sflag [#allocation3], %s274
        %s276 = sand.u32 %s32, 1
        %s277 = smul.addr %s276, 4
        %s278 = scalar_lea.vmem [#allocation2], %s277
        %p279 = pneg %p45
        %p280 = pneg %p42
        %p281 = pneg %p66
        %p282 = pneg %p63
        %p283 = pneg %p87
        %p284 = pneg %p84
        %p285 = pneg %p108
        %p286 = pneg %p105
        %p287 = pneg %p129
        %p288 = pneg %p126
        %p289 = pneg %p155
        %p290 = pneg %p152
        %s291 = sand.u32 %s142, 1
        %s292 = scalar_lea.sflag [#allocation4], %s291
        %s293 = sand.u32 %s142, 1
        %s294 = smul.addr %s293, 56
        %s295 = scalar_lea.vmem [#allocation11], %s294
        %v297 = vld [vmem:[#allocation10] ss:$8 sm:$0xf]
        %s298 = scalar_lea.vmem [#allocation10], 1
        %v299 = vld [vmem:[%s298] ss:$8 sm:$0xf]
        %s300 = scalar_lea.vmem [#allocation10], 2
        %v301 = vld [vmem:[%s300] ss:$8 sm:$0xf]
        %s302 = scalar_lea.vmem [#allocation10], 3
        %v303 = vld [vmem:[%s302] ss:$8 sm:$0xf]
        %s304 = scalar_lea.vmem [#allocation10], 4
        %v305 = vld [vmem:[%s304] ss:$8 sm:$0xf]
        %v306 = vld [vmem:[%s304] ss:$8 sm:$0xf0]
        %v307 = vor.u32 %v305, %v306
        %v308 = vld [vmem:[%s253] sm:$0xf]
        %v309 = vld [vmem:[#allocation5] sm:$0xff]
        %v310 = vld [vmem:[#allocation5 + $0x8] sm:$0xff]
        %v311 = vld [vmem:[#allocation5 + $0x10] sm:$0xff]
        %v312 = vld [vmem:[#allocation5 + $0x18] sm:$0xff]
        %v313 = vld [vmem:[#allocation5 + $0x20] sm:$0xff]
        %v314 = vld [vmem:[#allocation5 + $0x28] sm:$0xff]
        %v315 = vld [vmem:[#allocation5 + $0x30] sm:$0xff]
        %v316 = vld [vmem:[#allocation5 + $0x38] sm:$0xff]
        %v317 = vld [vmem:[#allocation5 + $0x40] sm:$0xff]
        %v318 = vld [vmem:[#allocation5 + $0x48] sm:$0xff]
        %v319 = vld [vmem:[#allocation5 + $0x50] sm:$0xff]
        %v320 = vld [vmem:[#allocation5 + $0x58] sm:$0xff]
        %v321 = vld [vmem:[#allocation5 + $0x60] sm:$0xff]
        %v322 = vld [vmem:[#allocation5 + $0x68] sm:$0xff]
        %v323 = vld [vmem:[#allocation5 + $0x70] sm:$0xff]
        %v324 = vld [vmem:[#allocation5 + $0x78] sm:$0xff]
        %v325 = vld [vmem:[#allocation5 + $0x80] sm:$0xff]
        %v326 = vld [vmem:[#allocation5 + $0x88] sm:$0xff]
        %v327 = vld [vmem:[#allocation5 + $0x90] sm:$0xff]
        %v328 = vld [vmem:[#allocation5 + $0x98] sm:$0xff]
        %v329 = vld [vmem:[#allocation5 + $0xa0] sm:$0xff]
        %v330 = vld [vmem:[#allocation5 + $0xa8] sm:$0xff]
        %v331 = vld [vmem:[#allocation5 + $0xb0] sm:$0xff]
        %v332 = vld [vmem:[#allocation5 + $0xb8] sm:$0xff]
        %v333 = vld [vmem:[#allocation5 + $0xc0] sm:$0xff]
        %v334 = vld [vmem:[#allocation5 + $0xc8] sm:$0xff]
        %v335 = vld [vmem:[#allocation5 + $0xd0] sm:$0xff]
        %v336 = vld [vmem:[#allocation5 + $0xd8] sm:$0xff]
        %v337 = vld [vmem:[#allocation5 + $0xe0] sm:$0xff]
        %v338 = vld [vmem:[#allocation5 + $0xe8] sm:$0xff]
        %v339 = vld [vmem:[#allocation5 + $0xf0] sm:$0xff]
        %v340 = vld [vmem:[#allocation5 + $0xf8] sm:$0xff]
        %v373 = vunpack.c.l.b16 %v309
        %v374 = vunpack.c.h.b16 %v309
        %v375 = vunpack.c.l.b16 %v310
        %v376 = vunpack.c.h.b16 %v310
        %v377 = vunpack.c.l.b16 %v311
        %v378 = vunpack.c.h.b16 %v311
        %v379 = vunpack.c.l.b16 %v312
        %v380 = vunpack.c.h.b16 %v312
        %v381 = vunpack.c.l.b16 %v313
        %v382 = vunpack.c.h.b16 %v313
        %v383 = vunpack.c.l.b16 %v314
        %v384 = vunpack.c.h.b16 %v314
        %v385 = vunpack.c.l.b16 %v315
        %v386 = vunpack.c.h.b16 %v315
        %v387 = vunpack.c.l.b16 %v316
        %v388 = vunpack.c.h.b16 %v316
        %v389 = vunpack.c.l.b16 %v317
        %v390 = vunpack.c.h.b16 %v317
        %v391 = vunpack.c.l.b16 %v318
        %v392 = vunpack.c.h.b16 %v318
        %v393 = vunpack.c.l.b16 %v319
        %v394 = vunpack.c.h.b16 %v319
        %v395 = vunpack.c.l.b16 %v320
        %v396 = vunpack.c.h.b16 %v320
        %v397 = vunpack.c.l.b16 %v321
        %v398 = vunpack.c.h.b16 %v321
        %v399 = vunpack.c.l.b16 %v322
        %v400 = vunpack.c.h.b16 %v322
        %v401 = vunpack.c.l.b16 %v323
        %v402 = vunpack.c.h.b16 %v323
        %v403 = vunpack.c.l.b16 %v324
        %v404 = vunpack.c.h.b16 %v324
        %v405 = vunpack.c.l.b16 %v325
        %v406 = vunpack.c.h.b16 %v325
        %v407 = vunpack.c.l.b16 %v326
        %v408 = vunpack.c.h.b16 %v326
        %v409 = vunpack.c.l.b16 %v327
        %v410 = vunpack.c.h.b16 %v327
        %v411 = vunpack.c.l.b16 %v328
        %v412 = vunpack.c.h.b16 %v328
        %v413 = vunpack.c.l.b16 %v329
        %v414 = vunpack.c.h.b16 %v329
        %v415 = vunpack.c.l.b16 %v330
        %v416 = vunpack.c.h.b16 %v330
        %v417 = vunpack.c.l.b16 %v331
        %v418 = vunpack.c.h.b16 %v331
        %v419 = vunpack.c.l.b16 %v332
        %v420 = vunpack.c.h.b16 %v332
        %v421 = vunpack.c.l.b16 %v333
        %v422 = vunpack.c.h.b16 %v333
        %v423 = vunpack.c.l.b16 %v334
        %v424 = vunpack.c.h.b16 %v334
        %v425 = vunpack.c.l.b16 %v335
        %v426 = vunpack.c.h.b16 %v335
        %v427 = vunpack.c.l.b16 %v336
        %v428 = vunpack.c.h.b16 %v336
        %v429 = vunpack.c.l.b16 %v337
        %v430 = vunpack.c.h.b16 %v337
        %v431 = vunpack.c.l.b16 %v338
        %v432 = vunpack.c.h.b16 %v338
        %v433 = vunpack.c.l.b16 %v339
        %v434 = vunpack.c.h.b16 %v339
        %v435 = vunpack.c.l.b16 %v340
        %v436 = vunpack.c.h.b16 %v340
        %v437 = vpack.c.b16 %v377, %v373
        %v438 = vpack.c.b16 %v378, %v374
        %v439 = vpack.c.b16 %v379, %v375
        %v440 = vpack.c.b16 %v380, %v376
        %v441 = vpack.c.b16 %v385, %v381
        %v442 = vpack.c.b16 %v386, %v382
        %v443 = vpack.c.b16 %v387, %v383
        %v444 = vpack.c.b16 %v388, %v384
        %v445 = vpack.c.b16 %v393, %v389
        %v446 = vpack.c.b16 %v394, %v390
        %v447 = vpack.c.b16 %v395, %v391
        %v448 = vpack.c.b16 %v396, %v392
        %v449 = vpack.c.b16 %v401, %v397
        %v450 = vpack.c.b16 %v402, %v398
        %v451 = vpack.c.b16 %v403, %v399
        %v452 = vpack.c.b16 %v404, %v400
        %v453 = vpack.c.b16 %v409, %v405
        %v454 = vpack.c.b16 %v410, %v406
        %v455 = vpack.c.b16 %v411, %v407
        %v456 = vpack.c.b16 %v412, %v408
        %v457 = vpack.c.b16 %v417, %v413
        %v458 = vpack.c.b16 %v418, %v414
        %v459 = vpack.c.b16 %v419, %v415
        %v460 = vpack.c.b16 %v420, %v416
        %v461 = vpack.c.b16 %v425, %v421
        %v462 = vpack.c.b16 %v426, %v422
        %v463 = vpack.c.b16 %v427, %v423
        %v464 = vpack.c.b16 %v428, %v424
        %v465 = vpack.c.b16 %v433, %v429
        %v466 = vpack.c.b16 %v434, %v430
        %v467 = vpack.c.b16 %v435, %v431
        %v468 = vpack.c.b16 %v436, %v432
        %501 = vmatprep.subr.bf16.mxu0 %v438
        %502 = vmatpush1.bf16.msra.mxu0 %v437
        %503 = vmatprep.subr.bf16.mxu0 %v442
        %504 = vmatpush1.bf16.msra.mxu0 %v441
        %505 = vmatprep.subr.bf16.mxu0 %v446
        %506 = vmatpush1.bf16.msra.mxu0 %v445
        %507 = vmatprep.subr.bf16.mxu0 %v450
        %508 = vmatpush1.bf16.msra.mxu0 %v449
        %509 = vmatprep.subr.bf16.mxu0 %v454
        %510 = vmatpush1.bf16.msra.mxu0 %v453
        %511 = vmatprep.subr.bf16.mxu0 %v458
        %512 = vmatpush1.bf16.msra.mxu0 %v457
        %513 = vmatprep.subr.bf16.mxu0 %v462
        %514 = vmatpush1.bf16.msra.mxu0 %v461
        %515 = vmatprep.subr.bf16.mxu0 %v466
        %516 = vmatpush1.bf16.msra.mxu0 %v465
        %517 = vmatprep.subr.bf16.mxu0 0
        %518 = vmatpush1.bf16.msra.mxu0 0
        %519 = vmatprep.subr.bf16.mxu0 0
        %520 = vmatpush1.bf16.msra.mxu0 0
        %521 = vmatprep.subr.bf16.mxu0 0
        %522 = vmatpush1.bf16.msra.mxu0 0
        %523 = vmatprep.subr.bf16.mxu0 0
        %524 = vmatpush1.bf16.msra.mxu0 0
        %525 = vmatprep.subr.bf16.mxu0 0
        %526 = vmatpush1.bf16.msra.mxu0 0
        %527 = vmatprep.subr.bf16.mxu0 0
        %528 = vmatpush1.bf16.msra.mxu0 0
        %529 = vmatprep.subr.bf16.mxu0 0
        %530 = vmatpush1.bf16.msra.mxu0 0
        %531 = vmatprep.subr.bf16.mxu0 0
        %532 = vmatpush1.bf16.msra.mxu0 0
        %533 = vmatprep.mubr.bf16.mxu0 0
        %534 = vmatmul.mubr.bf16.gmra.mrb[0].mxu0 %v308
        %v535 = vpop.f32.mrb[0].mxu0
        %v536 = vadd.f32 0.0, %v535
        %v537 = vpop.f32.mrb[0].mxu0
        %v538 = vadd.f32 0.0, %v537
        %v539 = vpop.f32.mrb[0].mxu0
        %v540 = vpop.f32.mrb[0].mxu0
        %541 = vdwg.mxu0
        %542 = vmatprep.subr.bf16.mxu0 %v440
        %543 = vmatpush1.bf16.msra.mxu0 %v439
        %544 = vmatprep.subr.bf16.mxu0 %v444
        %545 = vmatpush1.bf16.msra.mxu0 %v443
        %546 = vmatprep.subr.bf16.mxu0 %v448
        %547 = vmatpush1.bf16.msra.mxu0 %v447
        %548 = vmatprep.subr.bf16.mxu0 %v452
        %549 = vmatpush1.bf16.msra.mxu0 %v451
        %550 = vmatprep.subr.bf16.mxu0 %v456
        %551 = vmatpush1.bf16.msra.mxu0 %v455
        %552 = vmatprep.subr.bf16.mxu0 %v460
        %553 = vmatpush1.bf16.msra.mxu0 %v459
        %554 = vmatprep.subr.bf16.mxu0 %v464
        %555 = vmatpush1.bf16.msra.mxu0 %v463
        %556 = vmatprep.subr.bf16.mxu0 %v468
        %557 = vmatpush1.bf16.msra.mxu0 %v467
        %558 = vmatprep.subr.bf16.mxu0 0
        %559 = vmatpush1.bf16.msra.mxu0 0
        %560 = vmatprep.subr.bf16.mxu0 0
        %561 = vmatpush1.bf16.msra.mxu0 0
        %562 = vmatprep.subr.bf16.mxu0 0
        %563 = vmatpush1.bf16.msra.mxu0 0
        %564 = vmatprep.subr.bf16.mxu0 0
        %565 = vmatpush1.bf16.msra.mxu0 0
        %566 = vmatprep.subr.bf16.mxu0 0
        %567 = vmatpush1.bf16.msra.mxu0 0
        %568 = vmatprep.subr.bf16.mxu0 0
        %569 = vmatpush1.bf16.msra.mxu0 0
        %570 = vmatprep.subr.bf16.mxu0 0
        %571 = vmatpush1.bf16.msra.mxu0 0
        %572 = vmatprep.subr.bf16.mxu0 0
        %573 = vmatpush1.bf16.msra.mxu0 0
        %574 = vmatprep.mubr.bf16.mxu0 0
        %575 = vmatmul.mubr.bf16.gmra.mrb[0].mxu0 %v308
        %v576 = vpop.f32.mrb[0].mxu0
        %v577 = vadd.f32 0.0, %v576
        %v578 = vpop.f32.mrb[0].mxu0
        %v579 = vadd.f32 0.0, %v578
        %v580 = vpop.f32.mrb[0].mxu0
        %v581 = vpop.f32.mrb[0].mxu0
        %582 = vdwg.mxu0
        %v583 = vrot.slane %v536, 4
        %v584 = vadd.f32 %v536, %v583
        %v585 = vrot.slane %v584, 2
        %v586 = vadd.f32 %v584, %v585
        %v587 = vrot.slane %v586, 1
        %v588 = vadd.f32 %v586, %v587
        %v589 = vrot.slane %v538, 4
        %v590 = vadd.f32 %v538, %v589
        %v591 = vrot.slane %v590, 2
        %v592 = vadd.f32 %v590, %v591
        %v593 = vrot.slane %v592, 1
        %v594 = vadd.f32 %v592, %v593
        %v595 = vrot.slane %v577, 4
        %v596 = vadd.f32 %v577, %v595
        %v597 = vrot.slane %v596, 2
        %v598 = vadd.f32 %v596, %v597
        %v599 = vrot.slane %v598, 1
        %v600 = vadd.f32 %v598, %v599
        %v601 = vrot.slane %v579, 4
        %v602 = vadd.f32 %v579, %v601
        %v603 = vrot.slane %v602, 2
        %v604 = vadd.f32 %v602, %v603
        %v605 = vrot.slane %v604, 1
        %v606 = vadd.f32 %v604, %v605
        %v607 = vrcp.pop 8.0
        %v608 = vmul.f32 %v588, %v607
        %v609 = vmul.f32 %v594, %v607
        %v610 = vmul.f32 %v600, %v607
        %v611 = vmul.f32 %v606, %v607
        %v612 = vsub.f32 %v536, %v608
        %v613 = vsub.f32 %v538, %v609
        %v614 = vsub.f32 %v577, %v610
        %v615 = vsub.f32 %v579, %v611
        %v616 = vmul.f32 %v612, %v612
        %v617 = vmul.f32 %v613, %v613
        %v618 = vmul.f32 %v614, %v614
        %v619 = vmul.f32 %v615, %v615
        %v620 = vrot.slane %v616, 4
        %v621 = vadd.f32 %v616, %v620
        %v622 = vrot.slane %v621, 2
        %v623 = vadd.f32 %v621, %v622
        %v624 = vrot.slane %v623, 1
        %v625 = vadd.f32 %v623, %v624
        %v626 = vrot.slane %v617, 4
        %v627 = vadd.f32 %v617, %v626
        %v628 = vrot.slane %v627, 2
        %v629 = vadd.f32 %v627, %v628
        %v630 = vrot.slane %v629, 1
        %v631 = vadd.f32 %v629, %v630
        %v632 = vrot.slane %v618, 4
        %v633 = vadd.f32 %v618, %v632
        %v634 = vrot.slane %v633, 2
        %v635 = vadd.f32 %v633, %v634
        %v636 = vrot.slane %v635, 1
        %v637 = vadd.f32 %v635, %v636
        %v638 = vrot.slane %v619, 4
        %v639 = vadd.f32 %v619, %v638
        %v640 = vrot.slane %v639, 2
        %v641 = vadd.f32 %v639, %v640
        %v642 = vrot.slane %v641, 1
        %v643 = vadd.f32 %v641, %v642
        %v644 = vmul.f32 %v625, %v607
        %v645 = vmul.f32 %v631, %v607
        %v646 = vmul.f32 %v637, %v607
        %v647 = vmul.f32 %v643, %v607
        %v648 = vadd.f32 %v644, 1e-05
        %v649 = vadd.f32 %v645, 1e-05
        %v650 = vadd.f32 %v646, 1e-05
        %v651 = vadd.f32 %v647, 1e-05
        %v652 = vrsqrt.pop %v648
        %v653 = vrsqrt.pop %v649
        %v654 = vrsqrt.pop %v650
        %v655 = vrsqrt.pop %v651
        %v656 = vmul.f32 %v612, %v652
        %v657 = vmul.f32 %v613, %v653
        %v658 = vmul.f32 %v614, %v654
        %v659 = vmul.f32 %v615, %v655
        %v661 = vlaneseq
        %v662 = vshrl.u32 %v661, 7
        %v663 = vsub.s32 0, %v662
        %v664 = vrot.slane %v297, %v663
        %v665 = vlaneseq
        %v666 = vshrl.u32 %v665, 7
        %v667 = vsub.s32 1, %v666
        %v668 = vrot.slane %v297, %v667
        %v669 = vlaneseq
        %v670 = vshrl.u32 %v669, 7
        %v671 = vsub.s32 2, %v670
        %v672 = vrot.slane %v297, %v671
        %v673 = vlaneseq
        %v674 = vshrl.u32 %v673, 7
        %v675 = vsub.s32 3, %v674
        %v676 = vrot.slane %v297, %v675
        %v681 = vmul.f32 %v656, %v664
        %v682 = vmul.f32 %v657, %v668
        %v683 = vmul.f32 %v658, %v672
        %v684 = vmul.f32 %v659, %v676
        %v686 = vlaneseq
        %v687 = vshrl.u32 %v686, 7
        %v688 = vsub.s32 0, %v687
        %v689 = vrot.slane %v299, %v688
        %v690 = vlaneseq
        %v691 = vshrl.u32 %v690, 7
        %v692 = vsub.s32 1, %v691
        %v693 = vrot.slane %v299, %v692
        %v694 = vlaneseq
        %v695 = vshrl.u32 %v694, 7
        %v696 = vsub.s32 2, %v695
        %v697 = vrot.slane %v299, %v696
        %v698 = vlaneseq
        %v699 = vshrl.u32 %v698, 7
        %v700 = vsub.s32 3, %v699
        %v701 = vrot.slane %v299, %v700
        %v706 = vadd.f32 %v681, %v689
        %v707 = vadd.f32 %v682, %v693
        %v708 = vadd.f32 %v683, %v697
        %v709 = vadd.f32 %v684, %v701
        %v710 = vmax.f32 %v706, 0.0
        %v711 = vmax.f32 %v707, 0.0
        %v712 = vmax.f32 %v708, 0.0
        %v713 = vmax.f32 %v709, 0.0
        %v714 = vand.u32 2147483647, %v706
        %v715 = vand.u32 2147483647, %v707
        %v716 = vand.u32 2147483647, %v708
        %v717 = vand.u32 2147483647, %v709
        %v718 = vsub.f32 0.0, %v714
        %v719 = vsub.f32 0.0, %v715
        %v720 = vsub.f32 0.0, %v716
        %v721 = vsub.f32 0.0, %v717
        %v722 = vmul.f32 %v718, 1.442695
        %v723 = vpow.pop %v722
        %v724 = vmul.f32 %v719, 1.442695
        %v725 = vpow.pop %v724
        %v726 = vmul.f32 %v720, 1.442695
        %v727 = vpow.pop %v726
        %v728 = vmul.f32 %v721, 1.442695
        %v729 = vpow.pop %v728
        %v730 = vadd.f32 %v723, 1.0
        %v731 = vlog2.pop %v730
        %v732 = vmul.f32 %v731, 0.6931472
        %v733 = vmul.f32 -0.5, %v723
        %v734 = vadd.f32 %v733, 1.0
        %v735 = vmul.f32 %v734, %v723
        %v736 = vand.u32 2147483647, %v723
        %vm737 = vcmp.lt.f32.partialorder %v736, 0.0004427343
        %v738 = vsel %vm737, %v735, %v732
        %v739 = vadd.f32 %v725, 1.0
        %v740 = vlog2.pop %v739
        %v741 = vmul.f32 %v740, 0.6931472
        %v742 = vmul.f32 -0.5, %v725
        %v743 = vadd.f32 %v742, 1.0
        %v744 = vmul.f32 %v743, %v725
        %v745 = vand.u32 2147483647, %v725
        %vm746 = vcmp.lt.f32.partialorder %v745, 0.0004427343
        %v747 = vsel %vm746, %v744, %v741
        %v748 = vadd.f32 %v727, 1.0
        %v749 = vlog2.pop %v748
        %v750 = vmul.f32 %v749, 0.6931472
        %v751 = vmul.f32 -0.5, %v727
        %v752 = vadd.f32 %v751, 1.0
        %v753 = vmul.f32 %v752, %v727
        %v754 = vand.u32 2147483647, %v727
        %vm755 = vcmp.lt.f32.partialorder %v754, 0.0004427343
        %v756 = vsel %vm755, %v753, %v750
        %v757 = vadd.f32 %v729, 1.0
        %v758 = vlog2.pop %v757
        %v759 = vmul.f32 %v758, 0.6931472
        %v760 = vmul.f32 -0.5, %v729
        %v761 = vadd.f32 %v760, 1.0
        %v762 = vmul.f32 %v761, %v729
        %v763 = vand.u32 2147483647, %v729
        %vm764 = vcmp.lt.f32.partialorder %v763, 0.0004427343
        %v765 = vsel %vm764, %v762, %v759
        %v766 = vadd.f32 %v710, %v738
        %v767 = vadd.f32 %v711, %v747
        %v768 = vadd.f32 %v712, %v756
        %v769 = vadd.f32 %v713, %v765
        %v770 = vpack.c.bf16 %v766, %v766
        %v771 = vpack.c.bf16 %v767, %v767
        %v772 = vpack.c.bf16 %v768, %v768
        %v773 = vpack.c.bf16 %v769, %v769
        %v774 = vld [vmem:[#allocation7] sm:$0xff]
        %v775 = vld [vmem:[#allocation7 + $0x8] sm:$0xff]
        %v776 = vld [vmem:[#allocation7 + $0x10] sm:$0xff]
        %v777 = vld [vmem:[#allocation7 + $0x18] sm:$0xff]
        %v778 = vld [vmem:[#allocation7 + $0x20] sm:$0xff]
        %v779 = vld [vmem:[#allocation7 + $0x28] sm:$0xff]
        %v780 = vld [vmem:[#allocation7 + $0x30] sm:$0xff]
        %v781 = vld [vmem:[#allocation7 + $0x38] sm:$0xff]
        %v782 = vld [vmem:[#allocation7 + $0x40] sm:$0xff]
        %v783 = vld [vmem:[#allocation7 + $0x48] sm:$0xff]
        %v784 = vld [vmem:[#allocation7 + $0x50] sm:$0xff]
        %v785 = vld [vmem:[#allocation7 + $0x58] sm:$0xff]
        %v786 = vld [vmem:[#allocation7 + $0x60] sm:$0xff]
        %v787 = vld [vmem:[#allocation7 + $0x68] sm:$0xff]
        %v788 = vld [vmem:[#allocation7 + $0x70] sm:$0xff]
        %v789 = vld [vmem:[#allocation7 + $0x78] sm:$0xff]
        %v790 = vld [vmem:[#allocation7 + $0x80] sm:$0xff]
        %v791 = vld [vmem:[#allocation7 + $0x88] sm:$0xff]
        %v792 = vld [vmem:[#allocation7 + $0x90] sm:$0xff]
        %v793 = vld [vmem:[#allocation7 + $0x98] sm:$0xff]
        %v794 = vld [vmem:[#allocation7 + $0xa0] sm:$0xff]
        %v795 = vld [vmem:[#allocation7 + $0xa8] sm:$0xff]
        %v796 = vld [vmem:[#allocation7 + $0xb0] sm:$0xff]
        %v797 = vld [vmem:[#allocation7 + $0xb8] sm:$0xff]
        %v798 = vld [vmem:[#allocation7 + $0xc0] sm:$0xff]
        %v799 = vld [vmem:[#allocation7 + $0xc8] sm:$0xff]
        %v800 = vld [vmem:[#allocation7 + $0xd0] sm:$0xff]
        %v801 = vld [vmem:[#allocation7 + $0xd8] sm:$0xff]
        %v802 = vld [vmem:[#allocation7 + $0xe0] sm:$0xff]
        %v803 = vld [vmem:[#allocation7 + $0xe8] sm:$0xff]
        %v804 = vld [vmem:[#allocation7 + $0xf0] sm:$0xff]
        %v805 = vld [vmem:[#allocation7 + $0xf8] sm:$0xff]
        %v806 = vld [vmem:[#allocation7 + $0x100] sm:$0xff]
        %v807 = vld [vmem:[#allocation7 + $0x108] sm:$0xff]
        %v808 = vld [vmem:[#allocation7 + $0x110] sm:$0xff]
        %v809 = vld [vmem:[#allocation7 + $0x118] sm:$0xff]
        %v810 = vld [vmem:[#allocation7 + $0x120] sm:$0xff]
        %v811 = vld [vmem:[#allocation7 + $0x128] sm:$0xff]
        %v812 = vld [vmem:[#allocation7 + $0x130] sm:$0xff]
        %v813 = vld [vmem:[#allocation7 + $0x138] sm:$0xff]
        %v814 = vld [vmem:[#allocation7 + $0x140] sm:$0xff]
        %v815 = vld [vmem:[#allocation7 + $0x148] sm:$0xff]
        %v816 = vld [vmem:[#allocation7 + $0x150] sm:$0xff]
        %v817 = vld [vmem:[#allocation7 + $0x158] sm:$0xff]
        %v818 = vld [vmem:[#allocation7 + $0x160] sm:$0xff]
        %v819 = vld [vmem:[#allocation7 + $0x168] sm:$0xff]
        %v820 = vld [vmem:[#allocation7 + $0x170] sm:$0xff]
        %v821 = vld [vmem:[#allocation7 + $0x178] sm:$0xff]
        %v822 = vld [vmem:[#allocation7 + $0x180] sm:$0xff]
        %v823 = vld [vmem:[#allocation7 + $0x188] sm:$0xff]
        %v824 = vld [vmem:[#allocation7 + $0x190] sm:$0xff]
        %v825 = vld [vmem:[#allocation7 + $0x198] sm:$0xff]
        %v826 = vld [vmem:[#allocation7 + $0x1a0] sm:$0xff]
        %v827 = vld [vmem:[#allocation7 + $0x1a8] sm:$0xff]
        %v828 = vld [vmem:[#allocation7 + $0x1b0] sm:$0xff]
        %v829 = vld [vmem:[#allocation7 + $0x1b8] sm:$0xff]
        %v830 = vld [vmem:[#allocation7 + $0x1c0] sm:$0xff]
        %v831 = vld [vmem:[#allocation7 + $0x1c8] sm:$0xff]
        %v832 = vld [vmem:[#allocation7 + $0x1d0] sm:$0xff]
        %v833 = vld [vmem:[#allocation7 + $0x1d8] sm:$0xff]
        %v834 = vld [vmem:[#allocation7 + $0x1e0] sm:$0xff]
        %v835 = vld [vmem:[#allocation7 + $0x1e8] sm:$0xff]
        %v836 = vld [vmem:[#allocation7 + $0x1f0] sm:$0xff]
        %v837 = vld [vmem:[#allocation7 + $0x1f8] sm:$0xff]
        %v838 = vld [vmem:[#allocation7 + $0x200] sm:$0xff]
        %v839 = vld [vmem:[#allocation7 + $0x208] sm:$0xff]
        %v840 = vld [vmem:[#allocation7 + $0x210] sm:$0xff]
        %v841 = vld [vmem:[#allocation7 + $0x218] sm:$0xff]
        %v842 = vld [vmem:[#allocation7 + $0x220] sm:$0xff]
        %v843 = vld [vmem:[#allocation7 + $0x228] sm:$0xff]
        %v844 = vld [vmem:[#allocation7 + $0x230] sm:$0xff]
        %v845 = vld [vmem:[#allocation7 + $0x238] sm:$0xff]
        %v846 = vld [vmem:[#allocation7 + $0x240] sm:$0xff]
        %v847 = vld [vmem:[#allocation7 + $0x248] sm:$0xff]
        %v848 = vld [vmem:[#allocation7 + $0x250] sm:$0xff]
        %v849 = vld [vmem:[#allocation7 + $0x258] sm:$0xff]
        %v850 = vld [vmem:[#allocation7 + $0x260] sm:$0xff]
        %v851 = vld [vmem:[#allocation7 + $0x268] sm:$0xff]
        %v852 = vld [vmem:[#allocation7 + $0x270] sm:$0xff]
        %v853 = vld [vmem:[#allocation7 + $0x278] sm:$0xff]
        %v854 = vld [vmem:[#allocation7 + $0x280] sm:$0xff]
        %v855 = vld [vmem:[#allocation7 + $0x288] sm:$0xff]
        %v856 = vld [vmem:[#allocation7 + $0x290] sm:$0xff]
        %v857 = vld [vmem:[#allocation7 + $0x298] sm:$0xff]
        %v858 = vld [vmem:[#allocation7 + $0x2a0] sm:$0xff]
        %v859 = vld [vmem:[#allocation7 + $0x2a8] sm:$0xff]
        %v860 = vld [vmem:[#allocation7 + $0x2b0] sm:$0xff]
        %v861 = vld [vmem:[#allocation7 + $0x2b8] sm:$0xff]
        %v862 = vld [vmem:[#allocation7 + $0x2c0] sm:$0xff]
        %v863 = vld [vmem:[#allocation7 + $0x2c8] sm:$0xff]
        %v864 = vld [vmem:[#allocation7 + $0x2d0] sm:$0xff]
        %v865 = vld [vmem:[#allocation7 + $0x2d8] sm:$0xff]
        %v866 = vld [vmem:[#allocation7 + $0x2e0] sm:$0xff]
        %v867 = vld [vmem:[#allocation7 + $0x2e8] sm:$0xff]
        %v868 = vld [vmem:[#allocation7 + $0x2f0] sm:$0xff]
        %v869 = vld [vmem:[#allocation7 + $0x2f8] sm:$0xff]
        %v870 = vld [vmem:[#allocation7 + $0x300] sm:$0xff]
        %v871 = vld [vmem:[#allocation7 + $0x308] sm:$0xff]
        %v872 = vld [vmem:[#allocation7 + $0x310] sm:$0xff]
        %v873 = vld [vmem:[#allocation7 + $0x318] sm:$0xff]
        %v874 = vld [vmem:[#allocation7 + $0x320] sm:$0xff]
        %v875 = vld [vmem:[#allocation7 + $0x328] sm:$0xff]
        %v876 = vld [vmem:[#allocation7 + $0x330] sm:$0xff]
        %v877 = vld [vmem:[#allocation7 + $0x338] sm:$0xff]
        %v878 = vld [vmem:[#allocation7 + $0x340] sm:$0xff]
        %v879 = vld [vmem:[#allocation7 + $0x348] sm:$0xff]
        %v880 = vld [vmem:[#allocation7 + $0x350] sm:$0xff]
        %v881 = vld [vmem:[#allocation7 + $0x358] sm:$0xff]
        %v882 = vld [vmem:[#allocation7 + $0x360] sm:$0xff]
        %v883 = vld [vmem:[#allocation7 + $0x368] sm:$0xff]
        %v884 = vld [vmem:[#allocation7 + $0x370] sm:$0xff]
        %v885 = vld [vmem:[#allocation7 + $0x378] sm:$0xff]
        %v886 = vld [vmem:[#allocation7 + $0x380] sm:$0xff]
        %v887 = vld [vmem:[#allocation7 + $0x388] sm:$0xff]
        %v888 = vld [vmem:[#allocation7 + $0x390] sm:$0xff]
        %v889 = vld [vmem:[#allocation7 + $0x398] sm:$0xff]
        %v890 = vld [vmem:[#allocation7 + $0x3a0] sm:$0xff]
        %v891 = vld [vmem:[#allocation7 + $0x3a8] sm:$0xff]
        %v892 = vld [vmem:[#allocation7 + $0x3b0] sm:$0xff]
        %v893 = vld [vmem:[#allocation7 + $0x3b8] sm:$0xff]
        %v894 = vld [vmem:[#allocation7 + $0x3c0] sm:$0xff]
        %v895 = vld [vmem:[#allocation7 + $0x3c8] sm:$0xff]
        %v896 = vld [vmem:[#allocation7 + $0x3d0] sm:$0xff]
        %v897 = vld [vmem:[#allocation7 + $0x3d8] sm:$0xff]
        %v898 = vld [vmem:[#allocation7 + $0x3e0] sm:$0xff]
        %v899 = vld [vmem:[#allocation7 + $0x3e8] sm:$0xff]
        %v900 = vld [vmem:[#allocation7 + $0x3f0] sm:$0xff]
        %v901 = vld [vmem:[#allocation7 + $0x3f8] sm:$0xff]
        %v1030 = vunpack.c.l.b16 %v774
        %v1031 = vunpack.c.h.b16 %v774
        %v1032 = vunpack.c.l.b16 %v775
        %v1033 = vunpack.c.h.b16 %v775
        %v1034 = vunpack.c.l.b16 %v776
        %v1035 = vunpack.c.h.b16 %v776
        %v1036 = vunpack.c.l.b16 %v777
        %v1037 = vunpack.c.h.b16 %v777
        %v1038 = vunpack.c.l.b16 %v778
        %v1039 = vunpack.c.h.b16 %v778
        %v1040 = vunpack.c.l.b16 %v779
        %v1041 = vunpack.c.h.b16 %v779
        %v1042 = vunpack.c.l.b16 %v780
        %v1043 = vunpack.c.h.b16 %v780
        %v1044 = vunpack.c.l.b16 %v781
        %v1045 = vunpack.c.h.b16 %v781
        %v1046 = vunpack.c.l.b16 %v782
        %v1047 = vunpack.c.h.b16 %v782
        %v1048 = vunpack.c.l.b16 %v783
        %v1049 = vunpack.c.h.b16 %v783
        %v1050 = vunpack.c.l.b16 %v784
        %v1051 = vunpack.c.h.b16 %v784
        %v1052 = vunpack.c.l.b16 %v785
        %v1053 = vunpack.c.h.b16 %v785
        %v1054 = vunpack.c.l.b16 %v786
        %v1055 = vunpack.c.h.b16 %v786
        %v1056 = vunpack.c.l.b16 %v787
        %v1057 = vunpack.c.h.b16 %v787
        %v1058 = vunpack.c.l.b16 %v788
        %v1059 = vunpack.c.h.b16 %v788
        %v1060 = vunpack.c.l.b16 %v789
        %v1061 = vunpack.c.h.b16 %v789
        %v1062 = vunpack.c.l.b16 %v790
        %v1063 = vunpack.c.h.b16 %v790
        %v1064 = vunpack.c.l.b16 %v791
        %v1065 = vunpack.c.h.b16 %v791
        %v1066 = vunpack.c.l.b16 %v792
        %v1067 = vunpack.c.h.b16 %v792
        %v1068 = vunpack.c.l.b16 %v793
        %v1069 = vunpack.c.h.b16 %v793
        %v1070 = vunpack.c.l.b16 %v794
        %v1071 = vunpack.c.h.b16 %v794
        %v1072 = vunpack.c.l.b16 %v795
        %v1073 = vunpack.c.h.b16 %v795
        %v1074 = vunpack.c.l.b16 %v796
        %v1075 = vunpack.c.h.b16 %v796
        %v1076 = vunpack.c.l.b16 %v797
        %v1077 = vunpack.c.h.b16 %v797
        %v1078 = vunpack.c.l.b16 %v798
        %v1079 = vunpack.c.h.b16 %v798
        %v1080 = vunpack.c.l.b16 %v799
        %v1081 = vunpack.c.h.b16 %v799
        %v1082 = vunpack.c.l.b16 %v800
        %v1083 = vunpack.c.h.b16 %v800
        %v1084 = vunpack.c.l.b16 %v801
        %v1085 = vunpack.c.h.b16 %v801
        %v1086 = vunpack.c.l.b16 %v802
        %v1087 = vunpack.c.h.b16 %v802
        %v1088 = vunpack.c.l.b16 %v803
        %v1089 = vunpack.c.h.b16 %v803
        %v1090 = vunpack.c.l.b16 %v804
        %v1091 = vunpack.c.h.b16 %v804
        %v1092 = vunpack.c.l.b16 %v805
        %v1093 = vunpack.c.h.b16 %v805
        %v1094 = vunpack.c.l.b16 %v806
        %v1095 = vunpack.c.h.b16 %v806
        %v1096 = vunpack.c.l.b16 %v807
        %v1097 = vunpack.c.h.b16 %v807
        %v1098 = vunpack.c.l.b16 %v808
        %v1099 = vunpack.c.h.b16 %v808
        %v1100 = vunpack.c.l.b16 %v809
        %v1101 = vunpack.c.h.b16 %v809
        %v1102 = vunpack.c.l.b16 %v810
        %v1103 = vunpack.c.h.b16 %v810
        %v1104 = vunpack.c.l.b16 %v811
        %v1105 = vunpack.c.h.b16 %v811
        %v1106 = vunpack.c.l.b16 %v812
        %v1107 = vunpack.c.h.b16 %v812
        %v1108 = vunpack.c.l.b16 %v813
        %v1109 = vunpack.c.h.b16 %v813
        %v1110 = vunpack.c.l.b16 %v814
        %v1111 = vunpack.c.h.b16 %v814
        %v1112 = vunpack.c.l.b16 %v815
        %v1113 = vunpack.c.h.b16 %v815
        %v1114 = vunpack.c.l.b16 %v816
        %v1115 = vunpack.c.h.b16 %v816
        %v1116 = vunpack.c.l.b16 %v817
        %v1117 = vunpack.c.h.b16 %v817
        %v1118 = vunpack.c.l.b16 %v818
        %v1119 = vunpack.c.h.b16 %v818
        %v1120 = vunpack.c.l.b16 %v819
        %v1121 = vunpack.c.h.b16 %v819
        %v1122 = vunpack.c.l.b16 %v820
        %v1123 = vunpack.c.h.b16 %v820
        %v1124 = vunpack.c.l.b16 %v821
        %v1125 = vunpack.c.h.b16 %v821
        %v1126 = vunpack.c.l.b16 %v822
        %v1127 = vunpack.c.h.b16 %v822
        %v1128 = vunpack.c.l.b16 %v823
        %v1129 = vunpack.c.h.b16 %v823
        %v1130 = vunpack.c.l.b16 %v824
        %v1131 = vunpack.c.h.b16 %v824
        %v1132 = vunpack.c.l.b16 %v825
        %v1133 = vunpack.c.h.b16 %v825
        %v1134 = vunpack.c.l.b16 %v826
        %v1135 = vunpack.c.h.b16 %v826
        %v1136 = vunpack.c.l.b16 %v827
        %v1137 = vunpack.c.h.b16 %v827
        %v1138 = vunpack.c.l.b16 %v828
        %v1139 = vunpack.c.h.b16 %v828
        %v1140 = vunpack.c.l.b16 %v829
        %v1141 = vunpack.c.h.b16 %v829
        %v1142 = vunpack.c.l.b16 %v830
        %v1143 = vunpack.c.h.b16 %v830
        %v1144 = vunpack.c.l.b16 %v831
        %v1145 = vunpack.c.h.b16 %v831
        %v1146 = vunpack.c.l.b16 %v832
        %v1147 = vunpack.c.h.b16 %v832
        %v1148 = vunpack.c.l.b16 %v833
        %v1149 = vunpack.c.h.b16 %v833
        %v1150 = vunpack.c.l.b16 %v834
        %v1151 = vunpack.c.h.b16 %v834
        %v1152 = vunpack.c.l.b16 %v835
        %v1153 = vunpack.c.h.b16 %v835
        %v1154 = vunpack.c.l.b16 %v836
        %v1155 = vunpack.c.h.b16 %v836
        %v1156 = vunpack.c.l.b16 %v837
        %v1157 = vunpack.c.h.b16 %v837
        %v1158 = vunpack.c.l.b16 %v838
        %v1159 = vunpack.c.h.b16 %v838
        %v1160 = vunpack.c.l.b16 %v839
        %v1161 = vunpack.c.h.b16 %v839
        %v1162 = vunpack.c.l.b16 %v840
        %v1163 = vunpack.c.h.b16 %v840
        %v1164 = vunpack.c.l.b16 %v841
        %v1165 = vunpack.c.h.b16 %v841
        %v1166 = vunpack.c.l.b16 %v842
        %v1167 = vunpack.c.h.b16 %v842
        %v1168 = vunpack.c.l.b16 %v843
        %v1169 = vunpack.c.h.b16 %v843
        %v1170 = vunpack.c.l.b16 %v844
        %v1171 = vunpack.c.h.b16 %v844
        %v1172 = vunpack.c.l.b16 %v845
        %v1173 = vunpack.c.h.b16 %v845
        %v1174 = vunpack.c.l.b16 %v846
        %v1175 = vunpack.c.h.b16 %v846
        %v1176 = vunpack.c.l.b16 %v847
        %v1177 = vunpack.c.h.b16 %v847
        %v1178 = vunpack.c.l.b16 %v848
        %v1179 = vunpack.c.h.b16 %v848
        %v1180 = vunpack.c.l.b16 %v849
        %v1181 = vunpack.c.h.b16 %v849
        %v1182 = vunpack.c.l.b16 %v850
        %v1183 = vunpack.c.h.b16 %v850
        %v1184 = vunpack.c.l.b16 %v851
        %v1185 = vunpack.c.h.b16 %v851
        %v1186 = vunpack.c.l.b16 %v852
        %v1187 = vunpack.c.h.b16 %v852
        %v1188 = vunpack.c.l.b16 %v853
        %v1189 = vunpack.c.h.b16 %v853
        %v1190 = vunpack.c.l.b16 %v854
        %v1191 = vunpack.c.h.b16 %v854
        %v1192 = vunpack.c.l.b16 %v855
        %v1193 = vunpack.c.h.b16 %v855
        %v1194 = vunpack.c.l.b16 %v856
        %v1195 = vunpack.c.h.b16 %v856
        %v1196 = vunpack.c.l.b16 %v857
        %v1197 = vunpack.c.h.b16 %v857
        %v1198 = vunpack.c.l.b16 %v858
        %v1199 = vunpack.c.h.b16 %v858
        %v1200 = vunpack.c.l.b16 %v859
        %v1201 = vunpack.c.h.b16 %v859
        %v1202 = vunpack.c.l.b16 %v860
        %v1203 = vunpack.c.h.b16 %v860
        %v1204 = vunpack.c.l.b16 %v861
        %v1205 = vunpack.c.h.b16 %v861
        %v1206 = vunpack.c.l.b16 %v862
        %v1207 = vunpack.c.h.b16 %v862
        %v1208 = vunpack.c.l.b16 %v863
        %v1209 = vunpack.c.h.b16 %v863
        %v1210 = vunpack.c.l.b16 %v864
        %v1211 = vunpack.c.h.b16 %v864
        %v1212 = vunpack.c.l.b16 %v865
        %v1213 = vunpack.c.h.b16 %v865
        %v1214 = vunpack.c.l.b16 %v866
        %v1215 = vunpack.c.h.b16 %v866
        %v1216 = vunpack.c.l.b16 %v867
        %v1217 = vunpack.c.h.b16 %v867
        %v1218 = vunpack.c.l.b16 %v868
        %v1219 = vunpack.c.h.b16 %v868
        %v1220 = vunpack.c.l.b16 %v869
        %v1221 = vunpack.c.h.b16 %v869
        %v1222 = vunpack.c.l.b16 %v870
        %v1223 = vunpack.c.h.b16 %v870
        %v1224 = vunpack.c.l.b16 %v871
        %v1225 = vunpack.c.h.b16 %v871
        %v1226 = vunpack.c.l.b16 %v872
        %v1227 = vunpack.c.h.b16 %v872
        %v1228 = vunpack.c.l.b16 %v873
        %v1229 = vunpack.c.h.b16 %v873
        %v1230 = vunpack.c.l.b16 %v874
        %v1231 = vunpack.c.h.b16 %v874
        %v1232 = vunpack.c.l.b16 %v875
        %v1233 = vunpack.c.h.b16 %v875
        %v1234 = vunpack.c.l.b16 %v876
        %v1235 = vunpack.c.h.b16 %v876
        %v1236 = vunpack.c.l.b16 %v877
        %v1237 = vunpack.c.h.b16 %v877
        %v1238 = vunpack.c.l.b16 %v878
        %v1239 = vunpack.c.h.b16 %v878
        %v1240 = vunpack.c.l.b16 %v879
        %v1241 = vunpack.c.h.b16 %v879
        %v1242 = vunpack.c.l.b16 %v880
        %v1243 = vunpack.c.h.b16 %v880
        %v1244 = vunpack.c.l.b16 %v881
        %v1245 = vunpack.c.h.b16 %v881
        %v1246 = vunpack.c.l.b16 %v882
        %v1247 = vunpack.c.h.b16 %v882
        %v1248 = vunpack.c.l.b16 %v883
        %v1249 = vunpack.c.h.b16 %v883
        %v1250 = vunpack.c.l.b16 %v884
        %v1251 = vunpack.c.h.b16 %v884
        %v1252 = vunpack.c.l.b16 %v885
        %v1253 = vunpack.c.h.b16 %v885
        %v1254 = vunpack.c.l.b16 %v886
        %v1255 = vunpack.c.h.b16 %v886
        %v1256 = vunpack.c.l.b16 %v887
        %v1257 = vunpack.c.h.b16 %v887
        %v1258 = vunpack.c.l.b16 %v888
        %v1259 = vunpack.c.h.b16 %v888
        %v1260 = vunpack.c.l.b16 %v889
        %v1261 = vunpack.c.h.b16 %v889
        %v1262 = vunpack.c.l.b16 %v890
        %v1263 = vunpack.c.h.b16 %v890
        %v1264 = vunpack.c.l.b16 %v891
        %v1265 = vunpack.c.h.b16 %v891
        %v1266 = vunpack.c.l.b16 %v892
        %v1267 = vunpack.c.h.b16 %v892
        %v1268 = vunpack.c.l.b16 %v893
        %v1269 = vunpack.c.h.b16 %v893
        %v1270 = vunpack.c.l.b16 %v894
        %v1271 = vunpack.c.h.b16 %v894
        %v1272 = vunpack.c.l.b16 %v895
        %v1273 = vunpack.c.h.b16 %v895
        %v1274 = vunpack.c.l.b16 %v896
        %v1275 = vunpack.c.h.b16 %v896
        %v1276 = vunpack.c.l.b16 %v897
        %v1277 = vunpack.c.h.b16 %v897
        %v1278 = vunpack.c.l.b16 %v898
        %v1279 = vunpack.c.h.b16 %v898
        %v1280 = vunpack.c.l.b16 %v899
        %v1281 = vunpack.c.h.b16 %v899
        %v1282 = vunpack.c.l.b16 %v900
        %v1283 = vunpack.c.h.b16 %v900
        %v1284 = vunpack.c.l.b16 %v901
        %v1285 = vunpack.c.h.b16 %v901
        %v1286 = vpack.c.b16 %v1034, %v1030
        %v1287 = vpack.c.b16 %v1035, %v1031
        %v1288 = vpack.c.b16 %v1036, %v1032
        %v1289 = vpack.c.b16 %v1037, %v1033
        %v1290 = vpack.c.b16 %v1042, %v1038
        %v1291 = vpack.c.b16 %v1043, %v1039
        %v1292 = vpack.c.b16 %v1044, %v1040
        %v1293 = vpack.c.b16 %v1045, %v1041
        %v1294 = vpack.c.b16 %v1050, %v1046
        %v1295 = vpack.c.b16 %v1051, %v1047
        %v1296 = vpack.c.b16 %v1052, %v1048
        %v1297 = vpack.c.b16 %v1053, %v1049
        %v1298 = vpack.c.b16 %v1058, %v1054
        %v1299 = vpack.c.b16 %v1059, %v1055
        %v1300 = vpack.c.b16 %v1060, %v1056
        %v1301 = vpack.c.b16 %v1061, %v1057
        %v1302 = vpack.c.b16 %v1066, %v1062
        %v1303 = vpack.c.b16 %v1067, %v1063
        %v1304 = vpack.c.b16 %v1068, %v1064
        %v1305 = vpack.c.b16 %v1069, %v1065
        %v1306 = vpack.c.b16 %v1074, %v1070
        %v1307 = vpack.c.b16 %v1075, %v1071
        %v1308 = vpack.c.b16 %v1076, %v1072
        %v1309 = vpack.c.b16 %v1077, %v1073
        %v1310 = vpack.c.b16 %v1082, %v1078
        %v1311 = vpack.c.b16 %v1083, %v1079
        %v1312 = vpack.c.b16 %v1084, %v1080
        %v1313 = vpack.c.b16 %v1085, %v1081
        %v1314 = vpack.c.b16 %v1090, %v1086
        %v1315 = vpack.c.b16 %v1091, %v1087
        %v1316 = vpack.c.b16 %v1092, %v1088
        %v1317 = vpack.c.b16 %v1093, %v1089
        %v1318 = vpack.c.b16 %v1098, %v1094
        %v1319 = vpack.c.b16 %v1099, %v1095
        %v1320 = vpack.c.b16 %v1100, %v1096
        %v1321 = vpack.c.b16 %v1101, %v1097
        %v1322 = vpack.c.b16 %v1106, %v1102
        %v1323 = vpack.c.b16 %v1107, %v1103
        %v1324 = vpack.c.b16 %v1108, %v1104
        %v1325 = vpack.c.b16 %v1109, %v1105
        %v1326 = vpack.c.b16 %v1114, %v1110
        %v1327 = vpack.c.b16 %v1115, %v1111
        %v1328 = vpack.c.b16 %v1116, %v1112
        %v1329 = vpack.c.b16 %v1117, %v1113
        %v1330 = vpack.c.b16 %v1122, %v1118
        %v1331 = vpack.c.b16 %v1123, %v1119
        %v1332 = vpack.c.b16 %v1124, %v1120
        %v1333 = vpack.c.b16 %v1125, %v1121
        %v1334 = vpack.c.b16 %v1130, %v1126
        %v1335 = vpack.c.b16 %v1131, %v1127
        %v1336 = vpack.c.b16 %v1132, %v1128
        %v1337 = vpack.c.b16 %v1133, %v1129
        %v1338 = vpack.c.b16 %v1138, %v1134
        %v1339 = vpack.c.b16 %v1139, %v1135
        %v1340 = vpack.c.b16 %v1140, %v1136
        %v1341 = vpack.c.b16 %v1141, %v1137
        %v1342 = vpack.c.b16 %v1146, %v1142
        %v1343 = vpack.c.b16 %v1147, %v1143
        %v1344 = vpack.c.b16 %v1148, %v1144
        %v1345 = vpack.c.b16 %v1149, %v1145
        %v1346 = vpack.c.b16 %v1154, %v1150
        %v1347 = vpack.c.b16 %v1155, %v1151
        %v1348 = vpack.c.b16 %v1156, %v1152
        %v1349 = vpack.c.b16 %v1157, %v1153
        %v1350 = vpack.c.b16 %v1162, %v1158
        %v1351 = vpack.c.b16 %v1163, %v1159
        %v1352 = vpack.c.b16 %v1164, %v1160
        %v1353 = vpack.c.b16 %v1165, %v1161
        %v1354 = vpack.c.b16 %v1170, %v1166
        %v1355 = vpack.c.b16 %v1171, %v1167
        %v1356 = vpack.c.b16 %v1172, %v1168
        %v1357 = vpack.c.b16 %v1173, %v1169
        %v1358 = vpack.c.b16 %v1178, %v1174
        %v1359 = vpack.c.b16 %v1179, %v1175
        %v1360 = vpack.c.b16 %v1180, %v1176
        %v1361 = vpack.c.b16 %v1181, %v1177
        %v1362 = vpack.c.b16 %v1186, %v1182
        %v1363 = vpack.c.b16 %v1187, %v1183
        %v1364 = vpack.c.b16 %v1188, %v1184
        %v1365 = vpack.c.b16 %v1189, %v1185
        %v1366 = vpack.c.b16 %v1194, %v1190
        %v1367 = vpack.c.b16 %v1195, %v1191
        %v1368 = vpack.c.b16 %v1196, %v1192
        %v1369 = vpack.c.b16 %v1197, %v1193
        %v1370 = vpack.c.b16 %v1202, %v1198
        %v1371 = vpack.c.b16 %v1203, %v1199
        %v1372 = vpack.c.b16 %v1204, %v1200
        %v1373 = vpack.c.b16 %v1205, %v1201
        %v1374 = vpack.c.b16 %v1210, %v1206
        %v1375 = vpack.c.b16 %v1211, %v1207
        %v1376 = vpack.c.b16 %v1212, %v1208
        %v1377 = vpack.c.b16 %v1213, %v1209
        %v1378 = vpack.c.b16 %v1218, %v1214
        %v1379 = vpack.c.b16 %v1219, %v1215
        %v1380 = vpack.c.b16 %v1220, %v1216
        %v1381 = vpack.c.b16 %v1221, %v1217
        %v1382 = vpack.c.b16 %v1226, %v1222
        %v1383 = vpack.c.b16 %v1227, %v1223
        %v1384 = vpack.c.b16 %v1228, %v1224
        %v1385 = vpack.c.b16 %v1229, %v1225
        %v1386 = vpack.c.b16 %v1234, %v1230
        %v1387 = vpack.c.b16 %v1235, %v1231
        %v1388 = vpack.c.b16 %v1236, %v1232
        %v1389 = vpack.c.b16 %v1237, %v1233
        %v1390 = vpack.c.b16 %v1242, %v1238
        %v1391 = vpack.c.b16 %v1243, %v1239
        %v1392 = vpack.c.b16 %v1244, %v1240
        %v1393 = vpack.c.b16 %v1245, %v1241
        %v1394 = vpack.c.b16 %v1250, %v1246
        %v1395 = vpack.c.b16 %v1251, %v1247
        %v1396 = vpack.c.b16 %v1252, %v1248
        %v1397 = vpack.c.b16 %v1253, %v1249
        %v1398 = vpack.c.b16 %v1258, %v1254
        %v1399 = vpack.c.b16 %v1259, %v1255
        %v1400 = vpack.c.b16 %v1260, %v1256
        %v1401 = vpack.c.b16 %v1261, %v1257
        %v1402 = vpack.c.b16 %v1266, %v1262
        %v1403 = vpack.c.b16 %v1267, %v1263
        %v1404 = vpack.c.b16 %v1268, %v1264
        %v1405 = vpack.c.b16 %v1269, %v1265
        %v1406 = vpack.c.b16 %v1274, %v1270
        %v1407 = vpack.c.b16 %v1275, %v1271
        %v1408 = vpack.c.b16 %v1276, %v1272
        %v1409 = vpack.c.b16 %v1277, %v1273
        %v1410 = vpack.c.b16 %v1282, %v1278
        %v1411 = vpack.c.b16 %v1283, %v1279
        %v1412 = vpack.c.b16 %v1284, %v1280
        %v1413 = vpack.c.b16 %v1285, %v1281
        %1542 = vmatprep.subr.bf16.mxu0 %v1287
        %1543 = vmatpush1.bf16.msra.mxu0 %v1286
        %1544 = vmatprep.subr.bf16.mxu0 %v1291
        %1545 = vmatpush1.bf16.msra.mxu0 %v1290
        %1546 = vmatprep.subr.bf16.mxu0 %v1295
        %1547 = vmatpush1.bf16.msra.mxu0 %v1294
        %1548 = vmatprep.subr.bf16.mxu0 %v1299
        %1549 = vmatpush1.bf16.msra.mxu0 %v1298
        %1550 = vmatprep.subr.bf16.mxu0 %v1303
        %1551 = vmatpush1.bf16.msra.mxu0 %v1302
        %1552 = vmatprep.subr.bf16.mxu0 %v1307
        %1553 = vmatpush1.bf16.msra.mxu0 %v1306
        %1554 = vmatprep.subr.bf16.mxu0 %v1311
        %1555 = vmatpush1.bf16.msra.mxu0 %v1310
        %1556 = vmatprep.subr.bf16.mxu0 %v1315
        %1557 = vmatpush1.bf16.msra.mxu0 %v1314
        %1558 = vmatprep.subr.bf16.mxu0 %v1319
        %1559 = vmatpush1.bf16.msra.mxu0 %v1318
        %1560 = vmatprep.subr.bf16.mxu0 %v1323
        %1561 = vmatpush1.bf16.msra.mxu0 %v1322
        %1562 = vmatprep.subr.bf16.mxu0 %v1327
        %1563 = vmatpush1.bf16.msra.mxu0 %v1326
        %1564 = vmatprep.subr.bf16.mxu0 %v1331
        %1565 = vmatpush1.bf16.msra.mxu0 %v1330
        %1566 = vmatprep.subr.bf16.mxu0 %v1335
        %1567 = vmatpush1.bf16.msra.mxu0 %v1334
        %1568 = vmatprep.subr.bf16.mxu0 %v1339
        %1569 = vmatpush1.bf16.msra.mxu0 %v1338
        %1570 = vmatprep.subr.bf16.mxu0 %v1343
        %1571 = vmatpush1.bf16.msra.mxu0 %v1342
        %1572 = vmatprep.subr.bf16.mxu0 %v1347
        %1573 = vmatpush1.bf16.msra.mxu0 %v1346
        %1574 = vmatprep.mubr.bf16.mxu0 %v771
        %1575 = vmatmul.mubr.bf16.gmra.mrb[0].mxu0 %v770
        %v1576 = vpop.f32.mrb[0].mxu0
        %v1577 = vadd.f32 0.0, %v1576
        %v1578 = vpop.f32.mrb[0].mxu0
        %v1579 = vadd.f32 0.0, %v1578
        %v1580 = vpop.f32.mrb[0].mxu0
        %v1581 = vpop.f32.mrb[0].mxu0
        %1582 = vdwg.mxu0
        %1583 = vmatprep.subr.bf16.mxu0 %v1351
        %1584 = vmatpush1.bf16.msra.mxu0 %v1350
        %1585 = vmatprep.subr.bf16.mxu0 %v1355
        %1586 = vmatpush1.bf16.msra.mxu0 %v1354
        %1587 = vmatprep.subr.bf16.mxu0 %v1359
        %1588 = vmatpush1.bf16.msra.mxu0 %v1358
        %1589 = vmatprep.subr.bf16.mxu0 %v1363
        %1590 = vmatpush1.bf16.msra.mxu0 %v1362
        %1591 = vmatprep.subr.bf16.mxu0 %v1367
        %1592 = vmatpush1.bf16.msra.mxu0 %v1366
        %1593 = vmatprep.subr.bf16.mxu0 %v1371
        %1594 = vmatpush1.bf16.msra.mxu0 %v1370
        %1595 = vmatprep.subr.bf16.mxu0 %v1375
        %1596 = vmatpush1.bf16.msra.mxu0 %v1374
        %1597 = vmatprep.subr.bf16.mxu0 %v1379
        %1598 = vmatpush1.bf16.msra.mxu0 %v1378
        %1599 = vmatprep.subr.bf16.mxu0 %v1383
        %1600 = vmatpush1.bf16.msra.mxu0 %v1382
        %1601 = vmatprep.subr.bf16.mxu0 %v1387
        %1602 = vmatpush1.bf16.msra.mxu0 %v1386
        %1603 = vmatprep.subr.bf16.mxu0 %v1391
        %1604 = vmatpush1.bf16.msra.mxu0 %v1390
        %1605 = vmatprep.subr.bf16.mxu0 %v1395
        %1606 = vmatpush1.bf16.msra.mxu0 %v1394
        %1607 = vmatprep.subr.bf16.mxu0 %v1399
        %1608 = vmatpush1.bf16.msra.mxu0 %v1398
        %1609 = vmatprep.subr.bf16.mxu0 %v1403
        %1610 = vmatpush1.bf16.msra.mxu0 %v1402
        %1611 = vmatprep.subr.bf16.mxu0 %v1407
        %1612 = vmatpush1.bf16.msra.mxu0 %v1406
        %1613 = vmatprep.subr.bf16.mxu0 %v1411
        %1614 = vmatpush1.bf16.msra.mxu0 %v1410
        %1615 = vmatprep.mubr.bf16.mxu0 %v773
        %1616 = vmatmul.mubr.bf16.gmra.mrb[0].mxu0 %v772
        %v1617 = vpop.f32.mrb[0].mxu0
        %v1618 = vadd.f32 %v1577, %v1617
        %v1619 = vpop.f32.mrb[0].mxu0
        %v1620 = vadd.f32 %v1579, %v1619
        %v1621 = vpop.f32.mrb[0].mxu0
        %v1622 = vpop.f32.mrb[0].mxu0
        %1623 = vdwg.mxu0
        %1624 = vmatprep.subr.bf16.mxu0 %v1289
        %1625 = vmatpush1.bf16.msra.mxu0 %v1288
        %1626 = vmatprep.subr.bf16.mxu0 %v1293
        %1627 = vmatpush1.bf16.msra.mxu0 %v1292
        %1628 = vmatprep.subr.bf16.mxu0 %v1297
        %1629 = vmatpush1.bf16.msra.mxu0 %v1296
        %1630 = vmatprep.subr.bf16.mxu0 %v1301
        %1631 = vmatpush1.bf16.msra.mxu0 %v1300
        %1632 = vmatprep.subr.bf16.mxu0 %v1305
        %1633 = vmatpush1.bf16.msra.mxu0 %v1304
        %1634 = vmatprep.subr.bf16.mxu0 %v1309
        %1635 = vmatpush1.bf16.msra.mxu0 %v1308
        %1636 = vmatprep.subr.bf16.mxu0 %v1313
        %1637 = vmatpush1.bf16.msra.mxu0 %v1312
        %1638 = vmatprep.subr.bf16.mxu0 %v1317
        %1639 = vmatpush1.bf16.msra.mxu0 %v1316
        %1640 = vmatprep.subr.bf16.mxu0 %v1321
        %1641 = vmatpush1.bf16.msra.mxu0 %v1320
        %1642 = vmatprep.subr.bf16.mxu0 %v1325
        %1643 = vmatpush1.bf16.msra.mxu0 %v1324
        %1644 = vmatprep.subr.bf16.mxu0 %v1329
        %1645 = vmatpush1.bf16.msra.mxu0 %v1328
        %1646 = vmatprep.subr.bf16.mxu0 %v1333
        %1647 = vmatpush1.bf16.msra.mxu0 %v1332
        %1648 = vmatprep.subr.bf16.mxu0 %v1337
        %1649 = vmatpush1.bf16.msra.mxu0 %v1336
        %1650 = vmatprep.subr.bf16.mxu0 %v1341
        %1651 = vmatpush1.bf16.msra.mxu0 %v1340
        %1652 = vmatprep.subr.bf16.mxu0 %v1345
        %1653 = vmatpush1.bf16.msra.mxu0 %v1344
        %1654 = vmatprep.subr.bf16.mxu0 %v1349
        %1655 = vmatpush1.bf16.msra.mxu0 %v1348
        %1656 = vmatprep.mubr.bf16.mxu0 %v771
        %1657 = vmatmul.mubr.bf16.gmra.mrb[0].mxu0 %v770
        %v1658 = vpop.f32.mrb[0].mxu0
        %v1659 = vadd.f32 0.0, %v1658
        %v1660 = vpop.f32.mrb[0].mxu0
        %v1661 = vadd.f32 0.0, %v1660
        %v1662 = vpop.f32.mrb[0].mxu0
        %v1663 = vpop.f32.mrb[0].mxu0
        %1664 = vdwg.mxu0
        %1665 = vmatprep.subr.bf16.mxu0 %v1353
        %1666 = vmatpush1.bf16.msra.mxu0 %v1352
        %1667 = vmatprep.subr.bf16.mxu0 %v1357
        %1668 = vmatpush1.bf16.msra.mxu0 %v1356
        %1669 = vmatprep.subr.bf16.mxu0 %v1361
        %1670 = vmatpush1.bf16.msra.mxu0 %v1360
        %1671 = vmatprep.subr.bf16.mxu0 %v1365
        %1672 = vmatpush1.bf16.msra.mxu0 %v1364
        %1673 = vmatprep.subr.bf16.mxu0 %v1369
        %1674 = vmatpush1.bf16.msra.mxu0 %v1368
        %1675 = vmatprep.subr.bf16.mxu0 %v1373
        %1676 = vmatpush1.bf16.msra.mxu0 %v1372
        %1677 = vmatprep.subr.bf16.mxu0 %v1377
        %1678 = vmatpush1.bf16.msra.mxu0 %v1376
        %1679 = vmatprep.subr.bf16.mxu0 %v1381
        %1680 = vmatpush1.bf16.msra.mxu0 %v1380
        %1681 = vmatprep.subr.bf16.mxu0 %v1385
        %1682 = vmatpush1.bf16.msra.mxu0 %v1384
        %1683 = vmatprep.subr.bf16.mxu0 %v1389
        %1684 = vmatpush1.bf16.msra.mxu0 %v1388
        %1685 = vmatprep.subr.bf16.mxu0 %v1393
        %1686 = vmatpush1.bf16.msra.mxu0 %v1392
        %1687 = vmatprep.subr.bf16.mxu0 %v1397
        %1688 = vmatpush1.bf16.msra.mxu0 %v1396
        %1689 = vmatprep.subr.bf16.mxu0 %v1401
        %1690 = vmatpush1.bf16.msra.mxu0 %v1400
        %1691 = vmatprep.subr.bf16.mxu0 %v1405
        %1692 = vmatpush1.bf16.msra.mxu0 %v1404
        %1693 = vmatprep.subr.bf16.mxu0 %v1409
        %1694 = vmatpush1.bf16.msra.mxu0 %v1408
        %1695 = vmatprep.subr.bf16.mxu0 %v1413
        %1696 = vmatpush1.bf16.msra.mxu0 %v1412
        %1697 = vmatprep.mubr.bf16.mxu0 %v773
        %1698 = vmatmul.mubr.bf16.gmra.mrb[0].mxu0 %v772
        %v1699 = vpop.f32.mrb[0].mxu0
        %v1700 = vadd.f32 %v1659, %v1699
        %v1701 = vpop.f32.mrb[0].mxu0
        %v1702 = vadd.f32 %v1661, %v1701
        %v1703 = vpop.f32.mrb[0].mxu0
        %v1704 = vpop.f32.mrb[0].mxu0
        %1705 = vdwg.mxu0
        %v1706 = vrot.slane %v1618, 4
        %v1707 = vadd.f32 %v1618, %v1706
        %v1708 = vrot.slane %v1707, 2
        %v1709 = vadd.f32 %v1707, %v1708
        %v1710 = vrot.slane %v1709, 1
        %v1711 = vadd.f32 %v1709, %v1710
        %v1712 = vrot.slane %v1620, 4
        %v1713 = vadd.f32 %v1620, %v1712
        %v1714 = vrot.slane %v1713, 2
        %v1715 = vadd.f32 %v1713, %v1714
        %v1716 = vrot.slane %v1715, 1
        %v1717 = vadd.f32 %v1715, %v1716
        %v1718 = vrot.slane %v1700, 4
        %v1719 = vadd.f32 %v1700, %v1718
        %v1720 = vrot.slane %v1719, 2
        %v1721 = vadd.f32 %v1719, %v1720
        %v1722 = vrot.slane %v1721, 1
        %v1723 = vadd.f32 %v1721, %v1722
        %v1724 = vrot.slane %v1702, 4
        %v1725 = vadd.f32 %v1702, %v1724
        %v1726 = vrot.slane %v1725, 2
        %v1727 = vadd.f32 %v1725, %v1726
        %v1728 = vrot.slane %v1727, 1
        %v1729 = vadd.f32 %v1727, %v1728
        %v1730 = vmul.f32 %v1711, %v607
        %v1731 = vmul.f32 %v1717, %v607
        %v1732 = vmul.f32 %v1723, %v607
        %v1733 = vmul.f32 %v1729, %v607
        %v1734 = vsub.f32 %v1618, %v1730
        %v1735 = vsub.f32 %v1620, %v1731
        %v1736 = vsub.f32 %v1700, %v1732
        %v1737 = vsub.f32 %v1702, %v1733
        %v1738 = vmul.f32 %v1734, %v1734
        %v1739 = vmul.f32 %v1735, %v1735
        %v1740 = vmul.f32 %v1736, %v1736
        %v1741 = vmul.f32 %v1737, %v1737
        %v1742 = vrot.slane %v1738, 4
        %v1743 = vadd.f32 %v1738, %v1742
        %v1744 = vrot.slane %v1743, 2
        %v1745 = vadd.f32 %v1743, %v1744
        %v1746 = vrot.slane %v1745, 1
        %v1747 = vadd.f32 %v1745, %v1746
        %v1748 = vrot.slane %v1739, 4
        %v1749 = vadd.f32 %v1739, %v1748
        %v1750 = vrot.slane %v1749, 2
        %v1751 = vadd.f32 %v1749, %v1750
        %v1752 = vrot.slane %v1751, 1
        %v1753 = vadd.f32 %v1751, %v1752
        %v1754 = vrot.slane %v1740, 4
        %v1755 = vadd.f32 %v1740, %v1754
        %v1756 = vrot.slane %v1755, 2
        %v1757 = vadd.f32 %v1755, %v1756
        %v1758 = vrot.slane %v1757, 1
        %v1759 = vadd.f32 %v1757, %v1758
        %v1760 = vrot.slane %v1741, 4
        %v1761 = vadd.f32 %v1741, %v1760
        %v1762 = vrot.slane %v1761, 2
        %v1763 = vadd.f32 %v1761, %v1762
        %v1764 = vrot.slane %v1763, 1
        %v1765 = vadd.f32 %v1763, %v1764
        %v1766 = vmul.f32 %v1747, %v607
        %v1767 = vmul.f32 %v1753, %v607
        %v1768 = vmul.f32 %v1759, %v607
        %v1769 = vmul.f32 %v1765, %v607
        %v1770 = vadd.f32 %v1766, 1e-05
        %v1771 = vadd.f32 %v1767, 1e-05
        %v1772 = vadd.f32 %v1768, 1e-05
        %v1773 = vadd.f32 %v1769, 1e-05
        %v1774 = vrsqrt.pop %v1770
        %v1775 = vrsqrt.pop %v1771
        %v1776 = vrsqrt.pop %v1772
        %v1777 = vrsqrt.pop %v1773
        %v1778 = vmul.f32 %v1734, %v1774
        %v1779 = vmul.f32 %v1735, %v1775
        %v1780 = vmul.f32 %v1736, %v1776
        %v1781 = vmul.f32 %v1737, %v1777
        %v1783 = vlaneseq
        %v1784 = vshrl.u32 %v1783, 7
        %v1785 = vsub.s32 0, %v1784
        %v1786 = vrot.slane %v301, %v1785
        %v1787 = vlaneseq
        %v1788 = vshrl.u32 %v1787, 7
        %v1789 = vsub.s32 1, %v1788
        %v1790 = vrot.slane %v301, %v1789
        %v1791 = vlaneseq
        %v1792 = vshrl.u32 %v1791, 7
        %v1793 = vsub.s32 2, %v1792
        %v1794 = vrot.slane %v301, %v1793
        %v1795 = vlaneseq
        %v1796 = vshrl.u32 %v1795, 7
        %v1797 = vsub.s32 3, %v1796
        %v1798 = vrot.slane %v301, %v1797
        %v1803 = vmul.f32 %v1778, %v1786
        %v1804 = vmul.f32 %v1779, %v1790
        %v1805 = vmul.f32 %v1780, %v1794
        %v1806 = vmul.f32 %v1781, %v1798
        %v1808 = vlaneseq
        %v1809 = vshrl.u32 %v1808, 7
        %v1810 = vsub.s32 0, %v1809
        %v1811 = vrot.slane %v303, %v1810
        %v1812 = vlaneseq
        %v1813 = vshrl.u32 %v1812, 7
        %v1814 = vsub.s32 1, %v1813
        %v1815 = vrot.slane %v303, %v1814
        %v1816 = vlaneseq
        %v1817 = vshrl.u32 %v1816, 7
        %v1818 = vsub.s32 2, %v1817
        %v1819 = vrot.slane %v303, %v1818
        %v1820 = vlaneseq
        %v1821 = vshrl.u32 %v1820, 7
        %v1822 = vsub.s32 3, %v1821
        %v1823 = vrot.slane %v303, %v1822
        %v1828 = vadd.f32 %v1803, %v1811
        %v1829 = vadd.f32 %v1804, %v1815
        %v1830 = vadd.f32 %v1805, %v1819
        %v1831 = vadd.f32 %v1806, %v1823
        %v1832 = vmax.f32 %v1828, 0.0
        %v1833 = vmax.f32 %v1829, 0.0
        %v1834 = vmax.f32 %v1830, 0.0
        %v1835 = vmax.f32 %v1831, 0.0
        %v1836 = vand.u32 2147483647, %v1828
        %v1837 = vand.u32 2147483647, %v1829
        %v1838 = vand.u32 2147483647, %v1830
        %v1839 = vand.u32 2147483647, %v1831
        %v1840 = vsub.f32 0.0, %v1836
        %v1841 = vsub.f32 0.0, %v1837
        %v1842 = vsub.f32 0.0, %v1838
        %v1843 = vsub.f32 0.0, %v1839
        %v1844 = vmul.f32 %v1840, 1.442695
        %v1845 = vpow.pop %v1844
        %v1846 = vmul.f32 %v1841, 1.442695
        %v1847 = vpow.pop %v1846
        %v1848 = vmul.f32 %v1842, 1.442695
        %v1849 = vpow.pop %v1848
        %v1850 = vmul.f32 %v1843, 1.442695
        %v1851 = vpow.pop %v1850
        %v1852 = vadd.f32 %v1845, 1.0
        %v1853 = vlog2.pop %v1852
        %v1854 = vmul.f32 %v1853, 0.6931472
        %v1855 = vmul.f32 -0.5, %v1845
        %v1856 = vadd.f32 %v1855, 1.0
        %v1857 = vmul.f32 %v1856, %v1845
        %v1858 = vand.u32 2147483647, %v1845
        %vm1859 = vcmp.lt.f32.partialorder %v1858, 0.0004427343
        %v1860 = vsel %vm1859, %v1857, %v1854
        %v1861 = vadd.f32 %v1847, 1.0
        %v1862 = vlog2.pop %v1861
        %v1863 = vmul.f32 %v1862, 0.6931472
        %v1864 = vmul.f32 -0.5, %v1847
        %v1865 = vadd.f32 %v1864, 1.0
        %v1866 = vmul.f32 %v1865, %v1847
        %v1867 = vand.u32 2147483647, %v1847
        %vm1868 = vcmp.lt.f32.partialorder %v1867, 0.0004427343
        %v1869 = vsel %vm1868, %v1866, %v1863
        %v1870 = vadd.f32 %v1849, 1.0
        %v1871 = vlog2.pop %v1870
        %v1872 = vmul.f32 %v1871, 0.6931472
        %v1873 = vmul.f32 -0.5, %v1849
        %v1874 = vadd.f32 %v1873, 1.0
        %v1875 = vmul.f32 %v1874, %v1849
        %v1876 = vand.u32 2147483647, %v1849
        %vm1877 = vcmp.lt.f32.partialorder %v1876, 0.0004427343
        %v1878 = vsel %vm1877, %v1875, %v1872
        %v1879 = vadd.f32 %v1851, 1.0
        %v1880 = vlog2.pop %v1879
        %v1881 = vmul.f32 %v1880, 0.6931472
        %v1882 = vmul.f32 -0.5, %v1851
        %v1883 = vadd.f32 %v1882, 1.0
        %v1884 = vmul.f32 %v1883, %v1851
        %v1885 = vand.u32 2147483647, %v1851
        %vm1886 = vcmp.lt.f32.partialorder %v1885, 0.0004427343
        %v1887 = vsel %vm1886, %v1884, %v1881
        %v1888 = vadd.f32 %v1832, %v1860
        %v1889 = vadd.f32 %v1833, %v1869
        %v1890 = vadd.f32 %v1834, %v1878
        %v1891 = vadd.f32 %v1835, %v1887
        %v1892 = vpack.c.bf16 %v1888, %v1888
        %v1893 = vpack.c.bf16 %v1889, %v1889
        %v1894 = vpack.c.bf16 %v1890, %v1890
        %v1895 = vpack.c.bf16 %v1891, %v1891
        %v1896 = vld [vmem:[#allocation8] sm:$0xff]
        %v1897 = vld [vmem:[#allocation8 + $0x8] sm:$0xff]
        %v1898 = vld [vmem:[#allocation8 + $0x10] sm:$0xff]
        %v1899 = vld [vmem:[#allocation8 + $0x18] sm:$0xf]
        %v1900 = vld [vmem:[#allocation8 + $0x1c] sm:$0xff]
        %v1901 = vld [vmem:[#allocation8 + $0x24] sm:$0xff]
        %v1902 = vld [vmem:[#allocation8 + $0x2c] sm:$0xff]
        %v1903 = vld [vmem:[#allocation8 + $0x34] sm:$0xf]
        %v1904 = vld [vmem:[#allocation8 + $0x38] sm:$0xff]
        %v1905 = vld [vmem:[#allocation8 + $0x40] sm:$0xff]
        %v1906 = vld [vmem:[#allocation8 + $0x48] sm:$0xff]
        %v1907 = vld [vmem:[#allocation8 + $0x50] sm:$0xf]
        %v1908 = vld [vmem:[#allocation8 + $0x54] sm:$0xff]
        %v1909 = vld [vmem:[#allocation8 + $0x5c] sm:$0xff]
        %v1910 = vld [vmem:[#allocation8 + $0x64] sm:$0xff]
        %v1911 = vld [vmem:[#allocation8 + $0x6c] sm:$0xf]
        %v1912 = vld [vmem:[#allocation8 + $0x70] sm:$0xff]
        %v1913 = vld [vmem:[#allocation8 + $0x78] sm:$0xff]
        %v1914 = vld [vmem:[#allocation8 + $0x80] sm:$0xff]
        %v1915 = vld [vmem:[#allocation8 + $0x88] sm:$0xf]
        %v1916 = vld [vmem:[#allocation8 + $0x8c] sm:$0xff]
        %v1917 = vld [vmem:[#allocation8 + $0x94] sm:$0xff]
        %v1918 = vld [vmem:[#allocation8 + $0x9c] sm:$0xff]
        %v1919 = vld [vmem:[#allocation8 + $0xa4] sm:$0xf]
        %v1920 = vld [vmem:[#allocation8 + $0xa8] sm:$0xff]
        %v1921 = vld [vmem:[#allocation8 + $0xb0] sm:$0xff]
        %v1922 = vld [vmem:[#allocation8 + $0xb8] sm:$0xff]
        %v1923 = vld [vmem:[#allocation8 + $0xc0] sm:$0xf]
        %v1924 = vld [vmem:[#allocation8 + $0xc4] sm:$0xff]
        %v1925 = vld [vmem:[#allocation8 + $0xcc] sm:$0xff]
        %v1926 = vld [vmem:[#allocation8 + $0xd4] sm:$0xff]
        %v1927 = vld [vmem:[#allocation8 + $0xdc] sm:$0xf]
        %v1928 = vld [vmem:[#allocation8 + $0xe0] sm:$0xff]
        %v1929 = vld [vmem:[#allocation8 + $0xe8] sm:$0xff]
        %v1930 = vld [vmem:[#allocation8 + $0xf0] sm:$0xff]
        %v1931 = vld [vmem:[#allocation8 + $0xf8] sm:$0xf]
        %v1932 = vld [vmem:[#allocation8 + $0xfc] sm:$0xff]
        %v1933 = vld [vmem:[#allocation8 + $0x104] sm:$0xff]
        %v1934 = vld [vmem:[#allocation8 + $0x10c] sm:$0xff]
        %v1935 = vld [vmem:[#allocation8 + $0x114] sm:$0xf]
        %v1936 = vld [vmem:[#allocation8 + $0x118] sm:$0xff]
        %v1937 = vld [vmem:[#allocation8 + $0x120] sm:$0xff]
        %v1938 = vld [vmem:[#allocation8 + $0x128] sm:$0xff]
        %v1939 = vld [vmem:[#allocation8 + $0x130] sm:$0xf]
        %v1940 = vld [vmem:[#allocation8 + $0x134] sm:$0xff]
        %v1941 = vld [vmem:[#allocation8 + $0x13c] sm:$0xff]
        %v1942 = vld [vmem:[#allocation8 + $0x144] sm:$0xff]
        %v1943 = vld [vmem:[#allocation8 + $0x14c] sm:$0xf]
        %v1944 = vld [vmem:[#allocation8 + $0x150] sm:$0xff]
        %v1945 = vld [vmem:[#allocation8 + $0x158] sm:$0xff]
        %v1946 = vld [vmem:[#allocation8 + $0x160] sm:$0xff]
        %v1947 = vld [vmem:[#allocation8 + $0x168] sm:$0xf]
        %v1948 = vld [vmem:[#allocation8 + $0x16c] sm:$0xff]
        %v1949 = vld [vmem:[#allocation8 + $0x174] sm:$0xff]
        %v1950 = vld [vmem:[#allocation8 + $0x17c] sm:$0xff]
        %v1951 = vld [vmem:[#allocation8 + $0x184] sm:$0xf]
        %v1952 = vld [vmem:[#allocation8 + $0x188] sm:$0xff]
        %v1953 = vld [vmem:[#allocation8 + $0x190] sm:$0xff]
        %v1954 = vld [vmem:[#allocation8 + $0x198] sm:$0xff]
        %v1955 = vld [vmem:[#allocation8 + $0x1a0] sm:$0xf]
        %v1956 = vld [vmem:[#allocation8 + $0x1a4] sm:$0xff]
        %v1957 = vld [vmem:[#allocation8 + $0x1ac] sm:$0xff]
        %v1958 = vld [vmem:[#allocation8 + $0x1b4] sm:$0xff]
        %v1959 = vld [vmem:[#allocation8 + $0x1bc] sm:$0xf]
        %v1960 = vld [vmem:[#allocation8 + $0x1c0] sm:$0xff]
        %v1961 = vld [vmem:[#allocation8 + $0x1c8] sm:$0xff]
        %v1962 = vld [vmem:[#allocation8 + $0x1d0] sm:$0xff]
        %v1963 = vld [vmem:[#allocation8 + $0x1d8] sm:$0xf]
        %v1964 = vld [vmem:[#allocation8 + $0x1dc] sm:$0xff]
        %v1965 = vld [vmem:[#allocation8 + $0x1e4] sm:$0xff]
        %v1966 = vld [vmem:[#allocation8 + $0x1ec] sm:$0xff]
        %v1967 = vld [vmem:[#allocation8 + $0x1f4] sm:$0xf]
        %v1968 = vld [vmem:[#allocation8 + $0x1f8] sm:$0xff]
        %v1969 = vld [vmem:[#allocation8 + $0x200] sm:$0xff]
        %v1970 = vld [vmem:[#allocation8 + $0x208] sm:$0xff]
        %v1971 = vld [vmem:[#allocation8 + $0x210] sm:$0xf]
        %v1972 = vld [vmem:[#allocation8 + $0x214] sm:$0xff]
        %v1973 = vld [vmem:[#allocation8 + $0x21c] sm:$0xff]
        %v1974 = vld [vmem:[#allocation8 + $0x224] sm:$0xff]
        %v1975 = vld [vmem:[#allocation8 + $0x22c] sm:$0xf]
        %v1976 = vld [vmem:[#allocation8 + $0x230] sm:$0xff]
        %v1977 = vld [vmem:[#allocation8 + $0x238] sm:$0xff]
        %v1978 = vld [vmem:[#allocation8 + $0x240] sm:$0xff]
        %v1979 = vld [vmem:[#allocation8 + $0x248] sm:$0xf]
        %v1980 = vld [vmem:[#allocation8 + $0x24c] sm:$0xff]
        %v1981 = vld [vmem:[#allocation8 + $0x254] sm:$0xff]
        %v1982 = vld [vmem:[#allocation8 + $0x25c] sm:$0xff]
        %v1983 = vld [vmem:[#allocation8 + $0x264] sm:$0xf]
        %v1984 = vld [vmem:[#allocation8 + $0x268] sm:$0xff]
        %v1985 = vld [vmem:[#allocation8 + $0x270] sm:$0xff]
        %v1986 = vld [vmem:[#allocation8 + $0x278] sm:$0xff]
        %v1987 = vld [vmem:[#allocation8 + $0x280] sm:$0xf]
        %v1988 = vld [vmem:[#allocation8 + $0x284] sm:$0xff]
        %v1989 = vld [vmem:[#allocation8 + $0x28c] sm:$0xff]
        %v1990 = vld [vmem:[#allocation8 + $0x294] sm:$0xff]
        %v1991 = vld [vmem:[#allocation8 + $0x29c] sm:$0xf]
        %v1992 = vld [vmem:[#allocation8 + $0x2a0] sm:$0xff]
        %v1993 = vld [vmem:[#allocation8 + $0x2a8] sm:$0xff]
        %v1994 = vld [vmem:[#allocation8 + $0x2b0] sm:$0xff]
        %v1995 = vld [vmem:[#allocation8 + $0x2b8] sm:$0xf]
        %v1996 = vld [vmem:[#allocation8 + $0x2bc] sm:$0xff]
        %v1997 = vld [vmem:[#allocation8 + $0x2c4] sm:$0xff]
        %v1998 = vld [vmem:[#allocation8 + $0x2cc] sm:$0xff]
        %v1999 = vld [vmem:[#allocation8 + $0x2d4] sm:$0xf]
        %v2000 = vld [vmem:[#allocation8 + $0x2d8] sm:$0xff]
        %v2001 = vld [vmem:[#allocation8 + $0x2e0] sm:$0xff]
        %v2002 = vld [vmem:[#allocation8 + $0x2e8] sm:$0xff]
        %v2003 = vld [vmem:[#allocation8 + $0x2f0] sm:$0xf]
        %v2004 = vld [vmem:[#allocation8 + $0x2f4] sm:$0xff]
        %v2005 = vld [vmem:[#allocation8 + $0x2fc] sm:$0xff]
        %v2006 = vld [vmem:[#allocation8 + $0x304] sm:$0xff]
        %v2007 = vld [vmem:[#allocation8 + $0x30c] sm:$0xf]
        %v2008 = vld [vmem:[#allocation8 + $0x310] sm:$0xff]
        %v2009 = vld [vmem:[#allocation8 + $0x318] sm:$0xff]
        %v2010 = vld [vmem:[#allocation8 + $0x320] sm:$0xff]
        %v2011 = vld [vmem:[#allocation8 + $0x328] sm:$0xf]
        %v2012 = vld [vmem:[#allocation8 + $0x32c] sm:$0xff]
        %v2013 = vld [vmem:[#allocation8 + $0x334] sm:$0xff]
        %v2014 = vld [vmem:[#allocation8 + $0x33c] sm:$0xff]
        %v2015 = vld [vmem:[#allocation8 + $0x344] sm:$0xf]
        %v2016 = vld [vmem:[#allocation8 + $0x348] sm:$0xff]
        %v2017 = vld [vmem:[#allocation8 + $0x350] sm:$0xff]
        %v2018 = vld [vmem:[#allocation8 + $0x358] sm:$0xff]
        %v2019 = vld [vmem:[#allocation8 + $0x360] sm:$0xf]
        %v2020 = vld [vmem:[#allocation8 + $0x364] sm:$0xff]
        %v2021 = vld [vmem:[#allocation8 + $0x36c] sm:$0xff]
        %v2022 = vld [vmem:[#allocation8 + $0x374] sm:$0xff]
        %v2023 = vld [vmem:[#allocation8 + $0x37c] sm:$0xf]
        %v2024 = vld [vmem:[#allocation8 + $0x380] sm:$0xff]
        %v2025 = vld [vmem:[#allocation8 + $0x388] sm:$0xff]
        %v2026 = vld [vmem:[#allocation8 + $0x390] sm:$0xff]
        %v2027 = vld [vmem:[#allocation8 + $0x398] sm:$0xf]
        %v2028 = vld [vmem:[#allocation8 + $0x39c] sm:$0xff]
        %v2029 = vld [vmem:[#allocation8 + $0x3a4] sm:$0xff]
        %v2030 = vld [vmem:[#allocation8 + $0x3ac] sm:$0xff]
        %v2031 = vld [vmem:[#allocation8 + $0x3b4] sm:$0xf]
        %v2032 = vld [vmem:[#allocation8 + $0x3b8] sm:$0xff]
        %v2033 = vld [vmem:[#allocation8 + $0x3c0] sm:$0xff]
        %v2034 = vld [vmem:[#allocation8 + $0x3c8] sm:$0xff]
        %v2035 = vld [vmem:[#allocation8 + $0x3d0] sm:$0xf]
        %v2036 = vld [vmem:[#allocation8 + $0x3d4] sm:$0xff]
        %v2037 = vld [vmem:[#allocation8 + $0x3dc] sm:$0xff]
        %v2038 = vld [vmem:[#allocation8 + $0x3e4] sm:$0xff]
        %v2039 = vld [vmem:[#allocation8 + $0x3ec] sm:$0xf]
        %v2040 = vld [vmem:[#allocation8 + $0x3f0] sm:$0xff]
        %v2041 = vld [vmem:[#allocation8 + $0x3f8] sm:$0xff]
        %v2042 = vld [vmem:[#allocation8 + $0x400] sm:$0xff]
        %v2043 = vld [vmem:[#allocation8 + $0x408] sm:$0xf]
        %v2044 = vld [vmem:[#allocation8 + $0x40c] sm:$0xff]
        %v2045 = vld [vmem:[#allocation8 + $0x414] sm:$0xff]
        %v2046 = vld [vmem:[#allocation8 + $0x41c] sm:$0xff]
        %v2047 = vld [vmem:[#allocation8 + $0x424] sm:$0xf]
        %v2048 = vld [vmem:[#allocation8 + $0x428] sm:$0xff]
        %v2049 = vld [vmem:[#allocation8 + $0x430] sm:$0xff]
        %v2050 = vld [vmem:[#allocation8 + $0x438] sm:$0xff]
        %v2051 = vld [vmem:[#allocation8 + $0x440] sm:$0xf]
        %v2052 = vld [vmem:[#allocation8 + $0x444] sm:$0xff]
        %v2053 = vld [vmem:[#allocation8 + $0x44c] sm:$0xff]
        %v2054 = vld [vmem:[#allocation8 + $0x454] sm:$0xff]
        %v2055 = vld [vmem:[#allocation8 + $0x45c] sm:$0xf]
        %v2056 = vld [vmem:[#allocation8 + $0x460] sm:$0xff]
        %v2057 = vld [vmem:[#allocation8 + $0x468] sm:$0xff]
        %v2058 = vld [vmem:[#allocation8 + $0x470] sm:$0xff]
        %v2059 = vld [vmem:[#allocation8 + $0x478] sm:$0xf]
        %v2060 = vld [vmem:[#allocation8 + $0x47c] sm:$0xff]
        %v2061 = vld [vmem:[#allocation8 + $0x484] sm:$0xff]
        %v2062 = vld [vmem:[#allocation8 + $0x48c] sm:$0xff]
        %v2063 = vld [vmem:[#allocation8 + $0x494] sm:$0xf]
        %v2064 = vld [vmem:[#allocation8 + $0x498] sm:$0xff]
        %v2065 = vld [vmem:[#allocation8 + $0x4a0] sm:$0xff]
        %v2066 = vld [vmem:[#allocation8 + $0x4a8] sm:$0xff]
        %v2067 = vld [vmem:[#allocation8 + $0x4b0] sm:$0xf]
        %v2068 = vld [vmem:[#allocation8 + $0x4b4] sm:$0xff]
        %v2069 = vld [vmem:[#allocation8 + $0x4bc] sm:$0xff]
        %v2070 = vld [vmem:[#allocation8 + $0x4c4] sm:$0xff]
        %v2071 = vld [vmem:[#allocation8 + $0x4cc] sm:$0xf]
        %v2072 = vld [vmem:[#allocation8 + $0x4d0] sm:$0xff]
        %v2073 = vld [vmem:[#allocation8 + $0x4d8] sm:$0xff]
        %v2074 = vld [vmem:[#allocation8 + $0x4e0] sm:$0xff]
        %v2075 = vld [vmem:[#allocation8 + $0x4e8] sm:$0xf]
        %v2076 = vld [vmem:[#allocation8 + $0x4ec] sm:$0xff]
        %v2077 = vld [vmem:[#allocation8 + $0x4f4] sm:$0xff]
        %v2078 = vld [vmem:[#allocation8 + $0x4fc] sm:$0xff]
        %v2079 = vld [vmem:[#allocation8 + $0x504] sm:$0xf]
        %v2080 = vld [vmem:[#allocation8 + $0x508] sm:$0xff]
        %v2081 = vld [vmem:[#allocation8 + $0x510] sm:$0xff]
        %v2082 = vld [vmem:[#allocation8 + $0x518] sm:$0xff]
        %v2083 = vld [vmem:[#allocation8 + $0x520] sm:$0xf]
        %v2084 = vld [vmem:[#allocation8 + $0x524] sm:$0xff]
        %v2085 = vld [vmem:[#allocation8 + $0x52c] sm:$0xff]
        %v2086 = vld [vmem:[#allocation8 + $0x534] sm:$0xff]
        %v2087 = vld [vmem:[#allocation8 + $0x53c] sm:$0xf]
        %v2088 = vld [vmem:[#allocation8 + $0x540] sm:$0xff]
        %v2089 = vld [vmem:[#allocation8 + $0x548] sm:$0xff]
        %v2090 = vld [vmem:[#allocation8 + $0x550] sm:$0xff]
        %v2091 = vld [vmem:[#allocation8 + $0x558] sm:$0xf]
        %v2092 = vld [vmem:[#allocation8 + $0x55c] sm:$0xff]
        %v2093 = vld [vmem:[#allocation8 + $0x564] sm:$0xff]
        %v2094 = vld [vmem:[#allocation8 + $0x56c] sm:$0xff]
        %v2095 = vld [vmem:[#allocation8 + $0x574] sm:$0xf]
        %v2096 = vld [vmem:[#allocation8 + $0x578] sm:$0xff]
        %v2097 = vld [vmem:[#allocation8 + $0x580] sm:$0xff]
        %v2098 = vld [vmem:[#allocation8 + $0x588] sm:$0xff]
        %v2099 = vld [vmem:[#allocation8 + $0x590] sm:$0xf]
        %v2100 = vld [vmem:[#allocation8 + $0x594] sm:$0xff]
        %v2101 = vld [vmem:[#allocation8 + $0x59c] sm:$0xff]
        %v2102 = vld [vmem:[#allocation8 + $0x5a4] sm:$0xff]
        %v2103 = vld [vmem:[#allocation8 + $0x5ac] sm:$0xf]
        %v2104 = vld [vmem:[#allocation8 + $0x5b0] sm:$0xff]
        %v2105 = vld [vmem:[#allocation8 + $0x5b8] sm:$0xff]
        %v2106 = vld [vmem:[#allocation8 + $0x5c0] sm:$0xff]
        %v2107 = vld [vmem:[#allocation8 + $0x5c8] sm:$0xf]
        %v2108 = vld [vmem:[#allocation8 + $0x5cc] sm:$0xff]
        %v2109 = vld [vmem:[#allocation8 + $0x5d4] sm:$0xff]
        %v2110 = vld [vmem:[#allocation8 + $0x5dc] sm:$0xff]
        %v2111 = vld [vmem:[#allocation8 + $0x5e4] sm:$0xf]
        %v2112 = vld [vmem:[#allocation8 + $0x5e8] sm:$0xff]
        %v2113 = vld [vmem:[#allocation8 + $0x5f0] sm:$0xff]
        %v2114 = vld [vmem:[#allocation8 + $0x5f8] sm:$0xff]
        %v2115 = vld [vmem:[#allocation8 + $0x600] sm:$0xf]
        %v2116 = vld [vmem:[#allocation8 + $0x604] sm:$0xff]
        %v2117 = vld [vmem:[#allocation8 + $0x60c] sm:$0xff]
        %v2118 = vld [vmem:[#allocation8 + $0x614] sm:$0xff]
        %v2119 = vld [vmem:[#allocation8 + $0x61c] sm:$0xf]
        %v2120 = vld [vmem:[#allocation8 + $0x620] sm:$0xff]
        %v2121 = vld [vmem:[#allocation8 + $0x628] sm:$0xff]
        %v2122 = vld [vmem:[#allocation8 + $0x630] sm:$0xff]
        %v2123 = vld [vmem:[#allocation8 + $0x638] sm:$0xf]
        %v2124 = vld [vmem:[#allocation8 + $0x63c] sm:$0xff]
        %v2125 = vld [vmem:[#allocation8 + $0x644] sm:$0xff]
        %v2126 = vld [vmem:[#allocation8 + $0x64c] sm:$0xff]
        %v2127 = vld [vmem:[#allocation8 + $0x654] sm:$0xf]
        %v2128 = vld [vmem:[#allocation8 + $0x658] sm:$0xff]
        %v2129 = vld [vmem:[#allocation8 + $0x660] sm:$0xff]
        %v2130 = vld [vmem:[#allocation8 + $0x668] sm:$0xff]
        %v2131 = vld [vmem:[#allocation8 + $0x670] sm:$0xf]
        %v2132 = vld [vmem:[#allocation8 + $0x674] sm:$0xff]
        %v2133 = vld [vmem:[#allocation8 + $0x67c] sm:$0xff]
        %v2134 = vld [vmem:[#allocation8 + $0x684] sm:$0xff]
        %v2135 = vld [vmem:[#allocation8 + $0x68c] sm:$0xf]
        %v2136 = vld [vmem:[#allocation8 + $0x690] sm:$0xff]
        %v2137 = vld [vmem:[#allocation8 + $0x698] sm:$0xff]
        %v2138 = vld [vmem:[#allocation8 + $0x6a0] sm:$0xff]
        %v2139 = vld [vmem:[#allocation8 + $0x6a8] sm:$0xf]
        %v2140 = vld [vmem:[#allocation8 + $0x6ac] sm:$0xff]
        %v2141 = vld [vmem:[#allocation8 + $0x6b4] sm:$0xff]
        %v2142 = vld [vmem:[#allocation8 + $0x6bc] sm:$0xff]
        %v2143 = vld [vmem:[#allocation8 + $0x6c4] sm:$0xf]
        %v2144 = vld [vmem:[#allocation8 + $0x6c8] sm:$0xff]
        %v2145 = vld [vmem:[#allocation8 + $0x6d0] sm:$0xff]
        %v2146 = vld [vmem:[#allocation8 + $0x6d8] sm:$0xff]
        %v2147 = vld [vmem:[#allocation8 + $0x6e0] sm:$0xf]
        %v2148 = vld [vmem:[#allocation8 + $0x6e4] sm:$0xff]
        %v2149 = vld [vmem:[#allocation8 + $0x6ec] sm:$0xff]
        %v2150 = vld [vmem:[#allocation8 + $0x6f4] sm:$0xff]
        %v2151 = vld [vmem:[#allocation8 + $0x6fc] sm:$0xf]
        %v2153 = vlaneseq
        %v2154 = vshrl.u32 %v2153, 7
        %v2155 = vsub.s32 0, %v2154
        %v2156 = vrot.slane %v307, %v2155
        %v2157 = vlaneseq
        %v2158 = vshrl.u32 %v2157, 7
        %v2159 = vsub.s32 1, %v2158
        %v2160 = vrot.slane %v307, %v2159
        %v2161 = vlaneseq
        %v2162 = vshrl.u32 %v2161, 7
        %v2163 = vsub.s32 2, %v2162
        %v2164 = vrot.slane %v307, %v2163
        %v2165 = vlaneseq
        %v2166 = vshrl.u32 %v2165, 7
        %v2167 = vsub.s32 3, %v2166
        %v2168 = vrot.slane %v307, %v2167
        %v2169 = vlaneseq
        %v2170 = vshrl.u32 %v2169, 7
        %v2171 = vsub.s32 4, %v2170
        %v2172 = vrot.slane %v307, %v2171
        %v2173 = vlaneseq
        %v2174 = vshrl.u32 %v2173, 7
        %v2175 = vsub.s32 5, %v2174
        %v2176 = vrot.slane %v307, %v2175
        %v2177 = vlaneseq
        %v2178 = vshrl.u32 %v2177, 7
        %v2179 = vsub.s32 6, %v2178
        %v2180 = vrot.slane %v307, %v2179
        %v2444 = vunpack.c.l.b16 %v1896
        %v2445 = vunpack.c.h.b16 %v1896
        %v2446 = vunpack.c.l.b16 %v1897
        %v2447 = vunpack.c.h.b16 %v1897
        %v2448 = vunpack.c.l.b16 %v1898
        %v2449 = vunpack.c.h.b16 %v1898
        %v2450 = vunpack.c.l.b16 %v1899
        %v2451 = vunpack.c.l.b16 %v1900
        %v2452 = vunpack.c.h.b16 %v1900
        %v2453 = vunpack.c.l.b16 %v1901
        %v2454 = vunpack.c.h.b16 %v1901
        %v2455 = vunpack.c.l.b16 %v1902
        %v2456 = vunpack.c.h.b16 %v1902
        %v2457 = vunpack.c.l.b16 %v1903
        %v2458 = vunpack.c.l.b16 %v1904
        %v2459 = vunpack.c.h.b16 %v1904
        %v2460 = vunpack.c.l.b16 %v1905
        %v2461 = vunpack.c.h.b16 %v1905
        %v2462 = vunpack.c.l.b16 %v1906
        %v2463 = vunpack.c.h.b16 %v1906
        %v2464 = vunpack.c.l.b16 %v1907
        %v2465 = vunpack.c.l.b16 %v1908
        %v2466 = vunpack.c.h.b16 %v1908
        %v2467 = vunpack.c.l.b16 %v1909
        %v2468 = vunpack.c.h.b16 %v1909
        %v2469 = vunpack.c.l.b16 %v1910
        %v2470 = vunpack.c.h.b16 %v1910
        %v2471 = vunpack.c.l.b16 %v1911
        %v2472 = vunpack.c.l.b16 %v1912
        %v2473 = vunpack.c.h.b16 %v1912
        %v2474 = vunpack.c.l.b16 %v1913
        %v2475 = vunpack.c.h.b16 %v1913
        %v2476 = vunpack.c.l.b16 %v1914
        %v2477 = vunpack.c.h.b16 %v1914
        %v2478 = vunpack.c.l.b16 %v1915
        %v2479 = vunpack.c.l.b16 %v1916
        %v2480 = vunpack.c.h.b16 %v1916
        %v2481 = vunpack.c.l.b16 %v1917
        %v2482 = vunpack.c.h.b16 %v1917
        %v2483 = vunpack.c.l.b16 %v1918
        %v2484 = vunpack.c.h.b16 %v1918
        %v2485 = vunpack.c.l.b16 %v1919
        %v2486 = vunpack.c.l.b16 %v1920
        %v2487 = vunpack.c.h.b16 %v1920
        %v2488 = vunpack.c.l.b16 %v1921
        %v2489 = vunpack.c.h.b16 %v1921
        %v2490 = vunpack.c.l.b16 %v1922
        %v2491 = vunpack.c.h.b16 %v1922
        %v2492 = vunpack.c.l.b16 %v1923
        %v2493 = vunpack.c.l.b16 %v1924
        %v2494 = vunpack.c.h.b16 %v1924
        %v2495 = vunpack.c.l.b16 %v1925
        %v2496 = vunpack.c.h.b16 %v1925
        %v2497 = vunpack.c.l.b16 %v1926
        %v2498 = vunpack.c.h.b16 %v1926
        %v2499 = vunpack.c.l.b16 %v1927
        %v2500 = vunpack.c.l.b16 %v1928
        %v2501 = vunpack.c.h.b16 %v1928
        %v2502 = vunpack.c.l.b16 %v1929
        %v2503 = vunpack.c.h.b16 %v1929
        %v2504 = vunpack.c.l.b16 %v1930
        %v2505 = vunpack.c.h.b16 %v1930
        %v2506 = vunpack.c.l.b16 %v1931
        %v2507 = vunpack.c.l.b16 %v1932
        %v2508 = vunpack.c.h.b16 %v1932
        %v2509 = vunpack.c.l.b16 %v1933
        %v2510 = vunpack.c.h.b16 %v1933
        %v2511 = vunpack.c.l.b16 %v1934
        %v2512 = vunpack.c.h.b16 %v1934
        %v2513 = vunpack.c.l.b16 %v1935
        %v2514 = vunpack.c.l.b16 %v1936
        %v2515 = vunpack.c.h.b16 %v1936
        %v2516 = vunpack.c.l.b16 %v1937
        %v2517 = vunpack.c.h.b16 %v1937
        %v2518 = vunpack.c.l.b16 %v1938
        %v2519 = vunpack.c.h.b16 %v1938
        %v2520 = vunpack.c.l.b16 %v1939
        %v2521 = vunpack.c.l.b16 %v1940
        %v2522 = vunpack.c.h.b16 %v1940
        %v2523 = vunpack.c.l.b16 %v1941
        %v2524 = vunpack.c.h.b16 %v1941
        %v2525 = vunpack.c.l.b16 %v1942
        %v2526 = vunpack.c.h.b16 %v1942
        %v2527 = vunpack.c.l.b16 %v1943
        %v2528 = vunpack.c.l.b16 %v1944
        %v2529 = vunpack.c.h.b16 %v1944
        %v2530 = vunpack.c.l.b16 %v1945
        %v2531 = vunpack.c.h.b16 %v1945
        %v2532 = vunpack.c.l.b16 %v1946
        %v2533 = vunpack.c.h.b16 %v1946
        %v2534 = vunpack.c.l.b16 %v1947
        %v2535 = vunpack.c.l.b16 %v1948
        %v2536 = vunpack.c.h.b16 %v1948
        %v2537 = vunpack.c.l.b16 %v1949
        %v2538 = vunpack.c.h.b16 %v1949
        %v2539 = vunpack.c.l.b16 %v1950
        %v2540 = vunpack.c.h.b16 %v1950
        %v2541 = vunpack.c.l.b16 %v1951
        %v2542 = vunpack.c.l.b16 %v1952
        %v2543 = vunpack.c.h.b16 %v1952
        %v2544 = vunpack.c.l.b16 %v1953
        %v2545 = vunpack.c.h.b16 %v1953
        %v2546 = vunpack.c.l.b16 %v1954
        %v2547 = vunpack.c.h.b16 %v1954
        %v2548 = vunpack.c.l.b16 %v1955
        %v2549 = vunpack.c.l.b16 %v1956
        %v2550 = vunpack.c.h.b16 %v1956
        %v2551 = vunpack.c.l.b16 %v1957
        %v2552 = vunpack.c.h.b16 %v1957
        %v2553 = vunpack.c.l.b16 %v1958
        %v2554 = vunpack.c.h.b16 %v1958
        %v2555 = vunpack.c.l.b16 %v1959
        %v2556 = vunpack.c.l.b16 %v1960
        %v2557 = vunpack.c.h.b16 %v1960
        %v2558 = vunpack.c.l.b16 %v1961
        %v2559 = vunpack.c.h.b16 %v1961
        %v2560 = vunpack.c.l.b16 %v1962
        %v2561 = vunpack.c.h.b16 %v1962
        %v2562 = vunpack.c.l.b16 %v1963
        %v2563 = vunpack.c.l.b16 %v1964
        %v2564 = vunpack.c.h.b16 %v1964
        %v2565 = vunpack.c.l.b16 %v1965
        %v2566 = vunpack.c.h.b16 %v1965
        %v2567 = vunpack.c.l.b16 %v1966
        %v2568 = vunpack.c.h.b16 %v1966
        %v2569 = vunpack.c.l.b16 %v1967
        %v2570 = vunpack.c.l.b16 %v1968
        %v2571 = vunpack.c.h.b16 %v1968
        %v2572 = vunpack.c.l.b16 %v1969
        %v2573 = vunpack.c.h.b16 %v1969
        %v2574 = vunpack.c.l.b16 %v1970
        %v2575 = vunpack.c.h.b16 %v1970
        %v2576 = vunpack.c.l.b16 %v1971
        %v2577 = vunpack.c.l.b16 %v1972
        %v2578 = vunpack.c.h.b16 %v1972
        %v2579 = vunpack.c.l.b16 %v1973
        %v2580 = vunpack.c.h.b16 %v1973
        %v2581 = vunpack.c.l.b16 %v1974
        %v2582 = vunpack.c.h.b16 %v1974
        %v2583 = vunpack.c.l.b16 %v1975
        %v2584 = vunpack.c.l.b16 %v1976
        %v2585 = vunpack.c.h.b16 %v1976
        %v2586 = vunpack.c.l.b16 %v1977
        %v2587 = vunpack.c.h.b16 %v1977
        %v2588 = vunpack.c.l.b16 %v1978
        %v2589 = vunpack.c.h.b16 %v1978
        %v2590 = vunpack.c.l.b16 %v1979
        %v2591 = vunpack.c.l.b16 %v1980
        %v2592 = vunpack.c.h.b16 %v1980
        %v2593 = vunpack.c.l.b16 %v1981
        %v2594 = vunpack.c.h.b16 %v1981
        %v2595 = vunpack.c.l.b16 %v1982
        %v2596 = vunpack.c.h.b16 %v1982
        %v2597 = vunpack.c.l.b16 %v1983
        %v2598 = vunpack.c.l.b16 %v1984
        %v2599 = vunpack.c.h.b16 %v1984
        %v2600 = vunpack.c.l.b16 %v1985
        %v2601 = vunpack.c.h.b16 %v1985
        %v2602 = vunpack.c.l.b16 %v1986
        %v2603 = vunpack.c.h.b16 %v1986
        %v2604 = vunpack.c.l.b16 %v1987
        %v2605 = vunpack.c.l.b16 %v1988
        %v2606 = vunpack.c.h.b16 %v1988
        %v2607 = vunpack.c.l.b16 %v1989
        %v2608 = vunpack.c.h.b16 %v1989
        %v2609 = vunpack.c.l.b16 %v1990
        %v2610 = vunpack.c.h.b16 %v1990
        %v2611 = vunpack.c.l.b16 %v1991
        %v2612 = vunpack.c.l.b16 %v1992
        %v2613 = vunpack.c.h.b16 %v1992
        %v2614 = vunpack.c.l.b16 %v1993
        %v2615 = vunpack.c.h.b16 %v1993
        %v2616 = vunpack.c.l.b16 %v1994
        %v2617 = vunpack.c.h.b16 %v1994
        %v2618 = vunpack.c.l.b16 %v1995
        %v2619 = vunpack.c.l.b16 %v1996
        %v2620 = vunpack.c.h.b16 %v1996
        %v2621 = vunpack.c.l.b16 %v1997
        %v2622 = vunpack.c.h.b16 %v1997
        %v2623 = vunpack.c.l.b16 %v1998
        %v2624 = vunpack.c.h.b16 %v1998
        %v2625 = vunpack.c.l.b16 %v1999
        %v2626 = vunpack.c.l.b16 %v2000
        %v2627 = vunpack.c.h.b16 %v2000
        %v2628 = vunpack.c.l.b16 %v2001
        %v2629 = vunpack.c.h.b16 %v2001
        %v2630 = vunpack.c.l.b16 %v2002
        %v2631 = vunpack.c.h.b16 %v2002
        %v2632 = vunpack.c.l.b16 %v2003
        %v2633 = vunpack.c.l.b16 %v2004
        %v2634 = vunpack.c.h.b16 %v2004
        %v2635 = vunpack.c.l.b16 %v2005
        %v2636 = vunpack.c.h.b16 %v2005
        %v2637 = vunpack.c.l.b16 %v2006
        %v2638 = vunpack.c.h.b16 %v2006
        %v2639 = vunpack.c.l.b16 %v2007
        %v2640 = vunpack.c.l.b16 %v2008
        %v2641 = vunpack.c.h.b16 %v2008
        %v2642 = vunpack.c.l.b16 %v2009
        %v2643 = vunpack.c.h.b16 %v2009
        %v2644 = vunpack.c.l.b16 %v2010
        %v2645 = vunpack.c.h.b16 %v2010
        %v2646 = vunpack.c.l.b16 %v2011
        %v2647 = vunpack.c.l.b16 %v2012
        %v2648 = vunpack.c.h.b16 %v2012
        %v2649 = vunpack.c.l.b16 %v2013
        %v2650 = vunpack.c.h.b16 %v2013
        %v2651 = vunpack.c.l.b16 %v2014
        %v2652 = vunpack.c.h.b16 %v2014
        %v2653 = vunpack.c.l.b16 %v2015
        %v2654 = vunpack.c.l.b16 %v2016
        %v2655 = vunpack.c.h.b16 %v2016
        %v2656 = vunpack.c.l.b16 %v2017
        %v2657 = vunpack.c.h.b16 %v2017
        %v2658 = vunpack.c.l.b16 %v2018
        %v2659 = vunpack.c.h.b16 %v2018
        %v2660 = vunpack.c.l.b16 %v2019
        %v2661 = vunpack.c.l.b16 %v2020
        %v2662 = vunpack.c.h.b16 %v2020
        %v2663 = vunpack.c.l.b16 %v2021
        %v2664 = vunpack.c.h.b16 %v2021
        %v2665 = vunpack.c.l.b16 %v2022
        %v2666 = vunpack.c.h.b16 %v2022
        %v2667 = vunpack.c.l.b16 %v2023
        %v2668 = vunpack.c.l.b16 %v2024
        %v2669 = vunpack.c.h.b16 %v2024
        %v2670 = vunpack.c.l.b16 %v2025
        %v2671 = vunpack.c.h.b16 %v2025
        %v2672 = vunpack.c.l.b16 %v2026
        %v2673 = vunpack.c.h.b16 %v2026
        %v2674 = vunpack.c.l.b16 %v2027
        %v2675 = vunpack.c.l.b16 %v2028
        %v2676 = vunpack.c.h.b16 %v2028
        %v2677 = vunpack.c.l.b16 %v2029
        %v2678 = vunpack.c.h.b16 %v2029
        %v2679 = vunpack.c.l.b16 %v2030
        %v2680 = vunpack.c.h.b16 %v2030
        %v2681 = vunpack.c.l.b16 %v2031
        %v2682 = vunpack.c.l.b16 %v2032
        %v2683 = vunpack.c.h.b16 %v2032
        %v2684 = vunpack.c.l.b16 %v2033
        %v2685 = vunpack.c.h.b16 %v2033
        %v2686 = vunpack.c.l.b16 %v2034
        %v2687 = vunpack.c.h.b16 %v2034
        %v2688 = vunpack.c.l.b16 %v2035
        %v2689 = vunpack.c.l.b16 %v2036
        %v2690 = vunpack.c.h.b16 %v2036
        %v2691 = vunpack.c.l.b16 %v2037
        %v2692 = vunpack.c.h.b16 %v2037
        %v2693 = vunpack.c.l.b16 %v2038
        %v2694 = vunpack.c.h.b16 %v2038
        %v2695 = vunpack.c.l.b16 %v2039
        %v2696 = vunpack.c.l.b16 %v2040
        %v2697 = vunpack.c.h.b16 %v2040
        %v2698 = vunpack.c.l.b16 %v2041
        %v2699 = vunpack.c.h.b16 %v2041
        %v2700 = vunpack.c.l.b16 %v2042
        %v2701 = vunpack.c.h.b16 %v2042
        %v2702 = vunpack.c.l.b16 %v2043
        %v2703 = vunpack.c.l.b16 %v2044
        %v2704 = vunpack.c.h.b16 %v2044
        %v2705 = vunpack.c.l.b16 %v2045
        %v2706 = vunpack.c.h.b16 %v2045
        %v2707 = vunpack.c.l.b16 %v2046
        %v2708 = vunpack.c.h.b16 %v2046
        %v2709 = vunpack.c.l.b16 %v2047
        %v2710 = vunpack.c.l.b16 %v2048
        %v2711 = vunpack.c.h.b16 %v2048
        %v2712 = vunpack.c.l.b16 %v2049
        %v2713 = vunpack.c.h.b16 %v2049
        %v2714 = vunpack.c.l.b16 %v2050
        %v2715 = vunpack.c.h.b16 %v2050
        %v2716 = vunpack.c.l.b16 %v2051
        %v2717 = vunpack.c.l.b16 %v2052
        %v2718 = vunpack.c.h.b16 %v2052
        %v2719 = vunpack.c.l.b16 %v2053
        %v2720 = vunpack.c.h.b16 %v2053
        %v2721 = vunpack.c.l.b16 %v2054
        %v2722 = vunpack.c.h.b16 %v2054
        %v2723 = vunpack.c.l.b16 %v2055
        %v2724 = vunpack.c.l.b16 %v2056
        %v2725 = vunpack.c.h.b16 %v2056
        %v2726 = vunpack.c.l.b16 %v2057
        %v2727 = vunpack.c.h.b16 %v2057
        %v2728 = vunpack.c.l.b16 %v2058
        %v2729 = vunpack.c.h.b16 %v2058
        %v2730 = vunpack.c.l.b16 %v2059
        %v2731 = vunpack.c.l.b16 %v2060
        %v2732 = vunpack.c.h.b16 %v2060
        %v2733 = vunpack.c.l.b16 %v2061
        %v2734 = vunpack.c.h.b16 %v2061
        %v2735 = vunpack.c.l.b16 %v2062
        %v2736 = vunpack.c.h.b16 %v2062
        %v2737 = vunpack.c.l.b16 %v2063
        %v2738 = vunpack.c.l.b16 %v2064
        %v2739 = vunpack.c.h.b16 %v2064
        %v2740 = vunpack.c.l.b16 %v2065
        %v2741 = vunpack.c.h.b16 %v2065
        %v2742 = vunpack.c.l.b16 %v2066
        %v2743 = vunpack.c.h.b16 %v2066
        %v2744 = vunpack.c.l.b16 %v2067
        %v2745 = vunpack.c.l.b16 %v2068
        %v2746 = vunpack.c.h.b16 %v2068
        %v2747 = vunpack.c.l.b16 %v2069
        %v2748 = vunpack.c.h.b16 %v2069
        %v2749 = vunpack.c.l.b16 %v2070
        %v2750 = vunpack.c.h.b16 %v2070
        %v2751 = vunpack.c.l.b16 %v2071
        %v2752 = vunpack.c.l.b16 %v2072
        %v2753 = vunpack.c.h.b16 %v2072
        %v2754 = vunpack.c.l.b16 %v2073
        %v2755 = vunpack.c.h.b16 %v2073
        %v2756 = vunpack.c.l.b16 %v2074
        %v2757 = vunpack.c.h.b16 %v2074
        %v2758 = vunpack.c.l.b16 %v2075
        %v2759 = vunpack.c.l.b16 %v2076
        %v2760 = vunpack.c.h.b16 %v2076
        %v2761 = vunpack.c.l.b16 %v2077
        %v2762 = vunpack.c.h.b16 %v2077
        %v2763 = vunpack.c.l.b16 %v2078
        %v2764 = vunpack.c.h.b16 %v2078
        %v2765 = vunpack.c.l.b16 %v2079
        %v2766 = vunpack.c.l.b16 %v2080
        %v2767 = vunpack.c.h.b16 %v2080
        %v2768 = vunpack.c.l.b16 %v2081
        %v2769 = vunpack.c.h.b16 %v2081
        %v2770 = vunpack.c.l.b16 %v2082
        %v2771 = vunpack.c.h.b16 %v2082
        %v2772 = vunpack.c.l.b16 %v2083
        %v2773 = vunpack.c.l.b16 %v2084
        %v2774 = vunpack.c.h.b16 %v2084
        %v2775 = vunpack.c.l.b16 %v2085
        %v2776 = vunpack.c.h.b16 %v2085
        %v2777 = vunpack.c.l.b16 %v2086
        %v2778 = vunpack.c.h.b16 %v2086
        %v2779 = vunpack.c.l.b16 %v2087
        %v2780 = vunpack.c.l.b16 %v2088
        %v2781 = vunpack.c.h.b16 %v2088
        %v2782 = vunpack.c.l.b16 %v2089
        %v2783 = vunpack.c.h.b16 %v2089
        %v2784 = vunpack.c.l.b16 %v2090
        %v2785 = vunpack.c.h.b16 %v2090
        %v2786 = vunpack.c.l.b16 %v2091
        %v2787 = vunpack.c.l.b16 %v2092
        %v2788 = vunpack.c.h.b16 %v2092
        %v2789 = vunpack.c.l.b16 %v2093
        %v2790 = vunpack.c.h.b16 %v2093
        %v2791 = vunpack.c.l.b16 %v2094
        %v2792 = vunpack.c.h.b16 %v2094
        %v2793 = vunpack.c.l.b16 %v2095
        %v2794 = vunpack.c.l.b16 %v2096
        %v2795 = vunpack.c.h.b16 %v2096
        %v2796 = vunpack.c.l.b16 %v2097
        %v2797 = vunpack.c.h.b16 %v2097
        %v2798 = vunpack.c.l.b16 %v2098
        %v2799 = vunpack.c.h.b16 %v2098
        %v2800 = vunpack.c.l.b16 %v2099
        %v2801 = vunpack.c.l.b16 %v2100
        %v2802 = vunpack.c.h.b16 %v2100
        %v2803 = vunpack.c.l.b16 %v2101
        %v2804 = vunpack.c.h.b16 %v2101
        %v2805 = vunpack.c.l.b16 %v2102
        %v2806 = vunpack.c.h.b16 %v2102
        %v2807 = vunpack.c.l.b16 %v2103
        %v2808 = vunpack.c.l.b16 %v2104
        %v2809 = vunpack.c.h.b16 %v2104
        %v2810 = vunpack.c.l.b16 %v2105
        %v2811 = vunpack.c.h.b16 %v2105
        %v2812 = vunpack.c.l.b16 %v2106
        %v2813 = vunpack.c.h.b16 %v2106
        %v2814 = vunpack.c.l.b16 %v2107
        %v2815 = vunpack.c.l.b16 %v2108
        %v2816 = vunpack.c.h.b16 %v2108
        %v2817 = vunpack.c.l.b16 %v2109
        %v2818 = vunpack.c.h.b16 %v2109
        %v2819 = vunpack.c.l.b16 %v2110
        %v2820 = vunpack.c.h.b16 %v2110
        %v2821 = vunpack.c.l.b16 %v2111
        %v2822 = vunpack.c.l.b16 %v2112
        %v2823 = vunpack.c.h.b16 %v2112
        %v2824 = vunpack.c.l.b16 %v2113
        %v2825 = vunpack.c.h.b16 %v2113
        %v2826 = vunpack.c.l.b16 %v2114
        %v2827 = vunpack.c.h.b16 %v2114
        %v2828 = vunpack.c.l.b16 %v2115
        %v2829 = vunpack.c.l.b16 %v2116
        %v2830 = vunpack.c.h.b16 %v2116
        %v2831 = vunpack.c.l.b16 %v2117
        %v2832 = vunpack.c.h.b16 %v2117
        %v2833 = vunpack.c.l.b16 %v2118
        %v2834 = vunpack.c.h.b16 %v2118
        %v2835 = vunpack.c.l.b16 %v2119
        %v2836 = vunpack.c.l.b16 %v2120
        %v2837 = vunpack.c.h.b16 %v2120
        %v2838 = vunpack.c.l.b16 %v2121
        %v2839 = vunpack.c.h.b16 %v2121
        %v2840 = vunpack.c.l.b16 %v2122
        %v2841 = vunpack.c.h.b16 %v2122
        %v2842 = vunpack.c.l.b16 %v2123
        %v2843 = vunpack.c.l.b16 %v2124
        %v2844 = vunpack.c.h.b16 %v2124
        %v2845 = vunpack.c.l.b16 %v2125
        %v2846 = vunpack.c.h.b16 %v2125
        %v2847 = vunpack.c.l.b16 %v2126
        %v2848 = vunpack.c.h.b16 %v2126
        %v2849 = vunpack.c.l.b16 %v2127
        %v2850 = vunpack.c.l.b16 %v2128
        %v2851 = vunpack.c.h.b16 %v2128
        %v2852 = vunpack.c.l.b16 %v2129
        %v2853 = vunpack.c.h.b16 %v2129
        %v2854 = vunpack.c.l.b16 %v2130
        %v2855 = vunpack.c.h.b16 %v2130
        %v2856 = vunpack.c.l.b16 %v2131
        %v2857 = vunpack.c.l.b16 %v2132
        %v2858 = vunpack.c.h.b16 %v2132
        %v2859 = vunpack.c.l.b16 %v2133
        %v2860 = vunpack.c.h.b16 %v2133
        %v2861 = vunpack.c.l.b16 %v2134
        %v2862 = vunpack.c.h.b16 %v2134
        %v2863 = vunpack.c.l.b16 %v2135
        %v2864 = vunpack.c.l.b16 %v2136
        %v2865 = vunpack.c.h.b16 %v2136
        %v2866 = vunpack.c.l.b16 %v2137
        %v2867 = vunpack.c.h.b16 %v2137
        %v2868 = vunpack.c.l.b16 %v2138
        %v2869 = vunpack.c.h.b16 %v2138
        %v2870 = vunpack.c.l.b16 %v2139
        %v2871 = vunpack.c.l.b16 %v2140
        %v2872 = vunpack.c.h.b16 %v2140
        %v2873 = vunpack.c.l.b16 %v2141
        %v2874 = vunpack.c.h.b16 %v2141
        %v2875 = vunpack.c.l.b16 %v2142
        %v2876 = vunpack.c.h.b16 %v2142
        %v2877 = vunpack.c.l.b16 %v2143
        %v2878 = vunpack.c.l.b16 %v2144
        %v2879 = vunpack.c.h.b16 %v2144
        %v2880 = vunpack.c.l.b16 %v2145
        %v2881 = vunpack.c.h.b16 %v2145
        %v2882 = vunpack.c.l.b16 %v2146
        %v2883 = vunpack.c.h.b16 %v2146
        %v2884 = vunpack.c.l.b16 %v2147
        %v2885 = vunpack.c.l.b16 %v2148
        %v2886 = vunpack.c.h.b16 %v2148
        %v2887 = vunpack.c.l.b16 %v2149
        %v2888 = vunpack.c.h.b16 %v2149
        %v2889 = vunpack.c.l.b16 %v2150
        %v2890 = vunpack.c.h.b16 %v2150
        %v2891 = vunpack.c.l.b16 %v2151
        %v2892 = vpack.c.b16 %v2451, %v2444
        %v2893 = vpack.c.b16 %v2452, %v2445
        %v2894 = vpack.c.b16 %v2453, %v2446
        %v2895 = vpack.c.b16 %v2454, %v2447
        %v2896 = vpack.c.b16 %v2455, %v2448
        %v2897 = vpack.c.b16 %v2456, %v2449
        %v2898 = vpack.c.b16 %v2457, %v2450
        %v2899 = vpack.c.b16 %v2465, %v2458
        %v2900 = vpack.c.b16 %v2466, %v2459
        %v2901 = vpack.c.b16 %v2467, %v2460
        %v2902 = vpack.c.b16 %v2468, %v2461
        %v2903 = vpack.c.b16 %v2469, %v2462
        %v2904 = vpack.c.b16 %v2470, %v2463
        %v2905 = vpack.c.b16 %v2471, %v2464
        %v2906 = vpack.c.b16 %v2479, %v2472
        %v2907 = vpack.c.b16 %v2480, %v2473
        %v2908 = vpack.c.b16 %v2481, %v2474
        %v2909 = vpack.c.b16 %v2482, %v2475
        %v2910 = vpack.c.b16 %v2483, %v2476
        %v2911 = vpack.c.b16 %v2484, %v2477
        %v2912 = vpack.c.b16 %v2485, %v2478
        %v2913 = vpack.c.b16 %v2493, %v2486
        %v2914 = vpack.c.b16 %v2494, %v2487
        %v2915 = vpack.c.b16 %v2495, %v2488
        %v2916 = vpack.c.b16 %v2496, %v2489
        %v2917 = vpack.c.b16 %v2497, %v2490
        %v2918 = vpack.c.b16 %v2498, %v2491
        %v2919 = vpack.c.b16 %v2499, %v2492
        %v2920 = vpack.c.b16 %v2507, %v2500
        %v2921 = vpack.c.b16 %v2508, %v2501
        %v2922 = vpack.c.b16 %v2509, %v2502
        %v2923 = vpack.c.b16 %v2510, %v2503
        %v2924 = vpack.c.b16 %v2511, %v2504
        %v2925 = vpack.c.b16 %v2512, %v2505
        %v2926 = vpack.c.b16 %v2513, %v2506
        %v2927 = vpack.c.b16 %v2521, %v2514
        %v2928 = vpack.c.b16 %v2522, %v2515
        %v2929 = vpack.c.b16 %v2523, %v2516
        %v2930 = vpack.c.b16 %v2524, %v2517
        %v2931 = vpack.c.b16 %v2525, %v2518
        %v2932 = vpack.c.b16 %v2526, %v2519
        %v2933 = vpack.c.b16 %v2527, %v2520
        %v2934 = vpack.c.b16 %v2535, %v2528
        %v2935 = vpack.c.b16 %v2536, %v2529
        %v2936 = vpack.c.b16 %v2537, %v2530
        %v2937 = vpack.c.b16 %v2538, %v2531
        %v2938 = vpack.c.b16 %v2539, %v2532
        %v2939 = vpack.c.b16 %v2540, %v2533
        %v2940 = vpack.c.b16 %v2541, %v2534
        %v2941 = vpack.c.b16 %v2549, %v2542
        %v2942 = vpack.c.b16 %v2550, %v2543
        %v2943 = vpack.c.b16 %v2551, %v2544
        %v2944 = vpack.c.b16 %v2552, %v2545
        %v2945 = vpack.c.b16 %v2553, %v2546
        %v2946 = vpack.c.b16 %v2554, %v2547
        %v2947 = vpack.c.b16 %v2555, %v2548
        %v2948 = vpack.c.b16 %v2563, %v2556
        %v2949 = vpack.c.b16 %v2564, %v2557
        %v2950 = vpack.c.b16 %v2565, %v2558
        %v2951 = vpack.c.b16 %v2566, %v2559
        %v2952 = vpack.c.b16 %v2567, %v2560
        %v2953 = vpack.c.b16 %v2568, %v2561
        %v2954 = vpack.c.b16 %v2569, %v2562
        %v2955 = vpack.c.b16 %v2577, %v2570
        %v2956 = vpack.c.b16 %v2578, %v2571
        %v2957 = vpack.c.b16 %v2579, %v2572
        %v2958 = vpack.c.b16 %v2580, %v2573
        %v2959 = vpack.c.b16 %v2581, %v2574
        %v2960 = vpack.c.b16 %v2582, %v2575
        %v2961 = vpack.c.b16 %v2583, %v2576
        %v2962 = vpack.c.b16 %v2591, %v2584
        %v2963 = vpack.c.b16 %v2592, %v2585
        %v2964 = vpack.c.b16 %v2593, %v2586
        %v2965 = vpack.c.b16 %v2594, %v2587
        %v2966 = vpack.c.b16 %v2595, %v2588
        %v2967 = vpack.c.b16 %v2596, %v2589
        %v2968 = vpack.c.b16 %v2597, %v2590
        %v2969 = vpack.c.b16 %v2605, %v2598
        %v2970 = vpack.c.b16 %v2606, %v2599
        %v2971 = vpack.c.b16 %v2607, %v2600
        %v2972 = vpack.c.b16 %v2608, %v2601
        %v2973 = vpack.c.b16 %v2609, %v2602
        %v2974 = vpack.c.b16 %v2610, %v2603
        %v2975 = vpack.c.b16 %v2611, %v2604
        %v2976 = vpack.c.b16 %v2619, %v2612
        %v2977 = vpack.c.b16 %v2620, %v2613
        %v2978 = vpack.c.b16 %v2621, %v2614
        %v2979 = vpack.c.b16 %v2622, %v2615
        %v2980 = vpack.c.b16 %v2623, %v2616
        %v2981 = vpack.c.b16 %v2624, %v2617
        %v2982 = vpack.c.b16 %v2625, %v2618
        %v2983 = vpack.c.b16 %v2633, %v2626
        %v2984 = vpack.c.b16 %v2634, %v2627
        %v2985 = vpack.c.b16 %v2635, %v2628
        %v2986 = vpack.c.b16 %v2636, %v2629
        %v2987 = vpack.c.b16 %v2637, %v2630
        %v2988 = vpack.c.b16 %v2638, %v2631
        %v2989 = vpack.c.b16 %v2639, %v2632
        %v2990 = vpack.c.b16 %v2647, %v2640
        %v2991 = vpack.c.b16 %v2648, %v2641
        %v2992 = vpack.c.b16 %v2649, %v2642
        %v2993 = vpack.c.b16 %v2650, %v2643
        %v2994 = vpack.c.b16 %v2651, %v2644
        %v2995 = vpack.c.b16 %v2652, %v2645
        %v2996 = vpack.c.b16 %v2653, %v2646
        %v2997 = vpack.c.b16 %v2661, %v2654
        %v2998 = vpack.c.b16 %v2662, %v2655
        %v2999 = vpack.c.b16 %v2663, %v2656
        %v3000 = vpack.c.b16 %v2664, %v2657
        %v3001 = vpack.c.b16 %v2665, %v2658
        %v3002 = vpack.c.b16 %v2666, %v2659
        %v3003 = vpack.c.b16 %v2667, %v2660
        %v3004 = vpack.c.b16 %v2675, %v2668
        %v3005 = vpack.c.b16 %v2676, %v2669
        %v3006 = vpack.c.b16 %v2677, %v2670
        %v3007 = vpack.c.b16 %v2678, %v2671
        %v3008 = vpack.c.b16 %v2679, %v2672
        %v3009 = vpack.c.b16 %v2680, %v2673
        %v3010 = vpack.c.b16 %v2681, %v2674
        %v3011 = vpack.c.b16 %v2689, %v2682
        %v3012 = vpack.c.b16 %v2690, %v2683
        %v3013 = vpack.c.b16 %v2691, %v2684
        %v3014 = vpack.c.b16 %v2692, %v2685
        %v3015 = vpack.c.b16 %v2693, %v2686
        %v3016 = vpack.c.b16 %v2694, %v2687
        %v3017 = vpack.c.b16 %v2695, %v2688
        %v3018 = vpack.c.b16 %v2703, %v2696
        %v3019 = vpack.c.b16 %v2704, %v2697
        %v3020 = vpack.c.b16 %v2705, %v2698
        %v3021 = vpack.c.b16 %v2706, %v2699
        %v3022 = vpack.c.b16 %v2707, %v2700
        %v3023 = vpack.c.b16 %v2708, %v2701
        %v3024 = vpack.c.b16 %v2709, %v2702
        %v3025 = vpack.c.b16 %v2717, %v2710
        %v3026 = vpack.c.b16 %v2718, %v2711
        %v3027 = vpack.c.b16 %v2719, %v2712
        %v3028 = vpack.c.b16 %v2720, %v2713
        %v3029 = vpack.c.b16 %v2721, %v2714
        %v3030 = vpack.c.b16 %v2722, %v2715
        %v3031 = vpack.c.b16 %v2723, %v2716
        %v3032 = vpack.c.b16 %v2731, %v2724
        %v3033 = vpack.c.b16 %v2732, %v2725
        %v3034 = vpack.c.b16 %v2733, %v2726
        %v3035 = vpack.c.b16 %v2734, %v2727
        %v3036 = vpack.c.b16 %v2735, %v2728
        %v3037 = vpack.c.b16 %v2736, %v2729
        %v3038 = vpack.c.b16 %v2737, %v2730
        %v3039 = vpack.c.b16 %v2745, %v2738
        %v3040 = vpack.c.b16 %v2746, %v2739
        %v3041 = vpack.c.b16 %v2747, %v2740
        %v3042 = vpack.c.b16 %v2748, %v2741
        %v3043 = vpack.c.b16 %v2749, %v2742
        %v3044 = vpack.c.b16 %v2750, %v2743
        %v3045 = vpack.c.b16 %v2751, %v2744
        %v3046 = vpack.c.b16 %v2759, %v2752
        %v3047 = vpack.c.b16 %v2760, %v2753
        %v3048 = vpack.c.b16 %v2761, %v2754
        %v3049 = vpack.c.b16 %v2762, %v2755
        %v3050 = vpack.c.b16 %v2763, %v2756
        %v3051 = vpack.c.b16 %v2764, %v2757
        %v3052 = vpack.c.b16 %v2765, %v2758
        %v3053 = vpack.c.b16 %v2773, %v2766
        %v3054 = vpack.c.b16 %v2774, %v2767
        %v3055 = vpack.c.b16 %v2775, %v2768
        %v3056 = vpack.c.b16 %v2776, %v2769
        %v3057 = vpack.c.b16 %v2777, %v2770
        %v3058 = vpack.c.b16 %v2778, %v2771
        %v3059 = vpack.c.b16 %v2779, %v2772
        %v3060 = vpack.c.b16 %v2787, %v2780
        %v3061 = vpack.c.b16 %v2788, %v2781
        %v3062 = vpack.c.b16 %v2789, %v2782
        %v3063 = vpack.c.b16 %v2790, %v2783
        %v3064 = vpack.c.b16 %v2791, %v2784
        %v3065 = vpack.c.b16 %v2792, %v2785
        %v3066 = vpack.c.b16 %v2793, %v2786
        %v3067 = vpack.c.b16 %v2801, %v2794
        %v3068 = vpack.c.b16 %v2802, %v2795
        %v3069 = vpack.c.b16 %v2803, %v2796
        %v3070 = vpack.c.b16 %v2804, %v2797
        %v3071 = vpack.c.b16 %v2805, %v2798
        %v3072 = vpack.c.b16 %v2806, %v2799
        %v3073 = vpack.c.b16 %v2807, %v2800
        %v3074 = vpack.c.b16 %v2815, %v2808
        %v3075 = vpack.c.b16 %v2816, %v2809
        %v3076 = vpack.c.b16 %v2817, %v2810
        %v3077 = vpack.c.b16 %v2818, %v2811
        %v3078 = vpack.c.b16 %v2819, %v2812
        %v3079 = vpack.c.b16 %v2820, %v2813
        %v3080 = vpack.c.b16 %v2821, %v2814
        %v3081 = vpack.c.b16 %v2829, %v2822
        %v3082 = vpack.c.b16 %v2830, %v2823
        %v3083 = vpack.c.b16 %v2831, %v2824
        %v3084 = vpack.c.b16 %v2832, %v2825
        %v3085 = vpack.c.b16 %v2833, %v2826
        %v3086 = vpack.c.b16 %v2834, %v2827
        %v3087 = vpack.c.b16 %v2835, %v2828
        %v3088 = vpack.c.b16 %v2843, %v2836
        %v3089 = vpack.c.b16 %v2844, %v2837
        %v3090 = vpack.c.b16 %v2845, %v2838
        %v3091 = vpack.c.b16 %v2846, %v2839
        %v3092 = vpack.c.b16 %v2847, %v2840
        %v3093 = vpack.c.b16 %v2848, %v2841
        %v3094 = vpack.c.b16 %v2849, %v2842
        %v3095 = vpack.c.b16 %v2857, %v2850
        %v3096 = vpack.c.b16 %v2858, %v2851
        %v3097 = vpack.c.b16 %v2859, %v2852
        %v3098 = vpack.c.b16 %v2860, %v2853
        %v3099 = vpack.c.b16 %v2861, %v2854
        %v3100 = vpack.c.b16 %v2862, %v2855
        %v3101 = vpack.c.b16 %v2863, %v2856
        %v3102 = vpack.c.b16 %v2871, %v2864
        %v3103 = vpack.c.b16 %v2872, %v2865
        %v3104 = vpack.c.b16 %v2873, %v2866
        %v3105 = vpack.c.b16 %v2874, %v2867
        %v3106 = vpack.c.b16 %v2875, %v2868
        %v3107 = vpack.c.b16 %v2876, %v2869
        %v3108 = vpack.c.b16 %v2877, %v2870
        %v3109 = vpack.c.b16 %v2885, %v2878
        %v3110 = vpack.c.b16 %v2886, %v2879
        %v3111 = vpack.c.b16 %v2887, %v2880
        %v3112 = vpack.c.b16 %v2888, %v2881
        %v3113 = vpack.c.b16 %v2889, %v2882
        %v3114 = vpack.c.b16 %v2890, %v2883
        %v3115 = vpack.c.b16 %v2891, %v2884
        %3340 = vmatprep.subr.bf16.mxu0 %v2893
        %3341 = vmatpush1.bf16.msra.mxu0 %v2892
        %3342 = vmatprep.subr.bf16.mxu0 %v2900
        %3343 = vmatpush1.bf16.msra.mxu0 %v2899
        %3344 = vmatprep.subr.bf16.mxu0 %v2907
        %3345 = vmatpush1.bf16.msra.mxu0 %v2906
        %3346 = vmatprep.subr.bf16.mxu0 %v2914
        %3347 = vmatpush1.bf16.msra.mxu0 %v2913
        %3348 = vmatprep.subr.bf16.mxu0 %v2921
        %3349 = vmatpush1.bf16.msra.mxu0 %v2920
        %3350 = vmatprep.subr.bf16.mxu0 %v2928
        %3351 = vmatpush1.bf16.msra.mxu0 %v2927
        %3352 = vmatprep.subr.bf16.mxu0 %v2935
        %3353 = vmatpush1.bf16.msra.mxu0 %v2934
        %3354 = vmatprep.subr.bf16.mxu0 %v2942
        %3355 = vmatpush1.bf16.msra.mxu0 %v2941
        %3356 = vmatprep.subr.bf16.mxu0 %v2949
        %3357 = vmatpush1.bf16.msra.mxu0 %v2948
        %3358 = vmatprep.subr.bf16.mxu0 %v2956
        %3359 = vmatpush1.bf16.msra.mxu0 %v2955
        %3360 = vmatprep.subr.bf16.mxu0 %v2963
        %3361 = vmatpush1.bf16.msra.mxu0 %v2962
        %3362 = vmatprep.subr.bf16.mxu0 %v2970
        %3363 = vmatpush1.bf16.msra.mxu0 %v2969
        %3364 = vmatprep.subr.bf16.mxu0 %v2977
        %3365 = vmatpush1.bf16.msra.mxu0 %v2976
        %3366 = vmatprep.subr.bf16.mxu0 %v2984
        %3367 = vmatpush1.bf16.msra.mxu0 %v2983
        %3368 = vmatprep.subr.bf16.mxu0 %v2991
        %3369 = vmatpush1.bf16.msra.mxu0 %v2990
        %3370 = vmatprep.subr.bf16.mxu0 %v2998
        %3371 = vmatpush1.bf16.msra.mxu0 %v2997
        %3372 = vmatprep.mubr.bf16.mxu0 %v1893
        %3373 = vmatmul.mubr.bf16.gmra.mrb[0].mxu0 %v1892
        %v3374 = vpop.f32.mrb[0].mxu0
        %v3375 = vadd.f32 %v2156, %v3374
        %v3376 = vpop.f32.mrb[0].mxu0
        %v3377 = vadd.f32 %v2160, %v3376
        %v3378 = vpop.f32.mrb[0].mxu0
        %v3379 = vpop.f32.mrb[0].mxu0
        %3380 = vdwg.mxu0
        %3381 = vmatprep.subr.bf16.mxu0 %v3005
        %3382 = vmatpush1.bf16.msra.mxu0 %v3004
        %3383 = vmatprep.subr.bf16.mxu0 %v3012
        %3384 = vmatpush1.bf16.msra.mxu0 %v3011
        %3385 = vmatprep.subr.bf16.mxu0 %v3019
        %3386 = vmatpush1.bf16.msra.mxu0 %v3018
        %3387 = vmatprep.subr.bf16.mxu0 %v3026
        %3388 = vmatpush1.bf16.msra.mxu0 %v3025
        %3389 = vmatprep.subr.bf16.mxu0 %v3033
        %3390 = vmatpush1.bf16.msra.mxu0 %v3032
        %3391 = vmatprep.subr.bf16.mxu0 %v3040
        %3392 = vmatpush1.bf16.msra.mxu0 %v3039
        %3393 = vmatprep.subr.bf16.mxu0 %v3047
        %3394 = vmatpush1.bf16.msra.mxu0 %v3046
        %3395 = vmatprep.subr.bf16.mxu0 %v3054
        %3396 = vmatpush1.bf16.msra.mxu0 %v3053
        %3397 = vmatprep.subr.bf16.mxu0 %v3061
        %3398 = vmatpush1.bf16.msra.mxu0 %v3060
        %3399 = vmatprep.subr.bf16.mxu0 %v3068
        %3400 = vmatpush1.bf16.msra.mxu0 %v3067
        %3401 = vmatprep.subr.bf16.mxu0 %v3075
        %3402 = vmatpush1.bf16.msra.mxu0 %v3074
        %3403 = vmatprep.subr.bf16.mxu0 %v3082
        %3404 = vmatpush1.bf16.msra.mxu0 %v3081
        %3405 = vmatprep.subr.bf16.mxu0 %v3089
        %3406 = vmatpush1.bf16.msra.mxu0 %v3088
        %3407 = vmatprep.subr.bf16.mxu0 %v3096
        %3408 = vmatpush1.bf16.msra.mxu0 %v3095
        %3409 = vmatprep.subr.bf16.mxu0 %v3103
        %3410 = vmatpush1.bf16.msra.mxu0 %v3102
        %3411 = vmatprep.subr.bf16.mxu0 %v3110
        %3412 = vmatpush1.bf16.msra.mxu0 %v3109
        %3413 = vmatprep.mubr.bf16.mxu0 %v1895
        %3414 = vmatmul.mubr.bf16.gmra.mrb[0].mxu0 %v1894
        %v3415 = vpop.f32.mrb[0].mxu0
        %v3416 = vadd.f32 %v3375, %v3415
        %v3417 = vpop.f32.mrb[0].mxu0
        %v3418 = vadd.f32 %v3377, %v3417
        %v3419 = vpop.f32.mrb[0].mxu0
        %v3420 = vpop.f32.mrb[0].mxu0
        %3421 = vdwg.mxu0
        %3422 = vmatprep.subr.bf16.mxu0 %v2895
        %3423 = vmatpush1.bf16.msra.mxu0 %v2894
        %3424 = vmatprep.subr.bf16.mxu0 %v2902
        %3425 = vmatpush1.bf16.msra.mxu0 %v2901
        %3426 = vmatprep.subr.bf16.mxu0 %v2909
        %3427 = vmatpush1.bf16.msra.mxu0 %v2908
        %3428 = vmatprep.subr.bf16.mxu0 %v2916
        %3429 = vmatpush1.bf16.msra.mxu0 %v2915
        %3430 = vmatprep.subr.bf16.mxu0 %v2923
        %3431 = vmatpush1.bf16.msra.mxu0 %v2922
        %3432 = vmatprep.subr.bf16.mxu0 %v2930
        %3433 = vmatpush1.bf16.msra.mxu0 %v2929
        %3434 = vmatprep.subr.bf16.mxu0 %v2937
        %3435 = vmatpush1.bf16.msra.mxu0 %v2936
        %3436 = vmatprep.subr.bf16.mxu0 %v2944
        %3437 = vmatpush1.bf16.msra.mxu0 %v2943
        %3438 = vmatprep.subr.bf16.mxu0 %v2951
        %3439 = vmatpush1.bf16.msra.mxu0 %v2950
        %3440 = vmatprep.subr.bf16.mxu0 %v2958
        %3441 = vmatpush1.bf16.msra.mxu0 %v2957
        %3442 = vmatprep.subr.bf16.mxu0 %v2965
        %3443 = vmatpush1.bf16.msra.mxu0 %v2964
        %3444 = vmatprep.subr.bf16.mxu0 %v2972
        %3445 = vmatpush1.bf16.msra.mxu0 %v2971
        %3446 = vmatprep.subr.bf16.mxu0 %v2979
        %3447 = vmatpush1.bf16.msra.mxu0 %v2978
        %3448 = vmatprep.subr.bf16.mxu0 %v2986
        %3449 = vmatpush1.bf16.msra.mxu0 %v2985
        %3450 = vmatprep.subr.bf16.mxu0 %v2993
        %3451 = vmatpush1.bf16.msra.mxu0 %v2992
        %3452 = vmatprep.subr.bf16.mxu0 %v3000
        %3453 = vmatpush1.bf16.msra.mxu0 %v2999
        %3454 = vmatprep.mubr.bf16.mxu0 %v1893
        %3455 = vmatmul.mubr.bf16.gmra.mrb[0].mxu0 %v1892
        %v3456 = vpop.f32.mrb[0].mxu0
        %v3457 = vadd.f32 %v2164, %v3456
        %v3458 = vpop.f32.mrb[0].mxu0
        %v3459 = vadd.f32 %v2168, %v3458
        %v3460 = vpop.f32.mrb[0].mxu0
        %v3461 = vpop.f32.mrb[0].mxu0
        %3462 = vdwg.mxu0
        %3463 = vmatprep.subr.bf16.mxu0 %v3007
        %3464 = vmatpush1.bf16.msra.mxu0 %v3006
        %3465 = vmatprep.subr.bf16.mxu0 %v3014
        %3466 = vmatpush1.bf16.msra.mxu0 %v3013
        %3467 = vmatprep.subr.bf16.mxu0 %v3021
        %3468 = vmatpush1.bf16.msra.mxu0 %v3020
        %3469 = vmatprep.subr.bf16.mxu0 %v3028
        %3470 = vmatpush1.bf16.msra.mxu0 %v3027
        %3471 = vmatprep.subr.bf16.mxu0 %v3035
        %3472 = vmatpush1.bf16.msra.mxu0 %v3034
        %3473 = vmatprep.subr.bf16.mxu0 %v3042
        %3474 = vmatpush1.bf16.msra.mxu0 %v3041
        %3475 = vmatprep.subr.bf16.mxu0 %v3049
        %3476 = vmatpush1.bf16.msra.mxu0 %v3048
        %3477 = vmatprep.subr.bf16.mxu0 %v3056
        %3478 = vmatpush1.bf16.msra.mxu0 %v3055
        %3479 = vmatprep.subr.bf16.mxu0 %v3063
        %3480 = vmatpush1.bf16.msra.mxu0 %v3062
        %3481 = vmatprep.subr.bf16.mxu0 %v3070
        %3482 = vmatpush1.bf16.msra.mxu0 %v3069
        %3483 = vmatprep.subr.bf16.mxu0 %v3077
        %3484 = vmatpush1.bf16.msra.mxu0 %v3076
        %3485 = vmatprep.subr.bf16.mxu0 %v3084
        %3486 = vmatpush1.bf16.msra.mxu0 %v3083
        %3487 = vmatprep.subr.bf16.mxu0 %v3091
        %3488 = vmatpush1.bf16.msra.mxu0 %v3090
        %3489 = vmatprep.subr.bf16.mxu0 %v3098
        %3490 = vmatpush1.bf16.msra.mxu0 %v3097
        %3491 = vmatprep.subr.bf16.mxu0 %v3105
        %3492 = vmatpush1.bf16.msra.mxu0 %v3104
        %3493 = vmatprep.subr.bf16.mxu0 %v3112
        %3494 = vmatpush1.bf16.msra.mxu0 %v3111
        %3495 = vmatprep.mubr.bf16.mxu0 %v1895
        %3496 = vmatmul.mubr.bf16.gmra.mrb[0].mxu0 %v1894
        %v3497 = vpop.f32.mrb[0].mxu0
        %v3498 = vadd.f32 %v3457, %v3497
        %v3499 = vpop.f32.mrb[0].mxu0
        %v3500 = vadd.f32 %v3459, %v3499
        %v3501 = vpop.f32.mrb[0].mxu0
        %v3502 = vpop.f32.mrb[0].mxu0
        %3503 = vdwg.mxu0
        %3504 = vmatprep.subr.bf16.mxu0 %v2897
        %3505 = vmatpush1.bf16.msra.mxu0 %v2896
        %3506 = vmatprep.subr.bf16.mxu0 %v2904
        %3507 = vmatpush1.bf16.msra.mxu0 %v2903
        %3508 = vmatprep.subr.bf16.mxu0 %v2911
        %3509 = vmatpush1.bf16.msra.mxu0 %v2910
        %3510 = vmatprep.subr.bf16.mxu0 %v2918
        %3511 = vmatpush1.bf16.msra.mxu0 %v2917
        %3512 = vmatprep.subr.bf16.mxu0 %v2925
        %3513 = vmatpush1.bf16.msra.mxu0 %v2924
        %3514 = vmatprep.subr.bf16.mxu0 %v2932
        %3515 = vmatpush1.bf16.msra.mxu0 %v2931
        %3516 = vmatprep.subr.bf16.mxu0 %v2939
        %3517 = vmatpush1.bf16.msra.mxu0 %v2938
        %3518 = vmatprep.subr.bf16.mxu0 %v2946
        %3519 = vmatpush1.bf16.msra.mxu0 %v2945
        %3520 = vmatprep.subr.bf16.mxu0 %v2953
        %3521 = vmatpush1.bf16.msra.mxu0 %v2952
        %3522 = vmatprep.subr.bf16.mxu0 %v2960
        %3523 = vmatpush1.bf16.msra.mxu0 %v2959
        %3524 = vmatprep.subr.bf16.mxu0 %v2967
        %3525 = vmatpush1.bf16.msra.mxu0 %v2966
        %3526 = vmatprep.subr.bf16.mxu0 %v2974
        %3527 = vmatpush1.bf16.msra.mxu0 %v2973
        %3528 = vmatprep.subr.bf16.mxu0 %v2981
        %3529 = vmatpush1.bf16.msra.mxu0 %v2980
        %3530 = vmatprep.subr.bf16.mxu0 %v2988
        %3531 = vmatpush1.bf16.msra.mxu0 %v2987
        %3532 = vmatprep.subr.bf16.mxu0 %v2995
        %3533 = vmatpush1.bf16.msra.mxu0 %v2994
        %3534 = vmatprep.subr.bf16.mxu0 %v3002
        %3535 = vmatpush1.bf16.msra.mxu0 %v3001
        %3536 = vmatprep.mubr.bf16.mxu0 %v1893
        %3537 = vmatmul.mubr.bf16.gmra.mrb[0].mxu0 %v1892
        %v3538 = vpop.f32.mrb[0].mxu0
        %v3539 = vadd.f32 %v2172, %v3538
        %v3540 = vpop.f32.mrb[0].mxu0
        %v3541 = vadd.f32 %v2176, %v3540
        %v3542 = vpop.f32.mrb[0].mxu0
        %v3543 = vpop.f32.mrb[0].mxu0
        %3544 = vdwg.mxu0
        %3545 = vmatprep.subr.bf16.mxu0 %v3009
        %3546 = vmatpush1.bf16.msra.mxu0 %v3008
        %3547 = vmatprep.subr.bf16.mxu0 %v3016
        %3548 = vmatpush1.bf16.msra.mxu0 %v3015
        %3549 = vmatprep.subr.bf16.mxu0 %v3023
        %3550 = vmatpush1.bf16.msra.mxu0 %v3022
        %3551 = vmatprep.subr.bf16.mxu0 %v3030
        %3552 = vmatpush1.bf16.msra.mxu0 %v3029
        %3553 = vmatprep.subr.bf16.mxu0 %v3037
        %3554 = vmatpush1.bf16.msra.mxu0 %v3036
        %3555 = vmatprep.subr.bf16.mxu0 %v3044
        %3556 = vmatpush1.bf16.msra.mxu0 %v3043
        %3557 = vmatprep.subr.bf16.mxu0 %v3051
        %3558 = vmatpush1.bf16.msra.mxu0 %v3050
        %3559 = vmatprep.subr.bf16.mxu0 %v3058
        %3560 = vmatpush1.bf16.msra.mxu0 %v3057
        %3561 = vmatprep.subr.bf16.mxu0 %v3065
        %3562 = vmatpush1.bf16.msra.mxu0 %v3064
        %3563 = vmatprep.subr.bf16.mxu0 %v3072
        %3564 = vmatpush1.bf16.msra.mxu0 %v3071
        %3565 = vmatprep.subr.bf16.mxu0 %v3079
        %3566 = vmatpush1.bf16.msra.mxu0 %v3078
        %3567 = vmatprep.subr.bf16.mxu0 %v3086
        %3568 = vmatpush1.bf16.msra.mxu0 %v3085
        %3569 = vmatprep.subr.bf16.mxu0 %v3093
        %3570 = vmatpush1.bf16.msra.mxu0 %v3092
        %3571 = vmatprep.subr.bf16.mxu0 %v3100
        %3572 = vmatpush1.bf16.msra.mxu0 %v3099
        %3573 = vmatprep.subr.bf16.mxu0 %v3107
        %3574 = vmatpush1.bf16.msra.mxu0 %v3106
        %3575 = vmatprep.subr.bf16.mxu0 %v3114
        %3576 = vmatpush1.bf16.msra.mxu0 %v3113
        %3577 = vmatprep.mubr.bf16.mxu0 %v1895
        %3578 = vmatmul.mubr.bf16.gmra.mrb[0].mxu0 %v1894
        %v3579 = vpop.f32.mrb[0].mxu0
        %v3580 = vadd.f32 %v3539, %v3579
        %v3581 = vpop.f32.mrb[0].mxu0
        %v3582 = vadd.f32 %v3541, %v3581
        %v3583 = vpop.f32.mrb[0].mxu0
        %v3584 = vpop.f32.mrb[0].mxu0
        %3585 = vdwg.mxu0
        %3586 = vmatprep.subr.bf16.mxu0 0
        %3587 = vmatpush1.bf16.msra.mxu0 %v2898
        %3588 = vmatprep.subr.bf16.mxu0 0
        %3589 = vmatpush1.bf16.msra.mxu0 %v2905
        %3590 = vmatprep.subr.bf16.mxu0 0
        %3591 = vmatpush1.bf16.msra.mxu0 %v2912
        %3592 = vmatprep.subr.bf16.mxu0 0
        %3593 = vmatpush1.bf16.msra.mxu0 %v2919
        %3594 = vmatprep.subr.bf16.mxu0 0
        %3595 = vmatpush1.bf16.msra.mxu0 %v2926
        %3596 = vmatprep.subr.bf16.mxu0 0
        %3597 = vmatpush1.bf16.msra.mxu0 %v2933
        %3598 = vmatprep.subr.bf16.mxu0 0
        %3599 = vmatpush1.bf16.msra.mxu0 %v2940
        %3600 = vmatprep.subr.bf16.mxu0 0
        %3601 = vmatpush1.bf16.msra.mxu0 %v2947
        %3602 = vmatprep.subr.bf16.mxu0 0
        %3603 = vmatpush1.bf16.msra.mxu0 %v2954
        %3604 = vmatprep.subr.bf16.mxu0 0
        %3605 = vmatpush1.bf16.msra.mxu0 %v2961
        %3606 = vmatprep.subr.bf16.mxu0 0
        %3607 = vmatpush1.bf16.msra.mxu0 %v2968
        %3608 = vmatprep.subr.bf16.mxu0 0
        %3609 = vmatpush1.bf16.msra.mxu0 %v2975
        %3610 = vmatprep.subr.bf16.mxu0 0
        %3611 = vmatpush1.bf16.msra.mxu0 %v2982
        %3612 = vmatprep.subr.bf16.mxu0 0
        %3613 = vmatpush1.bf16.msra.mxu0 %v2989
        %3614 = vmatprep.subr.bf16.mxu0 0
        %3615 = vmatpush1.bf16.msra.mxu0 %v2996
        %3616 = vmatprep.subr.bf16.mxu0 0
        %3617 = vmatpush1.bf16.msra.mxu0 %v3003
        %3618 = vmatprep.mubr.bf16.mxu0 %v1893
        %3619 = vmatmul.mubr.bf16.gmra.mrb[0].mxu0 %v1892
        %v3620 = vpop.f32.mrb[0].mxu0
        %v3621 = vadd.f32 %v2180, %v3620
        %v3622 = vpop.f32.mrb[0].mxu0
        %v3623 = vpop.f32.mrb[0].mxu0
        %v3624 = vpop.f32.mrb[0].mxu0
        %3625 = vdwg.mxu0
        %3626 = vmatprep.subr.bf16.mxu0 0
        %3627 = vmatpush1.bf16.msra.mxu0 %v3010
        %3628 = vmatprep.subr.bf16.mxu0 0
        %3629 = vmatpush1.bf16.msra.mxu0 %v3017
        %3630 = vmatprep.subr.bf16.mxu0 0
        %3631 = vmatpush1.bf16.msra.mxu0 %v3024
        %3632 = vmatprep.subr.bf16.mxu0 0
        %3633 = vmatpush1.bf16.msra.mxu0 %v3031
        %3634 = vmatprep.subr.bf16.mxu0 0
        %3635 = vmatpush1.bf16.msra.mxu0 %v3038
        %3636 = vmatprep.subr.bf16.mxu0 0
        %3637 = vmatpush1.bf16.msra.mxu0 %v3045
        %3638 = vmatprep.subr.bf16.mxu0 0
        %3639 = vmatpush1.bf16.msra.mxu0 %v3052
        %3640 = vmatprep.subr.bf16.mxu0 0
        %3641 = vmatpush1.bf16.msra.mxu0 %v3059
        %3642 = vmatprep.subr.bf16.mxu0 0
        %3643 = vmatpush1.bf16.msra.mxu0 %v3066
        %3644 = vmatprep.subr.bf16.mxu0 0
        %3645 = vmatpush1.bf16.msra.mxu0 %v3073
        %3646 = vmatprep.subr.bf16.mxu0 0
        %3647 = vmatpush1.bf16.msra.mxu0 %v3080
        %3648 = vmatprep.subr.bf16.mxu0 0
        %3649 = vmatpush1.bf16.msra.mxu0 %v3087
        %3650 = vmatprep.subr.bf16.mxu0 0
        %3651 = vmatpush1.bf16.msra.mxu0 %v3094
        %3652 = vmatprep.subr.bf16.mxu0 0
        %3653 = vmatpush1.bf16.msra.mxu0 %v3101
        %3654 = vmatprep.subr.bf16.mxu0 0
        %3655 = vmatpush1.bf16.msra.mxu0 %v3108
        %3656 = vmatprep.subr.bf16.mxu0 0
        %3657 = vmatpush1.bf16.msra.mxu0 %v3115
        %3658 = vmatprep.mubr.bf16.mxu0 %v1895
        %3659 = vmatmul.mubr.bf16.gmra.mrb[0].mxu0 %v1894
        %v3660 = vpop.f32.mrb[0].mxu0
        %v3661 = vadd.f32 %v3621, %v3660
        %v3662 = vpop.f32.mrb[0].mxu0
        %v3663 = vpop.f32.mrb[0].mxu0
        %v3664 = vpop.f32.mrb[0].mxu0
        %3665 = vdwg.mxu0
        %v3666 = vmul.f32 %v3416, %v3416
        %v3667 = vmul.f32 %v3418, %v3418
        %v3668 = vmul.f32 %v3498, %v3498
        %v3669 = vmul.f32 %v3500, %v3500
        %v3670 = vmul.f32 %v3580, %v3580
        %v3671 = vmul.f32 %v3582, %v3582
        %v3672 = vmul.f32 %v3661, %v3661
        %v3673 = vadd.f32 %v3666, %v3667
        %v3674 = vadd.f32 %v3673, %v3668
        %v3675 = vadd.f32 %v3674, %v3669
        %v3676 = vadd.f32 %v3675, %v3670
        %v3677 = vadd.f32 %v3676, %v3671
        %v3678 = vadd.f32 %v3677, %v3672
        %3679 = vadd.xlane.f32.xlu0 %v3678
        %v3680 = vpop.xlane.xlu0 %3679
        %v3681 = vmax.f32 %v3680, 1e-12
        %v3682 = vrsqrt.pop %v3681
        %v3683 = vmul.f32 %v3416, %v3682
        %v3684 = vmul.f32 %v3418, %v3682
        %v3685 = vmul.f32 %v3498, %v3682
        %v3686 = vmul.f32 %v3500, %v3682
        %v3687 = vmul.f32 %v3580, %v3682
        %v3688 = vmul.f32 %v3582, %v3682
        %v3689 = vmul.f32 %v3661, %v3682
        %v3690 = vxor.u32 %v3683, 2147483648
        %v3691 = vxor.u32 %v3684, 2147483648
        %v3692 = vxor.u32 %v3685, 2147483648
        %v3693 = vxor.u32 %v3686, 2147483648
        %v3694 = vxor.u32 %v3687, 2147483648
        %v3695 = vxor.u32 %v3688, 2147483648
        %v3696 = vxor.u32 %v3689, 2147483648
        %v3697 = vmul.f32 %v3690, 1.442695
        %v3698 = vpow.pop %v3697
        %v3699 = vmul.f32 %v3691, 1.442695
        %v3700 = vpow.pop %v3699
        %v3701 = vmul.f32 %v3692, 1.442695
        %v3702 = vpow.pop %v3701
        %v3703 = vmul.f32 %v3693, 1.442695
        %v3704 = vpow.pop %v3703
        %v3705 = vmul.f32 %v3694, 1.442695
        %v3706 = vpow.pop %v3705
        %v3707 = vmul.f32 %v3695, 1.442695
        %v3708 = vpow.pop %v3707
        %v3709 = vmul.f32 %v3696, 1.442695
        %v3710 = vpow.pop %v3709
        %v3711 = vadd.f32 %v3698, 1.0
        %v3712 = vadd.f32 %v3700, 1.0
        %v3713 = vadd.f32 %v3702, 1.0
        %v3714 = vadd.f32 %v3704, 1.0
        %v3715 = vadd.f32 %v3706, 1.0
        %v3716 = vadd.f32 %v3708, 1.0
        %v3717 = vadd.f32 %v3710, 1.0
        %v3718 = vrcp.pop %v3711
        %v3719 = vmul.f32 1.0, %v3718
        %v3720 = vrcp.pop %v3712
        %v3721 = vmul.f32 1.0, %v3720
        %v3722 = vrcp.pop %v3713
        %v3723 = vmul.f32 1.0, %v3722
        %v3724 = vrcp.pop %v3714
        %v3725 = vmul.f32 1.0, %v3724
        %v3726 = vrcp.pop %v3715
        %v3727 = vmul.f32 1.0, %v3726
        %v3728 = vrcp.pop %v3716
        %v3729 = vmul.f32 1.0, %v3728
        %v3730 = vrcp.pop %v3717
        %v3731 = vmul.f32 1.0, %v3730
        %3732 = vst [vmem:[%s295] sm:$0xff] %v3719
        %3733 = vst [vmem:[%s295 + $0x8] sm:$0xff] %v3721
        %3734 = vst [vmem:[%s295 + $0x10] sm:$0xff] %v3723
        %3735 = vst [vmem:[%s295 + $0x18] sm:$0xff] %v3725
        %3736 = vst [vmem:[%s295 + $0x20] sm:$0xff] %v3727
        %3737 = vst [vmem:[%s295 + $0x28] sm:$0xff] %v3729
        %vm3738 = vcmask 130048
        %3739 = vst.msk [vmem:[%s295 + $0x30] sm:$0xff] %vm3738, %v3731
        %s3740 = sand.u32 %s142, 1
        %s3741 = scalar_lea.sflag [#allocation4], %s3740
        %s3742 = sand.u32 %s142, 1
        %s3743 = smul.addr %s3742, 56
        %s3744 = scalar_lea.vmem [#allocation11], %s3743
        // Predicated region
        $region61: #{tpu_custom_call.1} parent=39 // pred_check
          %p3745 = pneg %p152
        $region62: #{tpu_custom_call.1} parent=39 // pred_check_branch
          %3747 = sbr.rel (%p3745) target = $region64
        $region63: #{tpu_custom_call.1} parent=39 // pred_region
          %s3749 = ssub.s32 896, 896
          %3750 = vsyncadd %s3741, %s3749
          %s3751 = smul.addr %s24, 7
          %s3752 = smul.addr %s3751, 128
          %s3753 = scalar_lea.hbm %s5, %s3752
          %s3755 = sshll.u32 %s3744, 4
          %s3756 = int_to_ptr.vmem [resolvable:$true] %s3755
          %3758 = dma.vmem_to_hbm [thread:$0]  %s3756, 896, %s3753, %s3741
        $region64: #{tpu_custom_call.1} parent=39 // pred_fallthru
          _
      $region40: #{tpu_custom_call.1} parent=5 // pred_fallthru
        _
      %p3759 = scmp.le.s32.totalorder 2, %s19
      // Predicated region
      $region65: #{tpu_custom_call.1} parent=5 // pred_check
        %p3760 = pneg %p3759
      $region66: #{tpu_custom_call.1} parent=5 // pred_check_branch
        %3762 = sbr.rel (%p3760) target = $region68
      $region67: #{tpu_custom_call.1} parent=5 // pred_region
        %s3763 = ssub.s32 %s19, 2
        // Predicated region
        $region69: #{tpu_custom_call.1} parent=67 // pred_check
          %p3764 = pneg %p158
        $region70: #{tpu_custom_call.1} parent=67 // pred_check_branch
          %3766 = sbr.rel (%p3764) target = $region72
        $region71: #{tpu_custom_call.1} parent=67 // pred_region
          %s3767 = sand.u32 %s143, 1
          %s3768 = scalar_lea.sflag [#allocation4], %s3767
          %s3769 = sand.u32 %s143, 1
          %s3770 = smul.addr %s3769, 56
          %s3771 = scalar_lea.vmem [#allocation11], %s3770
          %3772 = dma.done %s3768, 896
        $region72: #{tpu_custom_call.1} parent=67 // pred_fallthru
          _
      $region68: #{tpu_custom_call.1} parent=5 // pred_fallthru
        _
    $region6: #{tpu_custom_call.1} parent=1 // loop_footer
      %s23 = sadd.s32 1, %s19
    $region7: #{tpu_custom_call.1} parent=1 // loop_footer_branch
      %18 = sbr.rel target = $region3
    $region8: #{tpu_custom_call.1} parent=1 // loop_exit
      _
    %3773 = vsyncpa [#allocation3], 1
    %s3774 = scalar_lea.sflag [#allocation3], 1
    %3775 = vsyncpa %s3774, 1
    %3776 = vsyncpa [#allocation6], 1
    %3777 = vsyncpa [#allocation9], 1
    %3778 = vsyncpa [#allocation4], 1
    %s3779 = scalar_lea.sflag [#allocation4], 1
    %3780 = vsyncpa %s3779, 1

</llo_original>
